<compile_context>
chip_gen: v5e
topology: v5e:2x2
jax: 0.10.0
libtpu: 0.0.40
codegen_flags: <defaults>
</compile_context>

<pallas_src>
import functools

import jax
import jax.numpy as jnp
import numpy as np
from jax import lax
from jax.experimental import pallas as pl
from jax.experimental.pallas import tpu as pltpu

BN_EPS = 1e-5
VMEM_LIMIT_BYTES = 48 * 1024 * 1024   # leaves headroom on v7x's 64 MiB/TC


def _round_up(x, m):
    return (x + m - 1) // m * m


# ----------------------------------------------------------------------------
# Kernel 1: row-tiled linear projection  y = x @ w + b   (bf16 MXU, f32 acc)
# ----------------------------------------------------------------------------
def _linear_kernel(x_ref, w_ref, b_ref, o_ref):
    o_ref[...] = jnp.dot(x_ref[...], w_ref[...],
                         preferred_element_type=jnp.float32) + b_ref[...]


def linear_proj(x2d, w, b, *, tile_m=512):
    """x2d: [M, E] f32 -> [M, D] f32."""
    M, E = x2d.shape
    D = w.shape[1]
    tm = min(tile_m, _round_up(M, 16))          # multiple of 16 (bf16 tiling)
    Mpad = _round_up(M, tm)
    xb = jnp.pad(x2d, ((0, Mpad - M), (0, 0))).astype(jnp.bfloat16)
    wb = w.astype(jnp.bfloat16)
    bb = b.reshape(1, D).astype(jnp.float32)
    cost = pl.CostEstimate(
        flops=int(2 * Mpad * E * D), transcendentals=0,
        bytes_accessed=int(Mpad * E * 2 + E * D * 2 + Mpad * D * 4))
    out = pl.pallas_call(
        _linear_kernel,
        grid=(Mpad // tm,),
        out_shape=jax.ShapeDtypeStruct((Mpad, D), jnp.float32),
        in_specs=[
            pl.BlockSpec((tm, E), lambda i: (i, 0)),
            pl.BlockSpec((E, D), lambda i: (0, 0)),
            pl.BlockSpec((1, D), lambda i: (0, 0)),
        ],
        out_specs=pl.BlockSpec((tm, D), lambda i: (i, 0)),
        compiler_params=pltpu.CompilerParams(
            dimension_semantics=("parallel",),
            vmem_limit_bytes=VMEM_LIMIT_BYTES),
        cost_estimate=cost,
    )(xb, wb, bb)
    return out[:M]


# ----------------------------------------------------------------------------
# Kernel 2: fused conv1..conv4 (+ folded eval-mode BN + ReLU), one image/step.
#
# Activations use a flat zero-padded layout of the (H+2)x(W+2) image with row
# stride Wp=W+2: tap (dh,dw) of a 3x3 conv is the contiguous row-slice
# [off + dh*Wp + dw : ... + H*Wp).  The "extended" H x Wp output grid contains
# 2 wrap-around garbage columns per row which are masked to zero before being
# written back into the next layer's padded buffer (they land exactly on the
# border-padding cells), and simply discarded for the final output.
# ----------------------------------------------------------------------------
def _fused_conv_kernel(cols_ref, w1_ref, w2_ref, w3_ref, w4_ref,
                       sb1_ref, sb2_ref, sb3_ref, sb4_ref,
                       o_ref, p1_ref, p2_ref, *, H, W, lead):
    Wp = W + 2
    Mp = H * Wp
    store_off = lead + Wp + 1            # multiple of 8 by construction

    # mask zeroing the 2 wrap-around columns of the extended H x Wp grid
    col_idx = lax.broadcasted_iota(jnp.int32, (Mp, 1), 0) % Wp
    valid = col_idx < W

    def affine(acc, sb_ref, relu):
        y = acc * sb_ref[0:1, :] + sb_ref[1:2, :]
        return jnp.maximum(y, 0.0) if relu else y

    # ---- conv1 + BN + ReLU : 9 taps pre-folded into the contraction dim ----
    acc = jnp.dot(cols_ref[0], w1_ref[...],
                  preferred_element_type=jnp.float32)
    a1 = jnp.where(valid, affine(acc, sb1_ref, True), 0.0)
    p1_ref[...] = jnp.zeros_like(p1_ref)          # zero borders / slack rows
    p1_ref[pl.ds(store_off, Mp), :] = a1

    # ---- conv2 + BN + ReLU : in-kernel im2col (9 sublane-offset slices) ----
    acc = jnp.zeros((Mp, w2_ref.shape[-1]), jnp.float32)
    for k in range(9):
        dh, dw = k // 3, k % 3
        tap = p1_ref[pl.ds(lead + dh * Wp + dw, Mp), :].astype(jnp.bfloat16)
        acc = acc + jnp.dot(tap, w2_ref[k],
                            preferred_element_type=jnp.float32)
    a2 = jnp.where(valid, affine(acc, sb2_ref, True), 0.0)
    p2_ref[...] = jnp.zeros_like(p2_ref)
    p2_ref[pl.ds(store_off, Mp), :] = a2

    # ---- conv3 + BN + ReLU ----
    acc = jnp.zeros((Mp, w3_ref.shape[-1]), jnp.float32)
    for k in range(9):
        dh, dw = k // 3, k % 3
        tap = p2_ref[pl.ds(lead + dh * Wp + dw, Mp), :].astype(jnp.bfloat16)
        acc = acc + jnp.dot(tap, w3_ref[k],
                            preferred_element_type=jnp.float32)
    a3 = affine(acc, sb3_ref, True)      # wrap columns are discarded in glue

    # ---- conv4 : 1x1, lane-dense output (Cout zero-padded to 128) ----
    acc = jnp.dot(a3.astype(jnp.bfloat16), w4_ref[...],
                  preferred_element_type=jnp.float32)
    o_ref[0] = affine(acc, sb4_ref, False)


def fused_convs(img_nhwc, p, *, num_classes):
    """img_nhwc: [B, H, W, Cin] f32 -> [B, num_classes, H, W] f32."""
    B, H, W, C0 = img_nhwc.shape
    Wp = W + 2
    Mp = H * Wp
    C0p = _round_up(C0, 8)
    lead = (-(Wp + 1)) % 8                       # aligns interior store to 8
    C1 = p["w1"].shape[-1]
    C2 = p["w2"].shape[-1]
    C3 = p["w3"].shape[-1]
    NCp = _round_up(max(num_classes, 1), 128)    # lane-dense final output

    # zero-pad: 1 top / 2 bottom rows (slack for tap slices), 1 col each side,
    # channels -> multiple of 8; flatten rows with stride Wp.
    xpad = jnp.pad(img_nhwc, ((0, 0), (1, 2), (1, 1), (0, C0p - C0)))
    flat = xpad.reshape(B, (H + 3) * Wp, C0p)
    # conv1 im2col is built in glue on the tiny raw input only (Cin<=8);
    # the large conv2/conv3 im2cols happen inside the kernel.
    cols = jnp.concatenate(
        [lax.slice_in_dim(flat, dh * Wp + dw, dh * Wp + dw + Mp, axis=1)
         for dh in range(3) for dw in range(3)],
        axis=-1).astype(jnp.bfloat16)                        # [B, Mp, 9*C0p]

    # weights in bf16, MXU-friendly layouts
    w1 = jnp.pad(p["w1"], ((0, 0), (0, 0), (0, C0p - C0), (0, 0)))
    w1 = w1.reshape(9 * C0p, C1).astype(jnp.bfloat16)        # folded taps
    w2 = p["w2"].reshape(9, C1, C2).astype(jnp.bfloat16)
    w3 = p["w3"].reshape(9, C2, C3).astype(jnp.bfloat16)
    w4 = jnp.pad(p["w4"].reshape(C3, num_classes),
                 ((0, 0), (0, NCp - num_classes))).astype(jnp.bfloat16)

    def fold_bn(cb, g, be, m, v):
        s = g / jnp.sqrt(v + BN_EPS)
        return jnp.stack([s, (cb - m) * s + be]).astype(jnp.float32)

    sb1 = fold_bn(p["cb1"], p["g1"], p["be1"], p["m1"], p["v1"])
    sb2 = fold_bn(p["cb2"], p["g2"], p["be2"], p["m2"], p["v2"])
    sb3 = fold_bn(p["cb3"], p["g3"], p["be3"], p["m3"], p["v3"])
    sb4 = jnp.stack([jnp.ones((NCp,), jnp.float32),
                     jnp.pad(p["b4"], (0, NCp - num_classes))
                     ]).astype(jnp.float32)

    NRs = _round_up(lead + (H + 3) * Wp, 8)      # padded-activation rows

    flops = 2 * B * Mp * (9 * C0p * C1 + 9 * C1 * C2 + 9 * C2 * C3 + C3 * NCp)
    bytes_acc = (B * Mp * 9 * C0p * 2
                 + (w1.size + w2.size + w3.size + w4.size) * 2
                 + B * Mp * NCp * 4)

    kern = functools.partial(_fused_conv_kernel, H=H, W=W, lead=lead)
    out = pl.pallas_call(
        kern,
        grid=(B,),
        out_shape=jax.ShapeDtypeStruct((B, Mp, NCp), jnp.float32),
        in_specs=[
            pl.BlockSpec((1, Mp, 9 * C0p), lambda b: (b, 0, 0)),
            pl.BlockSpec((9 * C0p, C1), lambda b: (0, 0)),
            pl.BlockSpec((9, C1, C2), lambda b: (0, 0, 0)),
            pl.BlockSpec((9, C2, C3), lambda b: (0, 0, 0)),
            pl.BlockSpec((C3, NCp), lambda b: (0, 0)),
            pl.BlockSpec((2, C1), lambda b: (0, 0)),
            pl.BlockSpec((2, C2), lambda b: (0, 0)),
            pl.BlockSpec((2, C3), lambda b: (0, 0)),
            pl.BlockSpec((2, NCp), lambda b: (0, 0)),
        ],
        out_specs=pl.BlockSpec((1, Mp, NCp), lambda b: (b, 0, 0)),
        scratch_shapes=[pltpu.VMEM((NRs, C1), jnp.float32),
                        pltpu.VMEM((NRs, C2), jnp.float32)],
        compiler_params=pltpu.CompilerParams(
            dimension_semantics=("parallel",),
            vmem_limit_bytes=VMEM_LIMIT_BYTES),
        cost_estimate=pl.CostEstimate(flops=int(flops), transcendentals=0,
                                      bytes_accessed=int(bytes_acc)),
    )(cols, w1, w2, w3, w4, sb1, sb2, sb3, sb4)

    # extended H x Wp grid -> valid H x W pixels, drop padded classes, NCHW
    out = out.reshape(B, H, Wp, NCp)[:, :, :W, :num_classes]
    return out.transpose(0, 3, 1, 2)


# ----------------------------------------------------------------------------
# Full forward
# ----------------------------------------------------------------------------
def maess_decoder_forward(x, params, *, patch_size, in_chans, num_classes):
    """x: [B, 1+N, embed_dim] -> [B, num_classes, H, W] (NCHW, like PyTorch)."""
    B, Np1, E = x.shape
    N = Np1 - 1
    pch = patch_size
    pn = int(round(N ** 0.5))
    assert pn * pn == N, "num_patches must form a square grid"
    H = W = pn * pch
    D = pch * pch * in_chans

    x = x[:, 1:, :]                                          # drop CLS token
    y = linear_proj(x.reshape(B * N, E), params["w_lin"], params["b_lin"])
    y = y.reshape(B, N, D)

    # unpatchify -> NHWC image (channels-last so convs are MXU GEMMs)
    y = y.reshape(B, pn, pn, pch, pch, in_chans)
    y = y.transpose(0, 1, 3, 2, 4, 5).reshape(B, H, W, in_chans)

    return fused_convs(y, params, num_classes=num_classes)


# ----------------------------------------------------------------------------
# Pure-JAX reference (bf16 matmul inputs, f32 accumulation, eval-mode BN)
# ----------------------------------------------------------------------------
def reference_forward(x, params, *, patch_size, in_chans, num_classes):
    B, Np1, E = x.shape
    N = Np1 - 1
    pch = patch_size
    pn = int(round(N ** 0.5))
    H = W = pn * pch

    x = x[:, 1:, :]
    y = jnp.dot(x.astype(jnp.bfloat16).reshape(B * N, E),
                params["w_lin"].astype(jnp.bfloat16),
                preferred_element_type=jnp.float32) + params["b_lin"]
    y = y.reshape(B, pn, pn, pch, pch, in_chans)
    y = y.transpose(0, 1, 3, 2, 4, 5).reshape(B, H, W, in_chans)

    def conv_bn_relu(z, w, cb, g, be, m, v, relu):
        o = lax.conv_general_dilated(
            z.astype(jnp.bfloat16), w.astype(jnp.bfloat16), (1, 1), "SAME",
            dimension_numbers=("NHWC", "HWIO", "NHWC"),
            preferred_element_type=jnp.float32) + cb
        o = (o - m) / jnp.sqrt(v + BN_EPS) * g + be
        return jnp.maximum(o, 0.0) if relu else o

    h = conv_bn_relu(y, params["w1"], params["cb1"], params["g1"],
                     params["be1"], params["m1"], params["v1"], True)
    h = conv_bn_relu(h, params["w2"], params["cb2"], params["g2"],
                     params["be2"], params["m2"], params["v2"], True)
    h = conv_bn_relu(h, params["w3"], params["cb3"], params["g3"],
                     params["be3"], params["m3"], params["v3"], True)
    o = lax.conv_general_dilated(
        h.astype(jnp.bfloat16), params["w4"].astype(jnp.bfloat16), (1, 1),
        "SAME", dimension_numbers=("NHWC", "HWIO", "NHWC"),
        preferred_element_type=jnp.float32) + params["b4"]
    return o.transpose(0, 3, 1, 2)


# ----------------------------------------------------------------------------
# Deterministic synthetic parameters (no checkpoint load)
# ----------------------------------------------------------------------------
def init_params(key, embed_dim, patch_size, in_chans, num_classes):
    D = patch_size * patch_size * in_chans
    chans = [in_chans, 256, 128, 64]
    keys = jax.random.split(key, 32)
    ki = iter(range(32))

    def nrm(shape, std):
        return std * jax.random.normal(keys[next(ki)], shape, jnp.float32)

    params = {
        "w_lin": nrm((embed_dim, D), 1.0 / np.sqrt(embed_dim)),
        "b_lin": nrm((D,), 0.02),
    }
    for i in range(3):
        cin, cout = chans[i], chans[i + 1]
        std = np.sqrt(2.0 / (9 * cin))
        params[f"w{i+1}"] = nrm((3, 3, cin, cout), std)      # HWIO
        params[f"cb{i+1}"] = nrm((cout,), 0.02)
        params[f"g{i+1}"] = 1.0 + nrm((cout,), 0.05)
        params[f"be{i+1}"] = nrm((cout,), 0.05)
        params[f"m{i+1}"] = nrm((cout,), 0.05)
        params[f"v{i+1}"] = 1.0 + jnp.abs(nrm((cout,), 0.1))
    params["w4"] = nrm((1, 1, 64, num_classes), np.sqrt(2.0 / 64))
    params["b4"] = nrm((num_classes,), 0.02)
    return params


if __name__ == "__main__":
    # Small, module-consistent shapes:
    embed_dim = 32
    patch_size = 4
    in_chans = 4
    num_classes = 3
    batch = 2
    num_patches = 4        # 2x2 grid of patches  ->  image 8x8

    key = jax.random.PRNGKey(0)
    k_in, k_par = jax.random.split(key)
    x = jax.random.normal(k_in, (batch, num_patches + 1, embed_dim),
                          jnp.float32)
    params = init_params(k_par, embed_dim, patch_size, in_chans, num_classes)

    fwd = jax.jit(functools.partial(
        maess_decoder_forward, patch_size=patch_size,
        in_chans=in_chans, num_classes=num_classes))
    out = jax.block_until_ready(fwd(x, params))

    # Shape check: [B, num_classes, H, W]
    H = W = int(round(num_patches ** 0.5)) * patch_size
    assert out.shape == (batch, num_classes, H, W), out.shape

    # Numerical check against a bf16-matched pure-JAX reference.
    ref = jax.block_until_ready(
        reference_forward(x, params, patch_size=patch_size,
                          in_chans=in_chans, num_classes=num_classes))
    np.testing.assert_allclose(np.asarray(out), np.asarray(ref),
                               rtol=2e-2, atol=2e-2)

    print("KERNEL_OK")
</pallas_src>

<mosaic_0001>
module attributes {stable_mosaic.version = 11 : i64} {
  func.func @_linear_kernel(%arg0: i32, %arg1: memref<16x32xbf16, #tpu.memory_space<vmem>>, %arg2: memref<32x64xbf16, #tpu.memory_space<vmem>>, %arg3: memref<1x64xf32, #tpu.memory_space<vmem>>, %arg4: memref<16x64xf32, #tpu.memory_space<vmem>>) attributes {dimension_semantics = [#tpu.dimension_semantics<parallel>], iteration_bounds = array<i64: 1>, scalar_prefetch = 0 : i64, scratch_operands = 0 : i64, tpu.core_type = #tpu.core_type<tc>, window_params = [{transform_indices = @transform_0, window_bounds = array<i64: 16, 32>}, {pipeline_mode = #tpu.pipeline_mode<synchronous>, transform_indices = @transform_1, window_bounds = array<i64: 32, 64>}, {pipeline_mode = #tpu.pipeline_mode<synchronous>, transform_indices = @transform_2, window_bounds = array<i64: 1, 64>}, {transform_indices = @transform_3, window_bounds = array<i64: 16, 64>}]} {
    %c0 = arith.constant 0 : index
    %c0_0 = arith.constant 0 : index
    %0 = vector.load %arg1[%c0, %c0_0] : memref<16x32xbf16, #tpu.memory_space<vmem>>, vector<16x32xbf16>
    %c0_1 = arith.constant 0 : index
    %c0_2 = arith.constant 0 : index
    %1 = vector.load %arg2[%c0_1, %c0_2] : memref<32x64xbf16, #tpu.memory_space<vmem>>, vector<32x64xbf16>
    %cst = arith.constant dense<0.000000e+00> : vector<16x64xf32>
    %2 = tpu.matmul %0, %1, %cst {dimension_numbers = #tpu.dot_dimension_numbers<[1], [0], [0], [1], [0, 0, 1, 1], [], []>} : vector<16x32xbf16>, vector<32x64xbf16>, vector<16x64xf32> -> vector<16x64xf32>
    %c0_3 = arith.constant 0 : index
    %c0_4 = arith.constant 0 : index
    %3 = vector.load %arg3[%c0_3, %c0_4] : memref<1x64xf32, #tpu.memory_space<vmem>>, vector<1x64xf32>
    %4 = vector.broadcast %3 : vector<1x64xf32> to vector<16x64xf32>
    %5 = arith.addf %2, %4 : vector<16x64xf32>
    %c0_5 = arith.constant 0 : index
    %c0_6 = arith.constant 0 : index
    %6 = vector.load %arg4[%c0_5, %c0_6] : memref<16x64xf32, #tpu.memory_space<vmem>>, vector<16x64xf32>
    tpu.vector_store %arg4[%c0_5, %c0_6], %5 {strides = array<i32>} : memref<16x64xf32, #tpu.memory_space<vmem>>, vector<16x64xf32>,
    return
  }
  func.func @transform_0(%arg0: i32) -> (i32, i32) {
    %c0_i32 = arith.constant 0 : i32
    %c0_i32_0 = arith.constant 0 : i32
    return %arg0, %c0_i32 : i32, i32
  }
  func.func @transform_1(%arg0: i32) -> (i32, i32) {
    %c0_i32 = arith.constant 0 : i32
    %c0_i32_0 = arith.constant 0 : i32
    %c0_i32_1 = arith.constant 0 : i32
    return %c0_i32, %c0_i32_0 : i32, i32
  }
  func.func @transform_2(%arg0: i32) -> (i32, i32) {
    %c0_i32 = arith.constant 0 : i32
    %c0_i32_0 = arith.constant 0 : i32
    %c0_i32_1 = arith.constant 0 : i32
    return %c0_i32, %c0_i32_0 : i32, i32
  }
  func.func @transform_3(%arg0: i32) -> (i32, i32) {
    %c0_i32 = arith.constant 0 : i32
    %c0_i32_0 = arith.constant 0 : i32
    return %arg0, %c0_i32 : i32, i32
  }
}

module attributes {stable_mosaic.version = 11 : i64} {
  func.func @_fused_conv_kernel(%arg0: i32, %arg1: memref<1x80x72xbf16, #tpu.memory_space<vmem>>, %arg2: memref<72x256xbf16, #tpu.memory_space<vmem>>, %arg3: memref<9x256x128xbf16, #tpu.memory_space<vmem>>, %arg4: memref<9x128x64xbf16, #tpu.memory_space<vmem>>, %arg5: memref<64x128xbf16, #tpu.memory_space<vmem>>, %arg6: memref<2x256xf32, #tpu.memory_space<vmem>>, %arg7: memref<2x128xf32, #tpu.memory_space<vmem>>, %arg8: memref<2x64xf32, #tpu.memory_space<vmem>>, %arg9: memref<2x128xf32, #tpu.memory_space<vmem>>, %arg10: memref<1x80x128xf32, #tpu.memory_space<vmem>>, %arg11: memref<120x256xf32, #tpu.memory_space<vmem>>, %arg12: memref<120x128xf32, #tpu.memory_space<vmem>>) attributes {dimension_semantics = [#tpu.dimension_semantics<parallel>], iteration_bounds = array<i64: 2>, scalar_prefetch = 0 : i64, scratch_operands = 2 : i64, tpu.core_type = #tpu.core_type<tc>, window_params = [{transform_indices = @transform_0, window_bounds = array<i64: 1, 80, 72>}, {pipeline_mode = #tpu.pipeline_mode<synchronous>, transform_indices = @transform_1, window_bounds = array<i64: 72, 256>}, {pipeline_mode = #tpu.pipeline_mode<synchronous>, transform_indices = @transform_2, window_bounds = array<i64: 9, 256, 128>}, {pipeline_mode = #tpu.pipeline_mode<synchronous>, transform_indices = @transform_3, window_bounds = array<i64: 9, 128, 64>}, {pipeline_mode = #tpu.pipeline_mode<synchronous>, transform_indices = @transform_4, window_bounds = array<i64: 64, 128>}, {pipeline_mode = #tpu.pipeline_mode<synchronous>, transform_indices = @transform_5, window_bounds = array<i64: 2, 256>}, {pipeline_mode = #tpu.pipeline_mode<synchronous>, transform_indices = @transform_6, window_bounds = array<i64: 2, 128>}, {pipeline_mode = #tpu.pipeline_mode<synchronous>, transform_indices = @transform_7, window_bounds = array<i64: 2, 64>}, {pipeline_mode = #tpu.pipeline_mode<synchronous>, transform_indices = @transform_8, window_bounds = array<i64: 2, 128>}, {transform_indices = @transform_9, window_bounds = array<i64: 1, 80, 128>}]} {
    %0 = tpu.iota {dimensions = array<i32: 0>} : vector<80x1xi32>
    %c10_i32 = arith.constant 10 : i32
    %c0_i32 = arith.constant 0 : i32
    %1 = arith.cmpi eq, %c10_i32, %c0_i32 : i32
    %c1_i32 = arith.constant 1 : i32
    %2 = arith.select %1, %c1_i32, %c10_i32 : i32
    %3 = vector.broadcast %2 : i32 to vector<80x1xi32>
    %4 = arith.remsi %0, %3 : vector<80x1xi32>
    %c0_i32_0 = arith.constant 0 : i32
    %5 = vector.broadcast %c0_i32_0 : i32 to vector<80x1xi32>
    %6 = arith.cmpi ne, %4, %5 : vector<80x1xi32>
    %c0_i32_1 = arith.constant 0 : i32
    %7 = vector.broadcast %c0_i32_1 : i32 to vector<80x1xi32>
    %8 = arith.cmpi slt, %4, %7 : vector<80x1xi32>
    %c0_i32_2 = arith.constant 0 : i32
    %9 = arith.cmpi slt, %2, %c0_i32_2 : i32
    %10 = vector.broadcast %9 : i1 to vector<80x1xi1>
    %11 = vector.broadcast %10 : vector<80x1xi1> to vector<80x1xi1>
    %12 = arith.xori %8, %11 : vector<80x1xi1>
    %13 = arith.andi %12, %6 : vector<80x1xi1>
    %14 = vector.broadcast %2 : i32 to vector<80x1xi32>
    %15 = arith.addi %4, %14 : vector<80x1xi32>
    %16 = arith.select %13, %15, %4 : vector<80x1xi1>, vector<80x1xi32>
    %c8_i32 = arith.constant 8 : i32
    %17 = vector.broadcast %c8_i32 : i32 to vector<80x1xi32>
    %18 = arith.cmpi slt, %16, %17 : vector<80x1xi32>
    %c0 = arith.constant 0 : index
    %c0_3 = arith.constant 0 : index
    %c0_4 = arith.constant 0 : index
    %19 = vector.load %arg1[%c0, %c0_3, %c0_4] : memref<1x80x72xbf16, #tpu.memory_space<vmem>>, vector<1x80x72xbf16>
    %20 = vector.shape_cast %19 : vector<1x80x72xbf16> to vector<80x72xbf16>
    %c0_5 = arith.constant 0 : index
    %c0_6 = arith.constant 0 : index
    %21 = vector.load %arg2[%c0_5, %c0_6] : memref<72x256xbf16, #tpu.memory_space<vmem>>, vector<72x256xbf16>
    %cst = arith.constant dense<0.000000e+00> : vector<80x256xf32>
    %22 = tpu.matmul %20, %21, %cst {dimension_numbers = #tpu.dot_dimension_numbers<[1], [0], [0], [1], [0, 0, 1, 1], [], []>} : vector<80x72xbf16>, vector<72x256xbf16>, vector<80x256xf32> -> vector<80x256xf32>
    %c0_7 = arith.constant 0 : index
    %c0_8 = arith.constant 0 : index
    %23 = vector.load %arg6[%c0_7, %c0_8] : memref<2x256xf32, #tpu.memory_space<vmem>>, vector<1x256xf32>
    %24 = vector.broadcast %23 : vector<1x256xf32> to vector<80x256xf32>
    %25 = arith.mulf %22, %24 : vector<80x256xf32>
    %c1 = arith.constant 1 : index
    %c0_9 = arith.constant 0 : index
    %26 = vector.load %arg6[%c1, %c0_9] : memref<2x256xf32, #tpu.memory_space<vmem>>, vector<1x256xf32>
    %27 = vector.broadcast %26 : vector<1x256xf32> to vector<80x256xf32>
    %28 = arith.addf %25, %27 : vector<80x256xf32>
    %cst_10 = arith.constant 0.000000e+00 : f32
    %29 = vector.broadcast %cst_10 : f32 to vector<80x256xf32>
    %30 = arith.maximumf %28, %29 : vector<80x256xf32>
    %cst_11 = arith.constant 0.000000e+00 : f32
    %31 = vector.shape_cast %18 : vector<80x1xi1> to vector<80x1xi1>
    %32 = vector.broadcast %31 : vector<80x1xi1> to vector<80x256xi1>
    %33 = vector.broadcast %cst_11 : f32 to vector<80x256xf32>
    %34 = arith.select %32, %30, %33 : vector<80x256xi1>, vector<80x256xf32>
    %cst_12 = arith.constant 0.000000e+00 : f32
    %35 = vector.broadcast %cst_12 : f32 to vector<120x256xf32>
    %c0_13 = arith.constant 0 : index
    %c0_14 = arith.constant 0 : index
    %36 = vector.load %arg11[%c0_13, %c0_14] : memref<120x256xf32, #tpu.memory_space<vmem>>, vector<120x256xf32>
    tpu.vector_store %arg11[%c0_13, %c0_14], %35 {strides = array<i32>} : memref<120x256xf32, #tpu.memory_space<vmem>>, vector<120x256xf32>,
    %c16 = arith.constant 16 : index
    %c0_15 = arith.constant 0 : index
    %37 = vector.load %arg11[%c16, %c0_15] : memref<120x256xf32, #tpu.memory_space<vmem>>, vector<80x256xf32>
    tpu.vector_store %arg11[%c16, %c0_15], %34 {strides = array<i32>} : memref<120x256xf32, #tpu.memory_space<vmem>>, vector<80x256xf32>,
    %cst_16 = arith.constant 0.000000e+00 : f32
    %38 = vector.broadcast %cst_16 : f32 to vector<80x128xf32>
    %c5 = arith.constant 5 : index
    %c0_17 = arith.constant 0 : index
    %39 = vector.load %arg11[%c5, %c0_17] : memref<120x256xf32, #tpu.memory_space<vmem>>, vector<80x256xf32>
    %40 = arith.truncf %39 : vector<80x256xf32> to vector<80x256xbf16>
    %c0_18 = arith.constant 0 : index
    %c0_19 = arith.constant 0 : index
    %c0_20 = arith.constant 0 : index
    %41 = vector.load %arg3[%c0_18, %c0_19, %c0_20] : memref<9x256x128xbf16, #tpu.memory_space<vmem>>, vector<1x256x128xbf16>
    %42 = vector.shape_cast %41 : vector<1x256x128xbf16> to vector<256x128xbf16>
    %cst_21 = arith.constant dense<0.000000e+00> : vector<80x128xf32>
    %43 = tpu.matmul %40, %42, %cst_21 {dimension_numbers = #tpu.dot_dimension_numbers<[1], [0], [0], [1], [0, 0, 1, 1], [], []>} : vector<80x256xbf16>, vector<256x128xbf16>, vector<80x128xf32> -> vector<80x128xf32>
    %44 = arith.addf %38, %43 : vector<80x128xf32>
    %c6 = arith.constant 6 : index
    %c0_22 = arith.constant 0 : index
    %45 = vector.load %arg11[%c6, %c0_22] : memref<120x256xf32, #tpu.memory_space<vmem>>, vector<80x256xf32>
    %46 = arith.truncf %45 : vector<80x256xf32> to vector<80x256xbf16>
    %c1_23 = arith.constant 1 : index
    %c0_24 = arith.constant 0 : index
    %c0_25 = arith.constant 0 : index
    %47 = vector.load %arg3[%c1_23, %c0_24, %c0_25] : memref<9x256x128xbf16, #tpu.memory_space<vmem>>, vector<1x256x128xbf16>
    %48 = vector.shape_cast %47 : vector<1x256x128xbf16> to vector<256x128xbf16>
    %cst_26 = arith.constant dense<0.000000e+00> : vector<80x128xf32>
    %49 = tpu.matmul %46, %48, %cst_26 {dimension_numbers = #tpu.dot_dimension_numbers<[1], [0], [0], [1], [0, 0, 1, 1], [], []>} : vector<80x256xbf16>, vector<256x128xbf16>, vector<80x128xf32> -> vector<80x128xf32>
    %50 = arith.addf %44, %49 : vector<80x128xf32>
    %c7 = arith.constant 7 : index
    %c0_27 = arith.constant 0 : index
    %51 = vector.load %arg11[%c7, %c0_27] : memref<120x256xf32, #tpu.memory_space<vmem>>, vector<80x256xf32>
    %52 = arith.truncf %51 : vector<80x256xf32> to vector<80x256xbf16>
    %c2 = arith.constant 2 : index
    %c0_28 = arith.constant 0 : index
    %c0_29 = arith.constant 0 : index
    %53 = vector.load %arg3[%c2, %c0_28, %c0_29] : memref<9x256x128xbf16, #tpu.memory_space<vmem>>, vector<1x256x128xbf16>
    %54 = vector.shape_cast %53 : vector<1x256x128xbf16> to vector<256x128xbf16>
    %cst_30 = arith.constant dense<0.000000e+00> : vector<80x128xf32>
    %55 = tpu.matmul %52, %54, %cst_30 {dimension_numbers = #tpu.dot_dimension_numbers<[1], [0], [0], [1], [0, 0, 1, 1], [], []>} : vector<80x256xbf16>, vector<256x128xbf16>, vector<80x128xf32> -> vector<80x128xf32>
    %56 = arith.addf %50, %55 : vector<80x128xf32>
    %c15 = arith.constant 15 : index
    %c0_31 = arith.constant 0 : index
    %57 = vector.load %arg11[%c15, %c0_31] : memref<120x256xf32, #tpu.memory_space<vmem>>, vector<80x256xf32>
    %58 = arith.truncf %57 : vector<80x256xf32> to vector<80x256xbf16>
    %c3 = arith.constant 3 : index
    %c0_32 = arith.constant 0 : index
    %c0_33 = arith.constant 0 : index
    %59 = vector.load %arg3[%c3, %c0_32, %c0_33] : memref<9x256x128xbf16, #tpu.memory_space<vmem>>, vector<1x256x128xbf16>
    %60 = vector.shape_cast %59 : vector<1x256x128xbf16> to vector<256x128xbf16>
    %cst_34 = arith.constant dense<0.000000e+00> : vector<80x128xf32>
    %61 = tpu.matmul %58, %60, %cst_34 {dimension_numbers = #tpu.dot_dimension_numbers<[1], [0], [0], [1], [0, 0, 1, 1], [], []>} : vector<80x256xbf16>, vector<256x128xbf16>, vector<80x128xf32> -> vector<80x128xf32>
    %62 = arith.addf %56, %61 : vector<80x128xf32>
    %c16_35 = arith.constant 16 : index
    %c0_36 = arith.constant 0 : index
    %63 = vector.load %arg11[%c16_35, %c0_36] : memref<120x256xf32, #tpu.memory_space<vmem>>, vector<80x256xf32>
    %64 = arith.truncf %63 : vector<80x256xf32> to vector<80x256xbf16>
    %c4 = arith.constant 4 : index
    %c0_37 = arith.constant 0 : index
    %c0_38 = arith.constant 0 : index
    %65 = vector.load %arg3[%c4, %c0_37, %c0_38] : memref<9x256x128xbf16, #tpu.memory_space<vmem>>, vector<1x256x128xbf16>
    %66 = vector.shape_cast %65 : vector<1x256x128xbf16> to vector<256x128xbf16>
    %cst_39 = arith.constant dense<0.000000e+00> : vector<80x128xf32>
    %67 = tpu.matmul %64, %66, %cst_39 {dimension_numbers = #tpu.dot_dimension_numbers<[1], [0], [0], [1], [0, 0, 1, 1], [], []>} : vector<80x256xbf16>, vector<256x128xbf16>, vector<80x128xf32> -> vector<80x128xf32>
    %68 = arith.addf %62, %67 : vector<80x128xf32>
    %c17 = arith.constant 17 : index
    %c0_40 = arith.constant 0 : index
    %69 = vector.load %arg11[%c17, %c0_40] : memref<120x256xf32, #tpu.memory_space<vmem>>, vector<80x256xf32>
    %70 = arith.truncf %69 : vector<80x256xf32> to vector<80x256xbf16>
    %c5_41 = arith.constant 5 : index
    %c0_42 = arith.constant 0 : index
    %c0_43 = arith.constant 0 : index
    %71 = vector.load %arg3[%c5_41, %c0_42, %c0_43] : memref<9x256x128xbf16, #tpu.memory_space<vmem>>, vector<1x256x128xbf16>
    %72 = vector.shape_cast %71 : vector<1x256x128xbf16> to vector<256x128xbf16>
    %cst_44 = arith.constant dense<0.000000e+00> : vector<80x128xf32>
    %73 = tpu.matmul %70, %72, %cst_44 {dimension_numbers = #tpu.dot_dimension_numbers<[1], [0], [0], [1], [0, 0, 1, 1], [], []>} : vector<80x256xbf16>, vector<256x128xbf16>, vector<80x128xf32> -> vector<80x128xf32>
    %74 = arith.addf %68, %73 : vector<80x128xf32>
    %c25 = arith.constant 25 : index
    %c0_45 = arith.constant 0 : index
    %75 = vector.load %arg11[%c25, %c0_45] : memref<120x256xf32, #tpu.memory_space<vmem>>, vector<80x256xf32>
    %76 = arith.truncf %75 : vector<80x256xf32> to vector<80x256xbf16>
    %c6_46 = arith.constant 6 : index
    %c0_47 = arith.constant 0 : index
    %c0_48 = arith.constant 0 : index
    %77 = vector.load %arg3[%c6_46, %c0_47, %c0_48] : memref<9x256x128xbf16, #tpu.memory_space<vmem>>, vector<1x256x128xbf16>
    %78 = vector.shape_cast %77 : vector<1x256x128xbf16> to vector<256x128xbf16>
    %cst_49 = arith.constant dense<0.000000e+00> : vector<80x128xf32>
    %79 = tpu.matmul %76, %78, %cst_49 {dimension_numbers = #tpu.dot_dimension_numbers<[1], [0], [0], [1], [0, 0, 1, 1], [], []>} : vector<80x256xbf16>, vector<256x128xbf16>, vector<80x128xf32> -> vector<80x128xf32>
    %80 = arith.addf %74, %79 : vector<80x128xf32>
    %c26 = arith.constant 26 : index
    %c0_50 = arith.constant 0 : index
    %81 = vector.load %arg11[%c26, %c0_50] : memref<120x256xf32, #tpu.memory_space<vmem>>, vector<80x256xf32>
    %82 = arith.truncf %81 : vector<80x256xf32> to vector<80x256xbf16>
    %c7_51 = arith.constant 7 : index
    %c0_52 = arith.constant 0 : index
    %c0_53 = arith.constant 0 : index
    %83 = vector.load %arg3[%c7_51, %c0_52, %c0_53] : memref<9x256x128xbf16, #tpu.memory_space<vmem>>, vector<1x256x128xbf16>
    %84 = vector.shape_cast %83 : vector<1x256x128xbf16> to vector<256x128xbf16>
    %cst_54 = arith.constant dense<0.000000e+00> : vector<80x128xf32>
    %85 = tpu.matmul %82, %84, %cst_54 {dimension_numbers = #tpu.dot_dimension_numbers<[1], [0], [0], [1], [0, 0, 1, 1], [], []>} : vector<80x256xbf16>, vector<256x128xbf16>, vector<80x128xf32> -> vector<80x128xf32>
    %86 = arith.addf %80, %85 : vector<80x128xf32>
    %c27 = arith.constant 27 : index
    %c0_55 = arith.constant 0 : index
    %87 = vector.load %arg11[%c27, %c0_55] : memref<120x256xf32, #tpu.memory_space<vmem>>, vector<80x256xf32>
    %88 = arith.truncf %87 : vector<80x256xf32> to vector<80x256xbf16>
    %c8 = arith.constant 8 : index
    %c0_56 = arith.constant 0 : index
    %c0_57 = arith.constant 0 : index
    %89 = vector.load %arg3[%c8, %c0_56, %c0_57] : memref<9x256x128xbf16, #tpu.memory_space<vmem>>, vector<1x256x128xbf16>
    %90 = vector.shape_cast %89 : vector<1x256x128xbf16> to vector<256x128xbf16>
    %cst_58 = arith.constant dense<0.000000e+00> : vector<80x128xf32>
    %91 = tpu.matmul %88, %90, %cst_58 {dimension_numbers = #tpu.dot_dimension_numbers<[1], [0], [0], [1], [0, 0, 1, 1], [], []>} : vector<80x256xbf16>, vector<256x128xbf16>, vector<80x128xf32> -> vector<80x128xf32>
    %92 = arith.addf %86, %91 : vector<80x128xf32>
    %c0_59 = arith.constant 0 : index
    %c0_60 = arith.constant 0 : index
    %93 = vector.load %arg7[%c0_59, %c0_60] : memref<2x128xf32, #tpu.memory_space<vmem>>, vector<1x128xf32>
    %94 = vector.broadcast %93 : vector<1x128xf32> to vector<80x128xf32>
    %95 = arith.mulf %92, %94 : vector<80x128xf32>
    %c1_61 = arith.constant 1 : index
    %c0_62 = arith.constant 0 : index
    %96 = vector.load %arg7[%c1_61, %c0_62] : memref<2x128xf32, #tpu.memory_space<vmem>>, vector<1x128xf32>
    %97 = vector.broadcast %96 : vector<1x128xf32> to vector<80x128xf32>
    %98 = arith.addf %95, %97 : vector<80x128xf32>
    %cst_63 = arith.constant 0.000000e+00 : f32
    %99 = vector.broadcast %cst_63 : f32 to vector<80x128xf32>
    %100 = arith.maximumf %98, %99 : vector<80x128xf32>
    %cst_64 = arith.constant 0.000000e+00 : f32
    %101 = vector.shape_cast %18 : vector<80x1xi1> to vector<80x1xi1>
    %102 = vector.broadcast %101 : vector<80x1xi1> to vector<80x128xi1>
    %103 = vector.broadcast %cst_64 : f32 to vector<80x128xf32>
    %104 = arith.select %102, %100, %103 : vector<80x128xi1>, vector<80x128xf32>
    %cst_65 = arith.constant 0.000000e+00 : f32
    %105 = vector.broadcast %cst_65 : f32 to vector<120x128xf32>
    %c0_66 = arith.constant 0 : index
    %c0_67 = arith.constant 0 : index
    %106 = vector.load %arg12[%c0_66, %c0_67] : memref<120x128xf32, #tpu.memory_space<vmem>>, vector<120x128xf32>
    tpu.vector_store %arg12[%c0_66, %c0_67], %105 {strides = array<i32>} : memref<120x128xf32, #tpu.memory_space<vmem>>, vector<120x128xf32>,
    %c16_68 = arith.constant 16 : index
    %c0_69 = arith.constant 0 : index
    %107 = vector.load %arg12[%c16_68, %c0_69] : memref<120x128xf32, #tpu.memory_space<vmem>>, vector<80x128xf32>
    tpu.vector_store %arg12[%c16_68, %c0_69], %104 {strides = array<i32>} : memref<120x128xf32, #tpu.memory_space<vmem>>, vector<80x128xf32>,
    %cst_70 = arith.constant 0.000000e+00 : f32
    %108 = vector.broadcast %cst_70 : f32 to vector<80x64xf32>
    %c5_71 = arith.constant 5 : index
    %c0_72 = arith.constant 0 : index
    %109 = vector.load %arg12[%c5_71, %c0_72] : memref<120x128xf32, #tpu.memory_space<vmem>>, vector<80x128xf32>
    %110 = arith.truncf %109 : vector<80x128xf32> to vector<80x128xbf16>
    %c0_73 = arith.constant 0 : index
    %c0_74 = arith.constant 0 : index
    %c0_75 = arith.constant 0 : index
    %111 = vector.load %arg4[%c0_73, %c0_74, %c0_75] : memref<9x128x64xbf16, #tpu.memory_space<vmem>>, vector<1x128x64xbf16>
    %112 = vector.shape_cast %111 : vector<1x128x64xbf16> to vector<128x64xbf16>
    %cst_76 = arith.constant dense<0.000000e+00> : vector<80x64xf32>
    %113 = tpu.matmul %110, %112, %cst_76 {dimension_numbers = #tpu.dot_dimension_numbers<[1], [0], [0], [1], [0, 0, 1, 1], [], []>} : vector<80x128xbf16>, vector<128x64xbf16>, vector<80x64xf32> -> vector<80x64xf32>
    %114 = arith.addf %108, %113 : vector<80x64xf32>
    %c6_77 = arith.constant 6 : index
    %c0_78 = arith.constant 0 : index
    %115 = vector.load %arg12[%c6_77, %c0_78] : memref<120x128xf32, #tpu.memory_space<vmem>>, vector<80x128xf32>
    %116 = arith.truncf %115 : vector<80x128xf32> to vector<80x128xbf16>
    %c1_79 = arith.constant 1 : index
    %c0_80 = arith.constant 0 : index
    %c0_81 = arith.constant 0 : index
    %117 = vector.load %arg4[%c1_79, %c0_80, %c0_81] : memref<9x128x64xbf16, #tpu.memory_space<vmem>>, vector<1x128x64xbf16>
    %118 = vector.shape_cast %117 : vector<1x128x64xbf16> to vector<128x64xbf16>
    %cst_82 = arith.constant dense<0.000000e+00> : vector<80x64xf32>
    %119 = tpu.matmul %116, %118, %cst_82 {dimension_numbers = #tpu.dot_dimension_numbers<[1], [0], [0], [1], [0, 0, 1, 1], [], []>} : vector<80x128xbf16>, vector<128x64xbf16>, vector<80x64xf32> -> vector<80x64xf32>
    %120 = arith.addf %114, %119 : vector<80x64xf32>
    %c7_83 = arith.constant 7 : index
    %c0_84 = arith.constant 0 : index
    %121 = vector.load %arg12[%c7_83, %c0_84] : memref<120x128xf32, #tpu.memory_space<vmem>>, vector<80x128xf32>
    %122 = arith.truncf %121 : vector<80x128xf32> to vector<80x128xbf16>
    %c2_85 = arith.constant 2 : index
    %c0_86 = arith.constant 0 : index
    %c0_87 = arith.constant 0 : index
    %123 = vector.load %arg4[%c2_85, %c0_86, %c0_87] : memref<9x128x64xbf16, #tpu.memory_space<vmem>>, vector<1x128x64xbf16>
    %124 = vector.shape_cast %123 : vector<1x128x64xbf16> to vector<128x64xbf16>
    %cst_88 = arith.constant dense<0.000000e+00> : vector<80x64xf32>
    %125 = tpu.matmul %122, %124, %cst_88 {dimension_numbers = #tpu.dot_dimension_numbers<[1], [0], [0], [1], [0, 0, 1, 1], [], []>} : vector<80x128xbf16>, vector<128x64xbf16>, vector<80x64xf32> -> vector<80x64xf32>
    %126 = arith.addf %120, %125 : vector<80x64xf32>
    %c15_89 = arith.constant 15 : index
    %c0_90 = arith.constant 0 : index
    %127 = vector.load %arg12[%c15_89, %c0_90] : memref<120x128xf32, #tpu.memory_space<vmem>>, vector<80x128xf32>
    %128 = arith.truncf %127 : vector<80x128xf32> to vector<80x128xbf16>
    %c3_91 = arith.constant 3 : index
    %c0_92 = arith.constant 0 : index
    %c0_93 = arith.constant 0 : index
    %129 = vector.load %arg4[%c3_91, %c0_92, %c0_93] : memref<9x128x64xbf16, #tpu.memory_space<vmem>>, vector<1x128x64xbf16>
    %130 = vector.shape_cast %129 : vector<1x128x64xbf16> to vector<128x64xbf16>
    %cst_94 = arith.constant dense<0.000000e+00> : vector<80x64xf32>
    %131 = tpu.matmul %128, %130, %cst_94 {dimension_numbers = #tpu.dot_dimension_numbers<[1], [0], [0], [1], [0, 0, 1, 1], [], []>} : vector<80x128xbf16>, vector<128x64xbf16>, vector<80x64xf32> -> vector<80x64xf32>
    %132 = arith.addf %126, %131 : vector<80x64xf32>
    %c16_95 = arith.constant 16 : index
    %c0_96 = arith.constant 0 : index
    %133 = vector.load %arg12[%c16_95, %c0_96] : memref<120x128xf32, #tpu.memory_space<vmem>>, vector<80x128xf32>
    %134 = arith.truncf %133 : vector<80x128xf32> to vector<80x128xbf16>
    %c4_97 = arith.constant 4 : index
    %c0_98 = arith.constant 0 : index
    %c0_99 = arith.constant 0 : index
    %135 = vector.load %arg4[%c4_97, %c0_98, %c0_99] : memref<9x128x64xbf16, #tpu.memory_space<vmem>>, vector<1x128x64xbf16>
    %136 = vector.shape_cast %135 : vector<1x128x64xbf16> to vector<128x64xbf16>
    %cst_100 = arith.constant dense<0.000000e+00> : vector<80x64xf32>
    %137 = tpu.matmul %134, %136, %cst_100 {dimension_numbers = #tpu.dot_dimension_numbers<[1], [0], [0], [1], [0, 0, 1, 1], [], []>} : vector<80x128xbf16>, vector<128x64xbf16>, vector<80x64xf32> -> vector<80x64xf32>
    %138 = arith.addf %132, %137 : vector<80x64xf32>
    %c17_101 = arith.constant 17 : index
    %c0_102 = arith.constant 0 : index
    %139 = vector.load %arg12[%c17_101, %c0_102] : memref<120x128xf32, #tpu.memory_space<vmem>>, vector<80x128xf32>
    %140 = arith.truncf %139 : vector<80x128xf32> to vector<80x128xbf16>
    %c5_103 = arith.constant 5 : index
    %c0_104 = arith.constant 0 : index
    %c0_105 = arith.constant 0 : index
    %141 = vector.load %arg4[%c5_103, %c0_104, %c0_105] : memref<9x128x64xbf16, #tpu.memory_space<vmem>>, vector<1x128x64xbf16>
    %142 = vector.shape_cast %141 : vector<1x128x64xbf16> to vector<128x64xbf16>
    %cst_106 = arith.constant dense<0.000000e+00> : vector<80x64xf32>
    %143 = tpu.matmul %140, %142, %cst_106 {dimension_numbers = #tpu.dot_dimension_numbers<[1], [0], [0], [1], [0, 0, 1, 1], [], []>} : vector<80x128xbf16>, vector<128x64xbf16>, vector<80x64xf32> -> vector<80x64xf32>
    %144 = arith.addf %138, %143 : vector<80x64xf32>
    %c25_107 = arith.constant 25 : index
    %c0_108 = arith.constant 0 : index
    %145 = vector.load %arg12[%c25_107, %c0_108] : memref<120x128xf32, #tpu.memory_space<vmem>>, vector<80x128xf32>
    %146 = arith.truncf %145 : vector<80x128xf32> to vector<80x128xbf16>
    %c6_109 = arith.constant 6 : index
    %c0_110 = arith.constant 0 : index
    %c0_111 = arith.constant 0 : index
    %147 = vector.load %arg4[%c6_109, %c0_110, %c0_111] : memref<9x128x64xbf16, #tpu.memory_space<vmem>>, vector<1x128x64xbf16>
    %148 = vector.shape_cast %147 : vector<1x128x64xbf16> to vector<128x64xbf16>
    %cst_112 = arith.constant dense<0.000000e+00> : vector<80x64xf32>
    %149 = tpu.matmul %146, %148, %cst_112 {dimension_numbers = #tpu.dot_dimension_numbers<[1], [0], [0], [1], [0, 0, 1, 1], [], []>} : vector<80x128xbf16>, vector<128x64xbf16>, vector<80x64xf32> -> vector<80x64xf32>
    %150 = arith.addf %144, %149 : vector<80x64xf32>
    %c26_113 = arith.constant 26 : index
    %c0_114 = arith.constant 0 : index
    %151 = vector.load %arg12[%c26_113, %c0_114] : memref<120x128xf32, #tpu.memory_space<vmem>>, vector<80x128xf32>
    %152 = arith.truncf %151 : vector<80x128xf32> to vector<80x128xbf16>
    %c7_115 = arith.constant 7 : index
    %c0_116 = arith.constant 0 : index
    %c0_117 = arith.constant 0 : index
    %153 = vector.load %arg4[%c7_115, %c0_116, %c0_117] : memref<9x128x64xbf16, #tpu.memory_space<vmem>>, vector<1x128x64xbf16>
    %154 = vector.shape_cast %153 : vector<1x128x64xbf16> to vector<128x64xbf16>
    %cst_118 = arith.constant dense<0.000000e+00> : vector<80x64xf32>
    %155 = tpu.matmul %152, %154, %cst_118 {dimension_numbers = #tpu.dot_dimension_numbers<[1], [0], [0], [1], [0, 0, 1, 1], [], []>} : vector<80x128xbf16>, vector<128x64xbf16>, vector<80x64xf32> -> vector<80x64xf32>
    %156 = arith.addf %150, %155 : vector<80x64xf32>
    %c27_119 = arith.constant 27 : index
    %c0_120 = arith.constant 0 : index
    %157 = vector.load %arg12[%c27_119, %c0_120] : memref<120x128xf32, #tpu.memory_space<vmem>>, vector<80x128xf32>
    %158 = arith.truncf %157 : vector<80x128xf32> to vector<80x128xbf16>
    %c8_121 = arith.constant 8 : index
    %c0_122 = arith.constant 0 : index
    %c0_123 = arith.constant 0 : index
    %159 = vector.load %arg4[%c8_121, %c0_122, %c0_123] : memref<9x128x64xbf16, #tpu.memory_space<vmem>>, vector<1x128x64xbf16>
    %160 = vector.shape_cast %159 : vector<1x128x64xbf16> to vector<128x64xbf16>
    %cst_124 = arith.constant dense<0.000000e+00> : vector<80x64xf32>
    %161 = tpu.matmul %158, %160, %cst_124 {dimension_numbers = #tpu.dot_dimension_numbers<[1], [0], [0], [1], [0, 0, 1, 1], [], []>} : vector<80x128xbf16>, vector<128x64xbf16>, vector<80x64xf32> -> vector<80x64xf32>
    %162 = arith.addf %156, %161 : vector<80x64xf32>
    %c0_125 = arith.constant 0 : index
    %c0_126 = arith.constant 0 : index
    %163 = vector.load %arg8[%c0_125, %c0_126] : memref<2x64xf32, #tpu.memory_space<vmem>>, vector<1x64xf32>
    %164 = vector.broadcast %163 : vector<1x64xf32> to vector<80x64xf32>
    %165 = arith.mulf %162, %164 : vector<80x64xf32>
    %c1_127 = arith.constant 1 : index
    %c0_128 = arith.constant 0 : index
    %166 = vector.load %arg8[%c1_127, %c0_128] : memref<2x64xf32, #tpu.memory_space<vmem>>, vector<1x64xf32>
    %167 = vector.broadcast %166 : vector<1x64xf32> to vector<80x64xf32>
    %168 = arith.addf %165, %167 : vector<80x64xf32>
    %cst_129 = arith.constant 0.000000e+00 : f32
    %169 = vector.broadcast %cst_129 : f32 to vector<80x64xf32>
    %170 = arith.maximumf %168, %169 : vector<80x64xf32>
    %171 = arith.truncf %170 : vector<80x64xf32> to vector<80x64xbf16>
    %c0_130 = arith.constant 0 : index
    %c0_131 = arith.constant 0 : index
    %172 = vector.load %arg5[%c0_130, %c0_131] : memref<64x128xbf16, #tpu.memory_space<vmem>>, vector<64x128xbf16>
    %cst_132 = arith.constant dense<0.000000e+00> : vector<80x128xf32>
    %173 = tpu.matmul %171, %172, %cst_132 {dimension_numbers = #tpu.dot_dimension_numbers<[1], [0], [0], [1], [0, 0, 1, 1], [], []>} : vector<80x64xbf16>, vector<64x128xbf16>, vector<80x128xf32> -> vector<80x128xf32>
    %c0_133 = arith.constant 0 : index
    %c0_134 = arith.constant 0 : index
    %174 = vector.load %arg9[%c0_133, %c0_134] : memref<2x128xf32, #tpu.memory_space<vmem>>, vector<1x128xf32>
    %175 = vector.broadcast %174 : vector<1x128xf32> to vector<80x128xf32>
    %176 = arith.mulf %173, %175 : vector<80x128xf32>
    %c1_135 = arith.constant 1 : index
    %c0_136 = arith.constant 0 : index
    %177 = vector.load %arg9[%c1_135, %c0_136] : memref<2x128xf32, #tpu.memory_space<vmem>>, vector<1x128xf32>
    %178 = vector.broadcast %177 : vector<1x128xf32> to vector<80x128xf32>
    %179 = arith.addf %176, %178 : vector<80x128xf32>
    %c0_137 = arith.constant 0 : index
    %c0_138 = arith.constant 0 : index
    %c0_139 = arith.constant 0 : index
    %180 = vector.load %arg10[%c0_137, %c0_138, %c0_139] : memref<1x80x128xf32, #tpu.memory_space<vmem>>, vector<1x80x128xf32>
    %181 = vector.shape_cast %180 : vector<1x80x128xf32> to vector<80x128xf32>
    %182 = vector.shape_cast %179 : vector<80x128xf32> to vector<1x80x128xf32>
    tpu.vector_store %arg10[%c0_137, %c0_138, %c0_139], %182 {strides = array<i32>} : memref<1x80x128xf32, #tpu.memory_space<vmem>>, vector<1x80x128xf32>,
    return
  }
  func.func @transform_0(%arg0: i32) -> (i32, i32, i32) {
    %c0_i32 = arith.constant 0 : i32
    %c0_i32_0 = arith.constant 0 : i32
    %c0_i32_1 = arith.constant 0 : i32
    return %arg0, %c0_i32, %c0_i32_0 : i32, i32, i32
  }
  func.func @transform_1(%arg0: i32) -> (i32, i32) {
    %c0_i32 = arith.constant 0 : i32
    %c0_i32_0 = arith.constant 0 : i32
    %c0_i32_1 = arith.constant 0 : i32
    return %c0_i32, %c0_i32_0 : i32, i32
  }
  func.func @transform_2(%arg0: i32) -> (i32, i32, i32) {
    %c0_i32 = arith.constant 0 : i32
    %c0_i32_0 = arith.constant 0 : i32
    %c0_i32_1 = arith.constant 0 : i32
    %c0_i32_2 = arith.constant 0 : i32
    return %c0_i32, %c0_i32_0, %c0_i32_1 : i32, i32, i32
  }
  func.func @transform_3(%arg0: i32) -> (i32, i32, i32) {
    %c0_i32 = arith.constant 0 : i32
    %c0_i32_0 = arith.constant 0 : i32
    %c0_i32_1 = arith.constant 0 : i32
    %c0_i32_2 = arith.constant 0 : i32
    return %c0_i32, %c0_i32_0, %c0_i32_1 : i32, i32, i32
  }
  func.func @transform_4(%arg0: i32) -> (i32, i32) {
    %c0_i32 = arith.constant 0 : i32
    %c0_i32_0 = arith.constant 0 : i32
    %c0_i32_1 = arith.constant 0 : i32
    return %c0_i32, %c0_i32_0 : i32, i32
  }
  func.func @transform_5(%arg0: i32) -> (i32, i32) {
    %c0_i32 = arith.constant 0 : i32
    %c0_i32_0 = arith.constant 0 : i32
    %c0_i32_1 = arith.constant 0 : i32
    return %c0_i32, %c0_i32_0 : i32, i32
  }
  func.func @transform_6(%arg0: i32) -> (i32, i32) {
    %c0_i32 = arith.constant 0 : i32
    %c0_i32_0 = arith.constant 0 : i32
    %c0_i32_1 = arith.constant 0 : i32
    return %c0_i32, %c0_i32_0 : i32, i32
  }
  func.func @transform_7(%arg0: i32) -> (i32, i32) {
    %c0_i32 = arith.constant 0 : i32
    %c0_i32_0 = arith.constant 0 : i32
    %c0_i32_1 = arith.constant 0 : i32
    return %c0_i32, %c0_i32_0 : i32, i32
  }
  func.func @transform_8(%arg0: i32) -> (i32, i32) {
    %c0_i32 = arith.constant 0 : i32
    %c0_i32_0 = arith.constant 0 : i32
    %c0_i32_1 = arith.constant 0 : i32
    return %c0_i32, %c0_i32_0 : i32, i32
  }
  func.func @transform_9(%arg0: i32) -> (i32, i32, i32) {
    %c0_i32 = arith.constant 0 : i32
    %c0_i32_0 = arith.constant 0 : i32
    %c0_i32_1 = arith.constant 0 : i32
    return %arg0, %c0_i32, %c0_i32_0 : i32, i32, i32
  }
}

</mosaic_0001>

<llo_original>
// kernel: maess_decoder_forward.2
$region0: #{maess_decoder_forward.2}
  #allocation0 [shape = 'u32[]', space=smem, size = 0x4, offset = 0x4, fixed_abs, tag = 'smem constant byte address 0x4 - core index']
  #allocation1 [shape = 'u32[72,128]{1,0:T(1,128)}', space=vmem, size = 0x9000, scoped, tag = 'internal scratch']
  %s0 = inlined_call_operand.vmem [shape: bf16[16,32], index: 0, kind: input, shape index: {}]
  %s1 = inlined_call_operand.vmem [shape: bf16[32,64], index: 1, kind: input, shape index: {}]
  %s2 = inlined_call_operand.hbm [shape: f32[1,64], index: 2, kind: input, shape index: {}]
  %s3 = inlined_call_operand.vmem [shape: f32[16,64], index: 3, kind: output, shape index: {}]
  %s4 = sld [smem:[#allocation0]]
  $region26: #{maess_decoder_forward.2} parent=0
    _
  %s6 = ssub.s32 1, %s4
  %s7 = scalar_select 0, %s6, %s4
  $region1: #{maess_decoder_forward.2} parent=0
    #allocation2 [shape = 'u8[512]{0}', space=vmem, size = 0x400, scoped, tag = 'input window, operand 2, single buffered']
    #allocation3 [shape = 's32[1]{0}', space=sflag, size = 0x4, scoped, tag = 'scoped memory for maess_decoder_forward.2']
    %8 = vsyncpa [#allocation3], 0
    // Predicated region
    $region2: #{maess_decoder_forward.2} parent=1 // pred_check
      _
    $region3: #{maess_decoder_forward.2} parent=1 // pred_check_branch
      %10 = sbr.rel (0) target = $region5
    $region4: #{maess_decoder_forward.2} parent=1 // pred_region
      _
    $region5: #{maess_decoder_forward.2} parent=1 // pred_fallthru
      _
    // Predicated region
    $region6: #{maess_decoder_forward.2} parent=1 // pred_check
      _
    $region7: #{maess_decoder_forward.2} parent=1 // pred_check_branch
      %12 = sbr.rel (0) target = $region9
    $region8: #{maess_decoder_forward.2} parent=1 // pred_region
      _
    $region9: #{maess_decoder_forward.2} parent=1 // pred_fallthru
      _
    // Predicated region
    $region10: #{maess_decoder_forward.2} parent=1 // pred_check
      _
    $region11: #{maess_decoder_forward.2} parent=1 // pred_check_branch
      %14 = sbr.rel (0) target = $region13
    $region12: #{maess_decoder_forward.2} parent=1 // pred_region
      %16 = vsyncadd [#allocation3], 0
      %s18 = sshll.u32 %s2, 4
      %s19 = int_to_ptr.hbm [resolvable:$true] %s18
      %s20 = sshll.u32 [#allocation2], 4
      %s21 = int_to_ptr.vmem [resolvable:$true] %s20
      %23 = dma.hbm_to_vmem [thread:$0]  %s19, 16, %s21, [#allocation3]
    $region13: #{maess_decoder_forward.2} parent=1 // pred_fallthru
      _
    // Predicated region
    $region14: #{maess_decoder_forward.2} parent=1 // pred_check
      _
    $region15: #{maess_decoder_forward.2} parent=1 // pred_check_branch
      %25 = sbr.rel (0) target = $region17
    $region16: #{maess_decoder_forward.2} parent=1 // pred_region
      %27 = dma.done [#allocation3], 16
    $region17: #{maess_decoder_forward.2} parent=1 // pred_fallthru
      _
    %v29 = vld [vmem:[%s0] sm:$0xf]
    %v30 = vld [vmem:[%s0 + $0x4] sm:$0xf]
    %v31 = vld [vmem:[%s1] sm:$0xf]
    %v32 = vld [vmem:[%s1 + $0x4] sm:$0xf]
    %v33 = vld [vmem:[%s1 + $0x8] sm:$0xf]
    %v34 = vld [vmem:[%s1 + $0xc] sm:$0xf]
    %v35 = vld [vmem:[#allocation2] sm:$0x1]
    %v37 = vperm.slane %v35, 0
    %v41 = vunpack.c.l.b16 %v29
    %v42 = vunpack.c.l.b16 %v30
    %v43 = vpack.c.b16 %v42, %v41
    %v48 = vunpack.c.l.b16 %v31
    %v49 = vunpack.c.l.b16 %v32
    %v50 = vunpack.c.l.b16 %v33
    %v51 = vunpack.c.l.b16 %v34
    %v52 = vpack.c.b16 %v49, %v48
    %v53 = vpack.c.b16 %v51, %v50
    %vm56 = vcmask 261120
    %v58 = vsel %vm56, %v43, 0
    %60 = vmatpush.bf16.msra.mxu0 0
    %61 = vmatpush.bf16.msra.mxu0 0
    %62 = vmatpush.bf16.msra.mxu0 0
    %63 = vmatpush.bf16.msra.mxu0 0
    %64 = vmatpush.bf16.msra.mxu0 0
    %65 = vmatpush.bf16.msra.mxu0 0
    %66 = vmatpush.bf16.msra.mxu0 %v53
    %67 = vmatpush.bf16.msra.mxu0 %v52
    %68 = vmatmul.bf16.gmra.mxu0 %v58
    %v69 = vpop.f32.mrf.mxu0
    %v70 = vadd.f32 %v37, %v69
    %v71 = vpop.f32.mrf.mxu0
    %v72 = vadd.f32 %v37, %v71
    %73 = vdwg.mxu0
    %vm74 = vcmask 523264
    %75 = vst.msk [vmem:[%s3] sm:$0xff] %vm74, %v70
    %76 = vst.msk [vmem:[%s3 + $0x8] sm:$0xff] %vm74, %v72
    // Predicated region
    $region18: #{maess_decoder_forward.2} parent=1 // pred_check
      _
    $region19: #{maess_decoder_forward.2} parent=1 // pred_check_branch
      %78 = sbr.rel (0) target = $region21
    $region20: #{maess_decoder_forward.2} parent=1 // pred_region
      _
    $region21: #{maess_decoder_forward.2} parent=1 // pred_fallthru
      _
    // Predicated region
    $region22: #{maess_decoder_forward.2} parent=1 // pred_check
      _
    $region23: #{maess_decoder_forward.2} parent=1 // pred_check_branch
      %80 = sbr.rel (0) target = $region25
    $region24: #{maess_decoder_forward.2} parent=1 // pred_region
      _
    $region25: #{maess_decoder_forward.2} parent=1 // pred_fallthru
      _
    %81 = vsyncpa [#allocation3], 1

// kernel: maess_decoder_forward.3
$region0: #{maess_decoder_forward.3}
  #allocation0 [shape = 'u32[]', space=smem, size = 0x4, offset = 0x4, fixed_abs, tag = 'smem constant byte address 0x4 - core index']
  #allocation1 [shape = 'u32[72,128]{1,0:T(1,128)}', space=vmem, size = 0x9000, scoped, tag = 'internal scratch']
  #allocation2 [shape = 'f32[120,256]{1,0:T(8,128)}', space=vmem, size = 0x1e000, scoped, tag = 'scratch operand']
  #allocation3 [shape = 'f32[120,128]{1,0:T(8,128)}', space=vmem, size = 0xf000, scoped, tag = 'scratch operand']
  %s0 = inlined_call_operand.vmem [shape: bf16[2,80,72], index: 0, kind: input, shape index: {}]
  %s1 = inlined_call_operand.vmem [shape: bf16[72,256], index: 1, kind: input, shape index: {}]
  %s2 = inlined_call_operand.vmem [shape: bf16[9,256,128], index: 2, kind: input, shape index: {}]
  %s3 = inlined_call_operand.vmem [shape: bf16[9,128,64], index: 3, kind: input, shape index: {}]
  %s4 = inlined_call_operand.vmem [shape: bf16[64,128], index: 4, kind: input, shape index: {}]
  %s5 = inlined_call_operand.vmem [shape: f32[2,256], index: 5, kind: input, shape index: {}]
  %s6 = inlined_call_operand.vmem [shape: f32[2,128], index: 6, kind: input, shape index: {}]
  %s7 = inlined_call_operand.vmem [shape: f32[2,64], index: 7, kind: input, shape index: {}]
  %s8 = inlined_call_operand.vmem [shape: f32[2,128], index: 8, kind: input, shape index: {}]
  %s9 = inlined_call_operand.vmem [shape: f32[2,80,128], index: 9, kind: output, shape index: {}]
  %s10 = sld [smem:[#allocation0]]
  $region69: #{maess_decoder_forward.3} parent=0
    _
  %s12 = ssub.s32 1, %s10
  %s13 = scalar_select 0, %s12, %s10
  loop: start=0, step=1, limit=4
  $region2: #{maess_decoder_forward.3} parent=0 // loop_pre_header
    _
  $region3: #{maess_decoder_forward.3} parent=0 // loop_header
    %s15 = sphi 0, %s19
    %p16 = scmp.ge.s32.totalorder %s15, 4
    %s25 = sphi 0, %s27
    %s28 = sphi 0, %s25
    %s29 = sphi 0, %s28
    %s45 = sphi 0, %s29
    %s49 = sphi 0, %s49
    %s51 = sphi 0, %s49
    %s52 = sphi 0, %s51
    %s66 = sphi 0, %s52
    %s70 = sphi 0, %s70
    %s72 = sphi 0, %s70
    %s73 = sphi 0, %s72
    %s87 = sphi 0, %s73
    %s91 = sphi 0, %s91
    %s93 = sphi 0, %s91
    %s94 = sphi 0, %s93
    %s108 = sphi 0, %s94
    %s112 = sphi 0, %s112
    %s114 = sphi 0, %s112
    %s115 = sphi 0, %s114
    %s129 = sphi 0, %s115
    %s133 = sphi 0, %s133
    %s135 = sphi 0, %s133
    %s136 = sphi 0, %s135
    %s150 = sphi 0, %s136
    %s154 = sphi 0, %s154
    %s156 = sphi 0, %s154
    %s157 = sphi 0, %s156
    %s171 = sphi 0, %s157
    %s175 = sphi 0, %s175
    %s177 = sphi 0, %s175
    %s178 = sphi 0, %s177
    %s192 = sphi 0, %s178
    %s196 = sphi 0, %s196
    %s198 = sphi 0, %s196
    %s199 = sphi 0, %s198
    %s213 = sphi 0, %s199
    %s219 = sphi 0, %s221
    %s222 = sphi 0, %s219
    %s223 = sphi 0, %s222
    %s239 = sphi 0, %s223
  $region4: #{maess_decoder_forward.3} parent=0 // loop_header_branch
    %18 = sbr.rel (%p16) target = $region8
  $region5: #{maess_decoder_forward.3} parent=0 // loop_body
    %s20 = ssub.s32 %s15, 1
    %s21 = ssub.s32 %s15, 2
    %s22 = sadd.s32 %s15, 1
    %s23 = ssub.s32 %s15, %s22
    %p24 = scmp.eq.s32.totalorder %s23, 0
    %s26 = sadd.s32 %s25, 1
    %s27 = scalar_select %p24, %s25, %s26
    %p30 = pneg %p24
    %p31 = scmp.eq.s32.totalorder %s15, 1
    %p32 = por %p30, %p31
    %p33 = scmp.ne.s32.totalorder %s25, %s28
    %p34 = scmp.eq.s32.totalorder %s15, 0
    %p35 = por %p33, %p34
    %p36 = scmp.ne.s32.totalorder %s25, %s28
    %p37 = scmp.eq.s32.totalorder %s20, 1
    %p38 = por %p36, %p37
    %p39 = scmp.ne.s32.totalorder %s28, %s29
    %p40 = scmp.eq.s32.totalorder %s20, 0
    %p41 = por %p39, %p40
    %p42 = scmp.ne.s32.totalorder %s28, %s29
    %p43 = scmp.eq.s32.totalorder %s21, 1
    %p44 = por %p42, %p43
    %p46 = scmp.ne.s32.totalorder %s29, %s45
    %p47 = scmp.eq.s32.totalorder %s21, 0
    %p48 = por %p46, %p47
    %s50 = sadd.s32 %s49, 1
    %p53 = scmp.eq.s32.totalorder %s15, 1
    %p54 = scmp.ne.s32.totalorder %s49, %s51
    %p55 = scmp.eq.s32.totalorder %s15, 0
    %p56 = por %p54, %p55
    %p57 = scmp.ne.s32.totalorder %s49, %s51
    %p58 = scmp.eq.s32.totalorder %s20, 1
    %p59 = por %p57, %p58
    %p60 = scmp.ne.s32.totalorder %s51, %s52
    %p61 = scmp.eq.s32.totalorder %s20, 0
    %p62 = por %p60, %p61
    %p63 = scmp.ne.s32.totalorder %s51, %s52
    %p64 = scmp.eq.s32.totalorder %s21, 1
    %p65 = por %p63, %p64
    %p67 = scmp.ne.s32.totalorder %s52, %s66
    %p68 = scmp.eq.s32.totalorder %s21, 0
    %p69 = por %p67, %p68
    %s71 = sadd.s32 %s70, 1
    %p74 = scmp.eq.s32.totalorder %s15, 1
    %p75 = scmp.ne.s32.totalorder %s70, %s72
    %p76 = scmp.eq.s32.totalorder %s15, 0
    %p77 = por %p75, %p76
    %p78 = scmp.ne.s32.totalorder %s70, %s72
    %p79 = scmp.eq.s32.totalorder %s20, 1
    %p80 = por %p78, %p79
    %p81 = scmp.ne.s32.totalorder %s72, %s73
    %p82 = scmp.eq.s32.totalorder %s20, 0
    %p83 = por %p81, %p82
    %p84 = scmp.ne.s32.totalorder %s72, %s73
    %p85 = scmp.eq.s32.totalorder %s21, 1
    %p86 = por %p84, %p85
    %p88 = scmp.ne.s32.totalorder %s73, %s87
    %p89 = scmp.eq.s32.totalorder %s21, 0
    %p90 = por %p88, %p89
    %s92 = sadd.s32 %s91, 1
    %p95 = scmp.eq.s32.totalorder %s15, 1
    %p96 = scmp.ne.s32.totalorder %s91, %s93
    %p97 = scmp.eq.s32.totalorder %s15, 0
    %p98 = por %p96, %p97
    %p99 = scmp.ne.s32.totalorder %s91, %s93
    %p100 = scmp.eq.s32.totalorder %s20, 1
    %p101 = por %p99, %p100
    %p102 = scmp.ne.s32.totalorder %s93, %s94
    %p103 = scmp.eq.s32.totalorder %s20, 0
    %p104 = por %p102, %p103
    %p105 = scmp.ne.s32.totalorder %s93, %s94
    %p106 = scmp.eq.s32.totalorder %s21, 1
    %p107 = por %p105, %p106
    %p109 = scmp.ne.s32.totalorder %s94, %s108
    %p110 = scmp.eq.s32.totalorder %s21, 0
    %p111 = por %p109, %p110
    %s113 = sadd.s32 %s112, 1
    %p116 = scmp.eq.s32.totalorder %s15, 1
    %p117 = scmp.ne.s32.totalorder %s112, %s114
    %p118 = scmp.eq.s32.totalorder %s15, 0
    %p119 = por %p117, %p118
    %p120 = scmp.ne.s32.totalorder %s112, %s114
    %p121 = scmp.eq.s32.totalorder %s20, 1
    %p122 = por %p120, %p121
    %p123 = scmp.ne.s32.totalorder %s114, %s115
    %p124 = scmp.eq.s32.totalorder %s20, 0
    %p125 = por %p123, %p124
    %p126 = scmp.ne.s32.totalorder %s114, %s115
    %p127 = scmp.eq.s32.totalorder %s21, 1
    %p128 = por %p126, %p127
    %p130 = scmp.ne.s32.totalorder %s115, %s129
    %p131 = scmp.eq.s32.totalorder %s21, 0
    %p132 = por %p130, %p131
    %s134 = sadd.s32 %s133, 1
    %p137 = scmp.eq.s32.totalorder %s15, 1
    %p138 = scmp.ne.s32.totalorder %s133, %s135
    %p139 = scmp.eq.s32.totalorder %s15, 0
    %p140 = por %p138, %p139
    %p141 = scmp.ne.s32.totalorder %s133, %s135
    %p142 = scmp.eq.s32.totalorder %s20, 1
    %p143 = por %p141, %p142
    %p144 = scmp.ne.s32.totalorder %s135, %s136
    %p145 = scmp.eq.s32.totalorder %s20, 0
    %p146 = por %p144, %p145
    %p147 = scmp.ne.s32.totalorder %s135, %s136
    %p148 = scmp.eq.s32.totalorder %s21, 1
    %p149 = por %p147, %p148
    %p151 = scmp.ne.s32.totalorder %s136, %s150
    %p152 = scmp.eq.s32.totalorder %s21, 0
    %p153 = por %p151, %p152
    %s155 = sadd.s32 %s154, 1
    %p158 = scmp.eq.s32.totalorder %s15, 1
    %p159 = scmp.ne.s32.totalorder %s154, %s156
    %p160 = scmp.eq.s32.totalorder %s15, 0
    %p161 = por %p159, %p160
    %p162 = scmp.ne.s32.totalorder %s154, %s156
    %p163 = scmp.eq.s32.totalorder %s20, 1
    %p164 = por %p162, %p163
    %p165 = scmp.ne.s32.totalorder %s156, %s157
    %p166 = scmp.eq.s32.totalorder %s20, 0
    %p167 = por %p165, %p166
    %p168 = scmp.ne.s32.totalorder %s156, %s157
    %p169 = scmp.eq.s32.totalorder %s21, 1
    %p170 = por %p168, %p169
    %p172 = scmp.ne.s32.totalorder %s157, %s171
    %p173 = scmp.eq.s32.totalorder %s21, 0
    %p174 = por %p172, %p173
    %s176 = sadd.s32 %s175, 1
    %p179 = scmp.eq.s32.totalorder %s15, 1
    %p180 = scmp.ne.s32.totalorder %s175, %s177
    %p181 = scmp.eq.s32.totalorder %s15, 0
    %p182 = por %p180, %p181
    %p183 = scmp.ne.s32.totalorder %s175, %s177
    %p184 = scmp.eq.s32.totalorder %s20, 1
    %p185 = por %p183, %p184
    %p186 = scmp.ne.s32.totalorder %s177, %s178
    %p187 = scmp.eq.s32.totalorder %s20, 0
    %p188 = por %p186, %p187
    %p189 = scmp.ne.s32.totalorder %s177, %s178
    %p190 = scmp.eq.s32.totalorder %s21, 1
    %p191 = por %p189, %p190
    %p193 = scmp.ne.s32.totalorder %s178, %s192
    %p194 = scmp.eq.s32.totalorder %s21, 0
    %p195 = por %p193, %p194
    %s197 = sadd.s32 %s196, 1
    %p200 = scmp.eq.s32.totalorder %s15, 1
    %p201 = scmp.ne.s32.totalorder %s196, %s198
    %p202 = scmp.eq.s32.totalorder %s15, 0
    %p203 = por %p201, %p202
    %p204 = scmp.ne.s32.totalorder %s196, %s198
    %p205 = scmp.eq.s32.totalorder %s20, 1
    %p206 = por %p204, %p205
    %p207 = scmp.ne.s32.totalorder %s198, %s199
    %p208 = scmp.eq.s32.totalorder %s20, 0
    %p209 = por %p207, %p208
    %p210 = scmp.ne.s32.totalorder %s198, %s199
    %p211 = scmp.eq.s32.totalorder %s21, 1
    %p212 = por %p210, %p211
    %p214 = scmp.ne.s32.totalorder %s199, %s213
    %p215 = scmp.eq.s32.totalorder %s21, 0
    %p216 = por %p214, %p215
    %s217 = ssub.s32 %s15, %s22
    %p218 = scmp.eq.s32.totalorder %s217, 0
    %s220 = sadd.s32 %s219, 1
    %s221 = scalar_select %p218, %s219, %s220
    %p224 = pneg %p218
    %p225 = scmp.eq.s32.totalorder %s15, 1
    %p226 = por %p224, %p225
    %p227 = scmp.ne.s32.totalorder %s219, %s222
    %p228 = scmp.eq.s32.totalorder %s15, 0
    %p229 = por %p227, %p228
    %p230 = scmp.ne.s32.totalorder %s219, %s222
    %p231 = scmp.eq.s32.totalorder %s20, 1
    %p232 = por %p230, %p231
    %p233 = scmp.ne.s32.totalorder %s222, %s223
    %p234 = scmp.eq.s32.totalorder %s20, 0
    %p235 = por %p233, %p234
    %p236 = scmp.ne.s32.totalorder %s222, %s223
    %p237 = scmp.eq.s32.totalorder %s21, 1
    %p238 = por %p236, %p237
    %p240 = scmp.ne.s32.totalorder %s223, %s239
    %p241 = scmp.eq.s32.totalorder %s21, 0
    %p242 = por %p240, %p241
    %p243 = scmp.le.s32.totalorder 1, %s15
    %p244 = scmp.lt.s32.totalorder %s15, 3
    %p245 = pnand %p243, %p244
    %p246 = pneg %p245
    // Predicated region
    $region9: #{maess_decoder_forward.3} parent=5 // pred_check
      _
    $region10: #{maess_decoder_forward.3} parent=5 // pred_check_branch
      %248 = sbr.rel (%p245) target = $region12
    $region11: #{maess_decoder_forward.3} parent=5 // pred_region
      %s249 = ssub.s32 %s15, 1
      // Predicated region
      $region13: #{maess_decoder_forward.3} parent=11 // pred_check
        %p250 = pneg %p62
      $region14: #{maess_decoder_forward.3} parent=11 // pred_check_branch
        %252 = sbr.rel (%p250) target = $region16
      $region15: #{maess_decoder_forward.3} parent=11 // pred_region
        _
      $region16: #{maess_decoder_forward.3} parent=11 // pred_fallthru
        _
      // Predicated region
      $region17: #{maess_decoder_forward.3} parent=11 // pred_check
        %p253 = pneg %p83
      $region18: #{maess_decoder_forward.3} parent=11 // pred_check_branch
        %255 = sbr.rel (%p253) target = $region20
      $region19: #{maess_decoder_forward.3} parent=11 // pred_region
        _
      $region20: #{maess_decoder_forward.3} parent=11 // pred_fallthru
        _
      // Predicated region
      $region21: #{maess_decoder_forward.3} parent=11 // pred_check
        %p256 = pneg %p104
      $region22: #{maess_decoder_forward.3} parent=11 // pred_check_branch
        %258 = sbr.rel (%p256) target = $region24
      $region23: #{maess_decoder_forward.3} parent=11 // pred_region
        _
      $region24: #{maess_decoder_forward.3} parent=11 // pred_fallthru
        _
      // Predicated region
      $region25: #{maess_decoder_forward.3} parent=11 // pred_check
        %p259 = pneg %p125
      $region26: #{maess_decoder_forward.3} parent=11 // pred_check_branch
        %261 = sbr.rel (%p259) target = $region28
      $region27: #{maess_decoder_forward.3} parent=11 // pred_region
        _
      $region28: #{maess_decoder_forward.3} parent=11 // pred_fallthru
        _
      // Predicated region
      $region29: #{maess_decoder_forward.3} parent=11 // pred_check
        %p262 = pneg %p146
      $region30: #{maess_decoder_forward.3} parent=11 // pred_check_branch
        %264 = sbr.rel (%p262) target = $region32
      $region31: #{maess_decoder_forward.3} parent=11 // pred_region
        _
      $region32: #{maess_decoder_forward.3} parent=11 // pred_fallthru
        _
      // Predicated region
      $region33: #{maess_decoder_forward.3} parent=11 // pred_check
        %p265 = pneg %p167
      $region34: #{maess_decoder_forward.3} parent=11 // pred_check_branch
        %267 = sbr.rel (%p265) target = $region36
      $region35: #{maess_decoder_forward.3} parent=11 // pred_region
        _
      $region36: #{maess_decoder_forward.3} parent=11 // pred_fallthru
        _
      // Predicated region
      $region37: #{maess_decoder_forward.3} parent=11 // pred_check
        %p268 = pneg %p188
      $region38: #{maess_decoder_forward.3} parent=11 // pred_check_branch
        %270 = sbr.rel (%p268) target = $region40
      $region39: #{maess_decoder_forward.3} parent=11 // pred_region
        _
      $region40: #{maess_decoder_forward.3} parent=11 // pred_fallthru
        _
      // Predicated region
      $region41: #{maess_decoder_forward.3} parent=11 // pred_check
        %p271 = pneg %p209
      $region42: #{maess_decoder_forward.3} parent=11 // pred_check_branch
        %273 = sbr.rel (%p271) target = $region44
      $region43: #{maess_decoder_forward.3} parent=11 // pred_region
        _
      $region44: #{maess_decoder_forward.3} parent=11 // pred_fallthru
        _
    $region12: #{maess_decoder_forward.3} parent=5 // pred_fallthru
      _
    %p274 = scmp.lt.s32.totalorder %s15, 2
    // Predicated region
    $region45: #{maess_decoder_forward.3} parent=5 // pred_check
      %p275 = pneg %p274
    $region46: #{maess_decoder_forward.3} parent=5 // pred_check_branch
      %277 = sbr.rel (%p275) target = $region48
    $region47: #{maess_decoder_forward.3} parent=5 // pred_region
      // Predicated region
      $region49: #{maess_decoder_forward.3} parent=47 // pred_check
        %p278 = pneg %p35
      $region50: #{maess_decoder_forward.3} parent=47 // pred_check_branch
        %280 = sbr.rel (%p278) target = $region52
      $region51: #{maess_decoder_forward.3} parent=47 // pred_region
        %p281 = scmp.lt.s32.totalorder %s15, 1
        %s282 = scalar_select %p281, %s15, 1
        %s283 = smul.addr %s282, 10
        %s284 = smul.addr %s283, 4
        %s285 = scalar_lea.vmem %s0, %s284
      $region52: #{maess_decoder_forward.3} parent=47 // pred_fallthru
        _
    $region48: #{maess_decoder_forward.3} parent=5 // pred_fallthru
      _
    %p286 = scmp.le.s32.totalorder 1, %s15
    %p287 = scmp.lt.s32.totalorder %s15, 3
    %p288 = pnand %p286, %p287
    %p289 = pneg %p288
    // Predicated region
    $region53: #{maess_decoder_forward.3} parent=5 // pred_check
      _
    $region54: #{maess_decoder_forward.3} parent=5 // pred_check_branch
      %291 = sbr.rel (%p288) target = $region56
    $region55: #{maess_decoder_forward.3} parent=5 // pred_region
      %s292 = ssub.s32 %s15, 1
      %p293 = scmp.lt.s32.totalorder %s20, 1
      %s294 = scalar_select %p293, %s20, 1
      %s295 = smul.addr %s294, 10
      %s296 = smul.addr %s295, 4
      %s297 = scalar_lea.vmem %s0, %s296
      %p298 = pneg %p41
      %p299 = pneg %p38
      %p300 = pneg %p62
      %p301 = pneg %p59
      %p302 = pneg %p83
      %p303 = pneg %p80
      %p304 = pneg %p104
      %p305 = pneg %p101
      %p306 = pneg %p125
      %p307 = pneg %p122
      %p308 = pneg %p146
      %p309 = pneg %p143
      %p310 = pneg %p167
      %p311 = pneg %p164
      %p312 = pneg %p188
      %p313 = pneg %p185
      %p314 = pneg %p209
      %p315 = pneg %p206
      %p316 = pneg %p235
      %p317 = pneg %p232
      %p318 = scmp.lt.s32.totalorder %s20, 1
      %s319 = scalar_select %p318, %s20, 1
      %s320 = smul.addr %s319, 10
      %s321 = smul.addr %s320, 8
      %s322 = scalar_lea.vmem %s9, %s321
      %p323 = scmp.lt.s32.totalorder %s20, 1
      %s324 = scalar_select %p323, %s20, 1
      %s325 = smul.addr %s324, 10
      %s326 = smul.addr %s325, 4
      %s327 = scalar_lea.vmem %s0, %s326
      %p328 = scmp.lt.s32.totalorder %s20, 1
      %s329 = scalar_select %p328, %s20, 1
      %s330 = smul.addr %s329, 10
      %s331 = smul.addr %s330, 8
      %s332 = scalar_lea.vmem %s9, %s331
      %v334 = vlaneseq
      %v335 = vshrl.u32 %v334, 7
      %v336 = vadd.s32 %v335, 8
      %v337 = vadd.s32 %v335, 16
      %v338 = vadd.s32 %v335, 24
      %v339 = vadd.s32 %v335, 32
      %v340 = vadd.s32 %v335, 40
      %v341 = vadd.s32 %v335, 48
      %v342 = vadd.s32 %v335, 56
      %v343 = vadd.s32 %v335, 64
      %v344 = vadd.s32 %v335, 72
      %vm345 = vcmp.lt.s32.totalorder %v335, 0
      %v346 = vsub.s32 0, %v335
      %v347 = vsel %vm345, %v346, %v335
      %v348 = vand.u32 %v347, 65535
      %v349 = vshrl.u32 %v347, 16
      %v351 = vmul.u32 %v348, 52429
      %v352 = vmul.u32 %v348, 52428
      %v353 = vmul.u32 %v349, 52429
      %v354 = vmul.u32 %v349, 52428
      %v355 = vshll.u32 %v352, 16
      %v356 = vshrl.u32 %v352, 16
      %v357 = vshll.u32 %v353, 16
      %v358 = vshrl.u32 %v353, 16
      %vm359 = vc.u32 %v351, %v355
      %v360 = vsel %vm359, 1, 0
      %v361 = vadd.s32 %v351, %v355
      %v362 = vadd.s32 %v354, %v360
      %vm363 = vc.u32 %v361, %v357
      %v364 = vsel %vm363, 1, 0
      %v365 = vadd.s32 %v361, %v357
      %v366 = vadd.s32 %v362, %v364
      %v367 = vadd.s32 %v366, %v356
      %v368 = vadd.s32 %v367, %v358
      %v369 = vshrl.u32 %v368, 3
      %v370 = vmul.u32 %v369, 10
      %v371 = vsub.s32 %v347, %v370
      %v372 = vsub.s32 0, %v371
      %v373 = vsel %vm345, %v372, %v371
      %vm374 = vcmp.lt.s32.totalorder %v336, 0
      %v375 = vsub.s32 0, %v336
      %v376 = vsel %vm374, %v375, %v336
      %v377 = vand.u32 %v376, 65535
      %v378 = vshrl.u32 %v376, 16
      %v380 = vmul.u32 %v377, 52429
      %v381 = vmul.u32 %v377, 52428
      %v382 = vmul.u32 %v378, 52429
      %v383 = vmul.u32 %v378, 52428
      %v384 = vshll.u32 %v381, 16
      %v385 = vshrl.u32 %v381, 16
      %v386 = vshll.u32 %v382, 16
      %v387 = vshrl.u32 %v382, 16
      %vm388 = vc.u32 %v380, %v384
      %v389 = vsel %vm388, 1, 0
      %v390 = vadd.s32 %v380, %v384
      %v391 = vadd.s32 %v383, %v389
      %vm392 = vc.u32 %v390, %v386
      %v393 = vsel %vm392, 1, 0
      %v394 = vadd.s32 %v390, %v386
      %v395 = vadd.s32 %v391, %v393
      %v396 = vadd.s32 %v395, %v385
      %v397 = vadd.s32 %v396, %v387
      %v398 = vshrl.u32 %v397, 3
      %v399 = vmul.u32 %v398, 10
      %v400 = vsub.s32 %v376, %v399
      %v401 = vsub.s32 0, %v400
      %v402 = vsel %vm374, %v401, %v400
      %vm403 = vcmp.lt.s32.totalorder %v337, 0
      %v404 = vsub.s32 0, %v337
      %v405 = vsel %vm403, %v404, %v337
      %v406 = vand.u32 %v405, 65535
      %v407 = vshrl.u32 %v405, 16
      %v409 = vmul.u32 %v406, 52429
      %v410 = vmul.u32 %v406, 52428
      %v411 = vmul.u32 %v407, 52429
      %v412 = vmul.u32 %v407, 52428
      %v413 = vshll.u32 %v410, 16
      %v414 = vshrl.u32 %v410, 16
      %v415 = vshll.u32 %v411, 16
      %v416 = vshrl.u32 %v411, 16
      %vm417 = vc.u32 %v409, %v413
      %v418 = vsel %vm417, 1, 0
      %v419 = vadd.s32 %v409, %v413
      %v420 = vadd.s32 %v412, %v418
      %vm421 = vc.u32 %v419, %v415
      %v422 = vsel %vm421, 1, 0
      %v423 = vadd.s32 %v419, %v415
      %v424 = vadd.s32 %v420, %v422
      %v425 = vadd.s32 %v424, %v414
      %v426 = vadd.s32 %v425, %v416
      %v427 = vshrl.u32 %v426, 3
      %v428 = vmul.u32 %v427, 10
      %v429 = vsub.s32 %v405, %v428
      %v430 = vsub.s32 0, %v429
      %v431 = vsel %vm403, %v430, %v429
      %vm432 = vcmp.lt.s32.totalorder %v338, 0
      %v433 = vsub.s32 0, %v338
      %v434 = vsel %vm432, %v433, %v338
      %v435 = vand.u32 %v434, 65535
      %v436 = vshrl.u32 %v434, 16
      %v438 = vmul.u32 %v435, 52429
      %v439 = vmul.u32 %v435, 52428
      %v440 = vmul.u32 %v436, 52429
      %v441 = vmul.u32 %v436, 52428
      %v442 = vshll.u32 %v439, 16
      %v443 = vshrl.u32 %v439, 16
      %v444 = vshll.u32 %v440, 16
      %v445 = vshrl.u32 %v440, 16
      %vm446 = vc.u32 %v438, %v442
      %v447 = vsel %vm446, 1, 0
      %v448 = vadd.s32 %v438, %v442
      %v449 = vadd.s32 %v441, %v447
      %vm450 = vc.u32 %v448, %v444
      %v451 = vsel %vm450, 1, 0
      %v452 = vadd.s32 %v448, %v444
      %v453 = vadd.s32 %v449, %v451
      %v454 = vadd.s32 %v453, %v443
      %v455 = vadd.s32 %v454, %v445
      %v456 = vshrl.u32 %v455, 3
      %v457 = vmul.u32 %v456, 10
      %v458 = vsub.s32 %v434, %v457
      %v459 = vsub.s32 0, %v458
      %v460 = vsel %vm432, %v459, %v458
      %vm461 = vcmp.lt.s32.totalorder %v339, 0
      %v462 = vsub.s32 0, %v339
      %v463 = vsel %vm461, %v462, %v339
      %v464 = vand.u32 %v463, 65535
      %v465 = vshrl.u32 %v463, 16
      %v467 = vmul.u32 %v464, 52429
      %v468 = vmul.u32 %v464, 52428
      %v469 = vmul.u32 %v465, 52429
      %v470 = vmul.u32 %v465, 52428
      %v471 = vshll.u32 %v468, 16
      %v472 = vshrl.u32 %v468, 16
      %v473 = vshll.u32 %v469, 16
      %v474 = vshrl.u32 %v469, 16
      %vm475 = vc.u32 %v467, %v471
      %v476 = vsel %vm475, 1, 0
      %v477 = vadd.s32 %v467, %v471
      %v478 = vadd.s32 %v470, %v476
      %vm479 = vc.u32 %v477, %v473
      %v480 = vsel %vm479, 1, 0
      %v481 = vadd.s32 %v477, %v473
      %v482 = vadd.s32 %v478, %v480
      %v483 = vadd.s32 %v482, %v472
      %v484 = vadd.s32 %v483, %v474
      %v485 = vshrl.u32 %v484, 3
      %v486 = vmul.u32 %v485, 10
      %v487 = vsub.s32 %v463, %v486
      %v488 = vsub.s32 0, %v487
      %v489 = vsel %vm461, %v488, %v487
      %vm490 = vcmp.lt.s32.totalorder %v340, 0
      %v491 = vsub.s32 0, %v340
      %v492 = vsel %vm490, %v491, %v340
      %v493 = vand.u32 %v492, 65535
      %v494 = vshrl.u32 %v492, 16
      %v496 = vmul.u32 %v493, 52429
      %v497 = vmul.u32 %v493, 52428
      %v498 = vmul.u32 %v494, 52429
      %v499 = vmul.u32 %v494, 52428
      %v500 = vshll.u32 %v497, 16
      %v501 = vshrl.u32 %v497, 16
      %v502 = vshll.u32 %v498, 16
      %v503 = vshrl.u32 %v498, 16
      %vm504 = vc.u32 %v496, %v500
      %v505 = vsel %vm504, 1, 0
      %v506 = vadd.s32 %v496, %v500
      %v507 = vadd.s32 %v499, %v505
      %vm508 = vc.u32 %v506, %v502
      %v509 = vsel %vm508, 1, 0
      %v510 = vadd.s32 %v506, %v502
      %v511 = vadd.s32 %v507, %v509
      %v512 = vadd.s32 %v511, %v501
      %v513 = vadd.s32 %v512, %v503
      %v514 = vshrl.u32 %v513, 3
      %v515 = vmul.u32 %v514, 10
      %v516 = vsub.s32 %v492, %v515
      %v517 = vsub.s32 0, %v516
      %v518 = vsel %vm490, %v517, %v516
      %vm519 = vcmp.lt.s32.totalorder %v341, 0
      %v520 = vsub.s32 0, %v341
      %v521 = vsel %vm519, %v520, %v341
      %v522 = vand.u32 %v521, 65535
      %v523 = vshrl.u32 %v521, 16
      %v525 = vmul.u32 %v522, 52429
      %v526 = vmul.u32 %v522, 52428
      %v527 = vmul.u32 %v523, 52429
      %v528 = vmul.u32 %v523, 52428
      %v529 = vshll.u32 %v526, 16
      %v530 = vshrl.u32 %v526, 16
      %v531 = vshll.u32 %v527, 16
      %v532 = vshrl.u32 %v527, 16
      %vm533 = vc.u32 %v525, %v529
      %v534 = vsel %vm533, 1, 0
      %v535 = vadd.s32 %v525, %v529
      %v536 = vadd.s32 %v528, %v534
      %vm537 = vc.u32 %v535, %v531
      %v538 = vsel %vm537, 1, 0
      %v539 = vadd.s32 %v535, %v531
      %v540 = vadd.s32 %v536, %v538
      %v541 = vadd.s32 %v540, %v530
      %v542 = vadd.s32 %v541, %v532
      %v543 = vshrl.u32 %v542, 3
      %v544 = vmul.u32 %v543, 10
      %v545 = vsub.s32 %v521, %v544
      %v546 = vsub.s32 0, %v545
      %v547 = vsel %vm519, %v546, %v545
      %vm548 = vcmp.lt.s32.totalorder %v342, 0
      %v549 = vsub.s32 0, %v342
      %v550 = vsel %vm548, %v549, %v342
      %v551 = vand.u32 %v550, 65535
      %v552 = vshrl.u32 %v550, 16
      %v554 = vmul.u32 %v551, 52429
      %v555 = vmul.u32 %v551, 52428
      %v556 = vmul.u32 %v552, 52429
      %v557 = vmul.u32 %v552, 52428
      %v558 = vshll.u32 %v555, 16
      %v559 = vshrl.u32 %v555, 16
      %v560 = vshll.u32 %v556, 16
      %v561 = vshrl.u32 %v556, 16
      %vm562 = vc.u32 %v554, %v558
      %v563 = vsel %vm562, 1, 0
      %v564 = vadd.s32 %v554, %v558
      %v565 = vadd.s32 %v557, %v563
      %vm566 = vc.u32 %v564, %v560
      %v567 = vsel %vm566, 1, 0
      %v568 = vadd.s32 %v564, %v560
      %v569 = vadd.s32 %v565, %v567
      %v570 = vadd.s32 %v569, %v559
      %v571 = vadd.s32 %v570, %v561
      %v572 = vshrl.u32 %v571, 3
      %v573 = vmul.u32 %v572, 10
      %v574 = vsub.s32 %v550, %v573
      %v575 = vsub.s32 0, %v574
      %v576 = vsel %vm548, %v575, %v574
      %vm577 = vcmp.lt.s32.totalorder %v343, 0
      %v578 = vsub.s32 0, %v343
      %v579 = vsel %vm577, %v578, %v343
      %v580 = vand.u32 %v579, 65535
      %v581 = vshrl.u32 %v579, 16
      %v583 = vmul.u32 %v580, 52429
      %v584 = vmul.u32 %v580, 52428
      %v585 = vmul.u32 %v581, 52429
      %v586 = vmul.u32 %v581, 52428
      %v587 = vshll.u32 %v584, 16
      %v588 = vshrl.u32 %v584, 16
      %v589 = vshll.u32 %v585, 16
      %v590 = vshrl.u32 %v585, 16
      %vm591 = vc.u32 %v583, %v587
      %v592 = vsel %vm591, 1, 0
      %v593 = vadd.s32 %v583, %v587
      %v594 = vadd.s32 %v586, %v592
      %vm595 = vc.u32 %v593, %v589
      %v596 = vsel %vm595, 1, 0
      %v597 = vadd.s32 %v593, %v589
      %v598 = vadd.s32 %v594, %v596
      %v599 = vadd.s32 %v598, %v588
      %v600 = vadd.s32 %v599, %v590
      %v601 = vshrl.u32 %v600, 3
      %v602 = vmul.u32 %v601, 10
      %v603 = vsub.s32 %v579, %v602
      %v604 = vsub.s32 0, %v603
      %v605 = vsel %vm577, %v604, %v603
      %vm606 = vcmp.lt.s32.totalorder %v344, 0
      %v607 = vsub.s32 0, %v344
      %v608 = vsel %vm606, %v607, %v344
      %v609 = vand.u32 %v608, 65535
      %v610 = vshrl.u32 %v608, 16
      %v612 = vmul.u32 %v609, 52429
      %v613 = vmul.u32 %v609, 52428
      %v614 = vmul.u32 %v610, 52429
      %v615 = vmul.u32 %v610, 52428
      %v616 = vshll.u32 %v613, 16
      %v617 = vshrl.u32 %v613, 16
      %v618 = vshll.u32 %v614, 16
      %v619 = vshrl.u32 %v614, 16
      %vm620 = vc.u32 %v612, %v616
      %v621 = vsel %vm620, 1, 0
      %v622 = vadd.s32 %v612, %v616
      %v623 = vadd.s32 %v615, %v621
      %vm624 = vc.u32 %v622, %v618
      %v625 = vsel %vm624, 1, 0
      %v626 = vadd.s32 %v622, %v618
      %v627 = vadd.s32 %v623, %v625
      %v628 = vadd.s32 %v627, %v617
      %v629 = vadd.s32 %v628, %v619
      %v630 = vshrl.u32 %v629, 3
      %v631 = vmul.u32 %v630, 10
      %v632 = vsub.s32 %v608, %v631
      %v633 = vsub.s32 0, %v632
      %v634 = vsel %vm606, %v633, %v632
      %vm635 = vcmp.ne.s32.totalorder %v373, 0
      %vm636 = vcmp.ne.s32.totalorder %v402, 0
      %vm637 = vcmp.ne.s32.totalorder %v431, 0
      %vm638 = vcmp.ne.s32.totalorder %v460, 0
      %vm639 = vcmp.ne.s32.totalorder %v489, 0
      %vm640 = vcmp.ne.s32.totalorder %v518, 0
      %vm641 = vcmp.ne.s32.totalorder %v547, 0
      %vm642 = vcmp.ne.s32.totalorder %v576, 0
      %vm643 = vcmp.ne.s32.totalorder %v605, 0
      %vm644 = vcmp.ne.s32.totalorder %v634, 0
      %vm645 = vcmp.lt.s32.totalorder %v373, 0
      %vm646 = vcmp.lt.s32.totalorder %v402, 0
      %vm647 = vcmp.lt.s32.totalorder %v431, 0
      %vm648 = vcmp.lt.s32.totalorder %v460, 0
      %vm649 = vcmp.lt.s32.totalorder %v489, 0
      %vm650 = vcmp.lt.s32.totalorder %v518, 0
      %vm651 = vcmp.lt.s32.totalorder %v547, 0
      %vm652 = vcmp.lt.s32.totalorder %v576, 0
      %vm653 = vcmp.lt.s32.totalorder %v605, 0
      %vm654 = vcmp.lt.s32.totalorder %v634, 0
      %vm655 = vmand %vm645, %vm635
      %vm656 = vmand %vm646, %vm636
      %vm657 = vmand %vm647, %vm637
      %vm658 = vmand %vm648, %vm638
      %vm659 = vmand %vm649, %vm639
      %vm660 = vmand %vm650, %vm640
      %vm661 = vmand %vm651, %vm641
      %vm662 = vmand %vm652, %vm642
      %vm663 = vmand %vm653, %vm643
      %vm664 = vmand %vm654, %vm644
      %v665 = vadd.s32 %v373, 10
      %v666 = vadd.s32 %v402, 10
      %v667 = vadd.s32 %v431, 10
      %v668 = vadd.s32 %v460, 10
      %v669 = vadd.s32 %v489, 10
      %v670 = vadd.s32 %v518, 10
      %v671 = vadd.s32 %v547, 10
      %v672 = vadd.s32 %v576, 10
      %v673 = vadd.s32 %v605, 10
      %v674 = vadd.s32 %v634, 10
      %v675 = vsel %vm655, %v665, %v373
      %v676 = vsel %vm656, %v666, %v402
      %v677 = vsel %vm657, %v667, %v431
      %v678 = vsel %vm658, %v668, %v460
      %v679 = vsel %vm659, %v669, %v489
      %v680 = vsel %vm660, %v670, %v518
      %v681 = vsel %vm661, %v671, %v547
      %v682 = vsel %vm662, %v672, %v576
      %v683 = vsel %vm663, %v673, %v605
      %v684 = vsel %vm664, %v674, %v634
      %vm685 = vcmp.lt.s32.totalorder %v675, 8
      %vm686 = vcmp.lt.s32.totalorder %v676, 8
      %vm687 = vcmp.lt.s32.totalorder %v677, 8
      %vm688 = vcmp.lt.s32.totalorder %v678, 8
      %vm689 = vcmp.lt.s32.totalorder %v679, 8
      %vm690 = vcmp.lt.s32.totalorder %v680, 8
      %vm691 = vcmp.lt.s32.totalorder %v681, 8
      %vm692 = vcmp.lt.s32.totalorder %v682, 8
      %vm693 = vcmp.lt.s32.totalorder %v683, 8
      %vm694 = vcmp.lt.s32.totalorder %v684, 8
      %v695 = vld [vmem:[%s327] sm:$0xf]
      %v696 = vld [vmem:[%s327 + $0x4] sm:$0xf]
      %v697 = vld [vmem:[%s327 + $0x8] sm:$0xf]
      %v698 = vld [vmem:[%s327 + $0xc] sm:$0xf]
      %v699 = vld [vmem:[%s327 + $0x10] sm:$0xf]
      %v700 = vld [vmem:[%s327 + $0x14] sm:$0xf]
      %v701 = vld [vmem:[%s327 + $0x18] sm:$0xf]
      %v702 = vld [vmem:[%s327 + $0x1c] sm:$0xf]
      %v703 = vld [vmem:[%s327 + $0x20] sm:$0xf]
      %v704 = vld [vmem:[%s327 + $0x24] sm:$0xf]
      %v705 = vld [vmem:[%s1] sm:$0xff]
      %v706 = vld [vmem:[%s1 + $0x8] sm:$0xff]
      %v707 = vld [vmem:[%s1 + $0x10] sm:$0xff]
      %v708 = vld [vmem:[%s1 + $0x18] sm:$0xff]
      %v709 = vld [vmem:[%s1 + $0x20] sm:$0xff]
      %v710 = vld [vmem:[%s1 + $0x28] sm:$0xff]
      %v711 = vld [vmem:[%s1 + $0x30] sm:$0xff]
      %v712 = vld [vmem:[%s1 + $0x38] sm:$0xff]
      %v713 = vld [vmem:[%s1 + $0x40] sm:$0xff]
      %v724 = vunpack.c.l.b16 %v695
      %v725 = vunpack.c.l.b16 %v696
      %v726 = vunpack.c.l.b16 %v697
      %v727 = vunpack.c.l.b16 %v698
      %v728 = vunpack.c.l.b16 %v699
      %v729 = vunpack.c.l.b16 %v700
      %v730 = vunpack.c.l.b16 %v701
      %v731 = vunpack.c.l.b16 %v702
      %v732 = vunpack.c.l.b16 %v703
      %v733 = vunpack.c.l.b16 %v704
      %v734 = vpack.c.b16 %v725, %v724
      %v735 = vpack.c.b16 %v727, %v726
      %v736 = vpack.c.b16 %v729, %v728
      %v737 = vpack.c.b16 %v731, %v730
      %v738 = vpack.c.b16 %v733, %v732
      %v748 = vunpack.c.l.b16 %v705
      %v749 = vunpack.c.h.b16 %v705
      %v750 = vunpack.c.l.b16 %v706
      %v751 = vunpack.c.h.b16 %v706
      %v752 = vunpack.c.l.b16 %v707
      %v753 = vunpack.c.h.b16 %v707
      %v754 = vunpack.c.l.b16 %v708
      %v755 = vunpack.c.h.b16 %v708
      %v756 = vunpack.c.l.b16 %v709
      %v757 = vunpack.c.h.b16 %v709
      %v758 = vunpack.c.l.b16 %v710
      %v759 = vunpack.c.h.b16 %v710
      %v760 = vunpack.c.l.b16 %v711
      %v761 = vunpack.c.h.b16 %v711
      %v762 = vunpack.c.l.b16 %v712
      %v763 = vunpack.c.h.b16 %v712
      %v764 = vunpack.c.l.b16 %v713
      %v765 = vunpack.c.h.b16 %v713
      %v766 = vpack.c.b16 %v750, %v748
      %v767 = vpack.c.b16 %v751, %v749
      %v768 = vpack.c.b16 %v754, %v752
      %v769 = vpack.c.b16 %v755, %v753
      %v770 = vpack.c.b16 %v758, %v756
      %v771 = vpack.c.b16 %v759, %v757
      %v772 = vpack.c.b16 %v762, %v760
      %v773 = vpack.c.b16 %v763, %v761
      %v774 = vpack.c.b16 %v764, %v764
      %v775 = vpack.c.b16 %v765, %v765
      %vm784 = vcmask 588800
      %v786 = vsel %vm784, %v734, 0
      %v789 = vsel %vm784, %v735, 0
      %v792 = vsel %vm784, %v736, 0
      %v795 = vsel %vm784, %v737, 0
      %v798 = vsel %vm784, %v738, 0
      %vm800 = vcmask 1043456
      %v802 = vsel %vm800, %v774, 0
      %v805 = vsel %vm800, %v775, 0
      %807 = vmatpush.bf16.msra.mxu0 0
      %808 = vmatpush.bf16.msra.mxu0 0
      %809 = vmatpush.bf16.msra.mxu0 0
      %810 = vmatpush.bf16.msra.mxu0 %v802
      %811 = vmatpush.bf16.msra.mxu0 %v772
      %812 = vmatpush.bf16.msra.mxu0 %v770
      %813 = vmatpush.bf16.msra.mxu0 %v768
      %814 = vmatpush.bf16.msra.mxu0 %v766
      %815 = vmatmul.bf16.gmra.mxu0 %v786
      %v816 = vpop.f32.mrf.mxu0
      %v817 = vadd.f32 0.0, %v816
      %v818 = vpop.f32.mrf.mxu0
      %v819 = vadd.f32 0.0, %v818
      %820 = vmatmul.bf16.gmra.mxu0 %v789
      %v821 = vpop.f32.mrf.mxu0
      %v822 = vadd.f32 0.0, %v821
      %v823 = vpop.f32.mrf.mxu0
      %v824 = vadd.f32 0.0, %v823
      %825 = vmatmul.bf16.gmra.mxu0 %v792
      %v826 = vpop.f32.mrf.mxu0
      %v827 = vadd.f32 0.0, %v826
      %v828 = vpop.f32.mrf.mxu0
      %v829 = vadd.f32 0.0, %v828
      %830 = vmatmul.bf16.gmra.mxu0 %v795
      %v831 = vpop.f32.mrf.mxu0
      %v832 = vadd.f32 0.0, %v831
      %v833 = vpop.f32.mrf.mxu0
      %v834 = vadd.f32 0.0, %v833
      %835 = vmatmul.bf16.gmra.mxu0 %v798
      %v836 = vpop.f32.mrf.mxu0
      %v837 = vadd.f32 0.0, %v836
      %v838 = vpop.f32.mrf.mxu0
      %v839 = vadd.f32 0.0, %v838
      %840 = vdwg.mxu0
      %841 = vmatpush.bf16.msra.mxu0 0
      %842 = vmatpush.bf16.msra.mxu0 0
      %843 = vmatpush.bf16.msra.mxu0 0
      %844 = vmatpush.bf16.msra.mxu0 %v805
      %845 = vmatpush.bf16.msra.mxu0 %v773
      %846 = vmatpush.bf16.msra.mxu0 %v771
      %847 = vmatpush.bf16.msra.mxu0 %v769
      %848 = vmatpush.bf16.msra.mxu0 %v767
      %849 = vmatmul.bf16.gmra.mxu0 %v786
      %v850 = vpop.f32.mrf.mxu0
      %v851 = vadd.f32 0.0, %v850
      %v852 = vpop.f32.mrf.mxu0
      %v853 = vadd.f32 0.0, %v852
      %854 = vmatmul.bf16.gmra.mxu0 %v789
      %v855 = vpop.f32.mrf.mxu0
      %v856 = vadd.f32 0.0, %v855
      %v857 = vpop.f32.mrf.mxu0
      %v858 = vadd.f32 0.0, %v857
      %859 = vmatmul.bf16.gmra.mxu0 %v792
      %v860 = vpop.f32.mrf.mxu0
      %v861 = vadd.f32 0.0, %v860
      %v862 = vpop.f32.mrf.mxu0
      %v863 = vadd.f32 0.0, %v862
      %864 = vmatmul.bf16.gmra.mxu0 %v795
      %v865 = vpop.f32.mrf.mxu0
      %v866 = vadd.f32 0.0, %v865
      %v867 = vpop.f32.mrf.mxu0
      %v868 = vadd.f32 0.0, %v867
      %869 = vmatmul.bf16.gmra.mxu0 %v798
      %v870 = vpop.f32.mrf.mxu0
      %v871 = vadd.f32 0.0, %v870
      %v872 = vpop.f32.mrf.mxu0
      %v873 = vadd.f32 0.0, %v872
      %874 = vdwg.mxu0
      %v875 = vld [vmem:[%s5] ss:$2 sm:$0x3]
      %v877 = vperm.slane %v875, 0
      %v878 = vperm.slane %v875, 1
      %v881 = vmul.f32 %v817, %v877
      %v882 = vmul.f32 %v851, %v878
      %v883 = vmul.f32 %v819, %v877
      %v884 = vmul.f32 %v853, %v878
      %v885 = vmul.f32 %v822, %v877
      %v886 = vmul.f32 %v856, %v878
      %v887 = vmul.f32 %v824, %v877
      %v888 = vmul.f32 %v858, %v878
      %v889 = vmul.f32 %v827, %v877
      %v890 = vmul.f32 %v861, %v878
      %v891 = vmul.f32 %v829, %v877
      %v892 = vmul.f32 %v863, %v878
      %v893 = vmul.f32 %v832, %v877
      %v894 = vmul.f32 %v866, %v878
      %v895 = vmul.f32 %v834, %v877
      %v896 = vmul.f32 %v868, %v878
      %v897 = vmul.f32 %v837, %v877
      %v898 = vmul.f32 %v871, %v878
      %v899 = vmul.f32 %v839, %v877
      %v900 = vmul.f32 %v873, %v878
      %s901 = scalar_lea.vmem %s5, 1
      %v902 = vld [vmem:[%s901] ss:$2 sm:$0x3]
      %v904 = vperm.slane %v902, 0
      %v905 = vperm.slane %v902, 1
      %v908 = vadd.f32 %v881, %v904
      %v909 = vadd.f32 %v882, %v905
      %v910 = vadd.f32 %v883, %v904
      %v911 = vadd.f32 %v884, %v905
      %v912 = vadd.f32 %v885, %v904
      %v913 = vadd.f32 %v886, %v905
      %v914 = vadd.f32 %v887, %v904
      %v915 = vadd.f32 %v888, %v905
      %v916 = vadd.f32 %v889, %v904
      %v917 = vadd.f32 %v890, %v905
      %v918 = vadd.f32 %v891, %v904
      %v919 = vadd.f32 %v892, %v905
      %v920 = vadd.f32 %v893, %v904
      %v921 = vadd.f32 %v894, %v905
      %v922 = vadd.f32 %v895, %v904
      %v923 = vadd.f32 %v896, %v905
      %v924 = vadd.f32 %v897, %v904
      %v925 = vadd.f32 %v898, %v905
      %v926 = vadd.f32 %v899, %v904
      %v927 = vadd.f32 %v900, %v905
      %v928 = vmax.f32 %v908, 0.0
      %v929 = vmax.f32 %v909, 0.0
      %v930 = vmax.f32 %v910, 0.0
      %v931 = vmax.f32 %v911, 0.0
      %v932 = vmax.f32 %v912, 0.0
      %v933 = vmax.f32 %v913, 0.0
      %v934 = vmax.f32 %v914, 0.0
      %v935 = vmax.f32 %v915, 0.0
      %v936 = vmax.f32 %v916, 0.0
      %v937 = vmax.f32 %v917, 0.0
      %v938 = vmax.f32 %v918, 0.0
      %v939 = vmax.f32 %v919, 0.0
      %v940 = vmax.f32 %v920, 0.0
      %v941 = vmax.f32 %v921, 0.0
      %v942 = vmax.f32 %v922, 0.0
      %v943 = vmax.f32 %v923, 0.0
      %v944 = vmax.f32 %v924, 0.0
      %v945 = vmax.f32 %v925, 0.0
      %v946 = vmax.f32 %v926, 0.0
      %v947 = vmax.f32 %v927, 0.0
      %v948 = vsel %vm685, 1, 0
      %v949 = vsel %vm686, 1, 0
      %v950 = vsel %vm687, 1, 0
      %v951 = vsel %vm688, 1, 0
      %v952 = vsel %vm689, 1, 0
      %v953 = vsel %vm690, 1, 0
      %v954 = vsel %vm691, 1, 0
      %v955 = vsel %vm692, 1, 0
      %v956 = vsel %vm693, 1, 0
      %v957 = vsel %vm694, 1, 0
      %vm958 = vcmp.eq.s32.totalorder %v948, 1
      %vm959 = vcmp.eq.s32.totalorder %v949, 1
      %vm960 = vcmp.eq.s32.totalorder %v950, 1
      %vm961 = vcmp.eq.s32.totalorder %v951, 1
      %vm962 = vcmp.eq.s32.totalorder %v952, 1
      %vm963 = vcmp.eq.s32.totalorder %v953, 1
      %vm964 = vcmp.eq.s32.totalorder %v954, 1
      %vm965 = vcmp.eq.s32.totalorder %v955, 1
      %vm966 = vcmp.eq.s32.totalorder %v956, 1
      %vm967 = vcmp.eq.s32.totalorder %v957, 1
      %v968 = vsel %vm958, %v928, 0.0
      %v969 = vsel %vm958, %v929, 0.0
      %v970 = vsel %vm959, %v930, 0.0
      %v971 = vsel %vm959, %v931, 0.0
      %v972 = vsel %vm960, %v932, 0.0
      %v973 = vsel %vm960, %v933, 0.0
      %v974 = vsel %vm961, %v934, 0.0
      %v975 = vsel %vm961, %v935, 0.0
      %v976 = vsel %vm962, %v936, 0.0
      %v977 = vsel %vm962, %v937, 0.0
      %v978 = vsel %vm963, %v938, 0.0
      %v979 = vsel %vm963, %v939, 0.0
      %v980 = vsel %vm964, %v940, 0.0
      %v981 = vsel %vm964, %v941, 0.0
      %v982 = vsel %vm965, %v942, 0.0
      %v983 = vsel %vm965, %v943, 0.0
      %v984 = vsel %vm966, %v944, 0.0
      %v985 = vsel %vm966, %v945, 0.0
      %v986 = vsel %vm967, %v946, 0.0
      %v987 = vsel %vm967, %v947, 0.0
      %988 = vst [vmem:[#allocation2] sm:$0xff] 0.0
      %989 = vst [vmem:[#allocation2 + $0x8] sm:$0xff] 0.0
      %990 = vst [vmem:[#allocation2 + $0x10] sm:$0xff] 0.0
      %991 = vst [vmem:[#allocation2 + $0x18] sm:$0xff] 0.0
      %992 = vst [vmem:[#allocation2 + $0x20] sm:$0xff] 0.0
      %993 = vst [vmem:[#allocation2 + $0x28] sm:$0xff] 0.0
      %994 = vst [vmem:[#allocation2 + $0x30] sm:$0xff] 0.0
      %995 = vst [vmem:[#allocation2 + $0x38] sm:$0xff] 0.0
      %996 = vst [vmem:[#allocation2 + $0x40] sm:$0xff] 0.0
      %997 = vst [vmem:[#allocation2 + $0x48] sm:$0xff] 0.0
      %998 = vst [vmem:[#allocation2 + $0x50] sm:$0xff] 0.0
      %999 = vst [vmem:[#allocation2 + $0x58] sm:$0xff] 0.0
      %1000 = vst [vmem:[#allocation2 + $0x60] sm:$0xff] 0.0
      %1001 = vst [vmem:[#allocation2 + $0x68] sm:$0xff] 0.0
      %1002 = vst [vmem:[#allocation2 + $0x70] sm:$0xff] 0.0
      %1003 = vst [vmem:[#allocation2 + $0x78] sm:$0xff] 0.0
      %1004 = vst [vmem:[#allocation2 + $0x80] sm:$0xff] 0.0
      %1005 = vst [vmem:[#allocation2 + $0x88] sm:$0xff] 0.0
      %1006 = vst [vmem:[#allocation2 + $0x90] sm:$0xff] 0.0
      %1007 = vst [vmem:[#allocation2 + $0x98] sm:$0xff] 0.0
      %1008 = vst [vmem:[#allocation2 + $0xa0] sm:$0xff] 0.0
      %1009 = vst [vmem:[#allocation2 + $0xa8] sm:$0xff] 0.0
      %1010 = vst [vmem:[#allocation2 + $0xb0] sm:$0xff] 0.0
      %1011 = vst [vmem:[#allocation2 + $0xb8] sm:$0xff] 0.0
      %1012 = vst [vmem:[#allocation2 + $0xc0] sm:$0xff] 0.0
      %1013 = vst [vmem:[#allocation2 + $0xc8] sm:$0xff] 0.0
      %1014 = vst [vmem:[#allocation2 + $0xd0] sm:$0xff] 0.0
      %1015 = vst [vmem:[#allocation2 + $0xd8] sm:$0xff] 0.0
      %1016 = vst [vmem:[#allocation2 + $0xe0] sm:$0xff] 0.0
      %1017 = vst [vmem:[#allocation2 + $0xe8] sm:$0xff] 0.0
      %1018 = vst [vmem:[#allocation2 + $0x20] sm:$0xff] %v968
      %1019 = vst [vmem:[#allocation2 + $0x28] sm:$0xff] %v969
      %1020 = vst [vmem:[#allocation2 + $0x30] sm:$0xff] %v970
      %1021 = vst [vmem:[#allocation2 + $0x38] sm:$0xff] %v971
      %1022 = vst [vmem:[#allocation2 + $0x40] sm:$0xff] %v972
      %1023 = vst [vmem:[#allocation2 + $0x48] sm:$0xff] %v973
      %1024 = vst [vmem:[#allocation2 + $0x50] sm:$0xff] %v974
      %1025 = vst [vmem:[#allocation2 + $0x58] sm:$0xff] %v975
      %1026 = vst [vmem:[#allocation2 + $0x60] sm:$0xff] %v976
      %1027 = vst [vmem:[#allocation2 + $0x68] sm:$0xff] %v977
      %1028 = vst [vmem:[#allocation2 + $0x70] sm:$0xff] %v978
      %1029 = vst [vmem:[#allocation2 + $0x78] sm:$0xff] %v979
      %1030 = vst [vmem:[#allocation2 + $0x80] sm:$0xff] %v980
      %1031 = vst [vmem:[#allocation2 + $0x88] sm:$0xff] %v981
      %1032 = vst [vmem:[#allocation2 + $0x90] sm:$0xff] %v982
      %1033 = vst [vmem:[#allocation2 + $0x98] sm:$0xff] %v983
      %1034 = vst [vmem:[#allocation2 + $0xa0] sm:$0xff] %v984
      %1035 = vst [vmem:[#allocation2 + $0xa8] sm:$0xff] %v985
      %1036 = vst [vmem:[#allocation2 + $0xb0] sm:$0xff] %v986
      %1037 = vst [vmem:[#allocation2 + $0xb8] sm:$0xff] %v987
      %v1038 = vld [vmem:[#allocation2] sm:$0xe0]
      %v1039 = vld [vmem:[#allocation2 + $0x8] sm:$0xe0]
      %v1040 = vld [vmem:[#allocation2 + $0x10] sm:$0xff]
      %v1041 = vld [vmem:[#allocation2 + $0x18] sm:$0xff]
      %v1042 = vld [vmem:[#allocation2 + $0x20] sm:$0xff]
      %v1043 = vld [vmem:[#allocation2 + $0x28] sm:$0xff]
      %v1044 = vld [vmem:[#allocation2 + $0x30] sm:$0xff]
      %v1045 = vld [vmem:[#allocation2 + $0x38] sm:$0xff]
      %v1046 = vld [vmem:[#allocation2 + $0x40] sm:$0xff]
      %v1047 = vld [vmem:[#allocation2 + $0x48] sm:$0xff]
      %v1048 = vld [vmem:[#allocation2 + $0x50] sm:$0xff]
      %v1049 = vld [vmem:[#allocation2 + $0x58] sm:$0xff]
      %v1050 = vld [vmem:[#allocation2 + $0x60] sm:$0xff]
      %v1051 = vld [vmem:[#allocation2 + $0x68] sm:$0xff]
      %v1052 = vld [vmem:[#allocation2 + $0x70] sm:$0xff]
      %v1053 = vld [vmem:[#allocation2 + $0x78] sm:$0xff]
      %v1054 = vld [vmem:[#allocation2 + $0x80] sm:$0xff]
      %v1055 = vld [vmem:[#allocation2 + $0x88] sm:$0xff]
      %v1056 = vld [vmem:[#allocation2 + $0x90] sm:$0xff]
      %v1057 = vld [vmem:[#allocation2 + $0x98] sm:$0xff]
      %v1058 = vld [vmem:[#allocation2 + $0xa0] sm:$0x1f]
      %v1059 = vld [vmem:[#allocation2 + $0xa8] sm:$0x1f]
      %v1060 = vpack.c.bf16 %v1040, %v1038
      %v1061 = vpack.c.bf16 %v1041, %v1039
      %v1062 = vpack.c.bf16 %v1044, %v1042
      %v1063 = vpack.c.bf16 %v1045, %v1043
      %v1064 = vpack.c.bf16 %v1048, %v1046
      %v1065 = vpack.c.bf16 %v1049, %v1047
      %v1066 = vpack.c.bf16 %v1052, %v1050
      %v1067 = vpack.c.bf16 %v1053, %v1051
      %v1068 = vpack.c.bf16 %v1056, %v1054
      %v1069 = vpack.c.bf16 %v1057, %v1055
      %v1070 = vpack.c.bf16 %v1058, %v1058
      %v1071 = vpack.c.bf16 %v1059, %v1059
      %v1072 = vld [vmem:[%s2] sm:$0xf]
      %v1073 = vld [vmem:[%s2 + $0x4] sm:$0xf]
      %v1074 = vld [vmem:[%s2 + $0x8] sm:$0xf]
      %v1075 = vld [vmem:[%s2 + $0xc] sm:$0xf]
      %v1076 = vld [vmem:[%s2 + $0x10] sm:$0xf]
      %v1077 = vld [vmem:[%s2 + $0x14] sm:$0xf]
      %v1078 = vld [vmem:[%s2 + $0x18] sm:$0xf]
      %v1079 = vld [vmem:[%s2 + $0x1c] sm:$0xf]
      %v1080 = vld [vmem:[%s2 + $0x20] sm:$0xf]
      %v1081 = vld [vmem:[%s2 + $0x24] sm:$0xf]
      %v1082 = vld [vmem:[%s2 + $0x28] sm:$0xf]
      %v1083 = vld [vmem:[%s2 + $0x2c] sm:$0xf]
      %v1084 = vld [vmem:[%s2 + $0x30] sm:$0xf]
      %v1085 = vld [vmem:[%s2 + $0x34] sm:$0xf]
      %v1086 = vld [vmem:[%s2 + $0x38] sm:$0xf]
      %v1087 = vld [vmem:[%s2 + $0x3c] sm:$0xf]
      %v1088 = vld [vmem:[%s2 + $0x40] sm:$0xf]
      %v1089 = vld [vmem:[%s2 + $0x44] sm:$0xf]
      %v1090 = vld [vmem:[%s2 + $0x48] sm:$0xf]
      %v1091 = vld [vmem:[%s2 + $0x4c] sm:$0xf]
      %v1092 = vld [vmem:[%s2 + $0x50] sm:$0xf]
      %v1093 = vld [vmem:[%s2 + $0x54] sm:$0xf]
      %v1094 = vld [vmem:[%s2 + $0x58] sm:$0xf]
      %v1095 = vld [vmem:[%s2 + $0x5c] sm:$0xf]
      %v1096 = vld [vmem:[%s2 + $0x60] sm:$0xf]
      %v1097 = vld [vmem:[%s2 + $0x64] sm:$0xf]
      %v1098 = vld [vmem:[%s2 + $0x68] sm:$0xf]
      %v1099 = vld [vmem:[%s2 + $0x6c] sm:$0xf]
      %v1100 = vld [vmem:[%s2 + $0x70] sm:$0xf]
      %v1101 = vld [vmem:[%s2 + $0x74] sm:$0xf]
      %v1102 = vld [vmem:[%s2 + $0x78] sm:$0xf]
      %v1103 = vld [vmem:[%s2 + $0x7c] sm:$0xf]
      %v1104 = vld [vmem:[#allocation2] sm:$0xc0]
      %v1105 = vld [vmem:[#allocation2 + $0x8] sm:$0xc0]
      %v1106 = vld [vmem:[#allocation2 + $0xa0] sm:$0x3f]
      %v1107 = vld [vmem:[#allocation2 + $0xa8] sm:$0x3f]
      %v1108 = vpack.c.bf16 %v1040, %v1104
      %v1109 = vpack.c.bf16 %v1041, %v1105
      %v1110 = vpack.c.bf16 %v1106, %v1106
      %v1111 = vpack.c.bf16 %v1107, %v1107
      %s1112 = scalar_lea.vmem %s2, 128
      %v1113 = vld [vmem:[%s1112] sm:$0xf]
      %v1114 = vld [vmem:[%s1112 + $0x4] sm:$0xf]
      %v1115 = vld [vmem:[%s1112 + $0x8] sm:$0xf]
      %v1116 = vld [vmem:[%s1112 + $0xc] sm:$0xf]
      %v1117 = vld [vmem:[%s1112 + $0x10] sm:$0xf]
      %v1118 = vld [vmem:[%s1112 + $0x14] sm:$0xf]
      %v1119 = vld [vmem:[%s1112 + $0x18] sm:$0xf]
      %v1120 = vld [vmem:[%s1112 + $0x1c] sm:$0xf]
      %v1121 = vld [vmem:[%s1112 + $0x20] sm:$0xf]
      %v1122 = vld [vmem:[%s1112 + $0x24] sm:$0xf]
      %v1123 = vld [vmem:[%s1112 + $0x28] sm:$0xf]
      %v1124 = vld [vmem:[%s1112 + $0x2c] sm:$0xf]
      %v1125 = vld [vmem:[%s1112 + $0x30] sm:$0xf]
      %v1126 = vld [vmem:[%s1112 + $0x34] sm:$0xf]
      %v1127 = vld [vmem:[%s1112 + $0x38] sm:$0xf]
      %v1128 = vld [vmem:[%s1112 + $0x3c] sm:$0xf]
      %v1129 = vld [vmem:[%s1112 + $0x40] sm:$0xf]
      %v1130 = vld [vmem:[%s1112 + $0x44] sm:$0xf]
      %v1131 = vld [vmem:[%s1112 + $0x48] sm:$0xf]
      %v1132 = vld [vmem:[%s1112 + $0x4c] sm:$0xf]
      %v1133 = vld [vmem:[%s1112 + $0x50] sm:$0xf]
      %v1134 = vld [vmem:[%s1112 + $0x54] sm:$0xf]
      %v1135 = vld [vmem:[%s1112 + $0x58] sm:$0xf]
      %v1136 = vld [vmem:[%s1112 + $0x5c] sm:$0xf]
      %v1137 = vld [vmem:[%s1112 + $0x60] sm:$0xf]
      %v1138 = vld [vmem:[%s1112 + $0x64] sm:$0xf]
      %v1139 = vld [vmem:[%s1112 + $0x68] sm:$0xf]
      %v1140 = vld [vmem:[%s1112 + $0x6c] sm:$0xf]
      %v1141 = vld [vmem:[%s1112 + $0x70] sm:$0xf]
      %v1142 = vld [vmem:[%s1112 + $0x74] sm:$0xf]
      %v1143 = vld [vmem:[%s1112 + $0x78] sm:$0xf]
      %v1144 = vld [vmem:[%s1112 + $0x7c] sm:$0xf]
      %vm1157 = vcmask 1044480
      %v1158 = vrot.slane %v1108, 3
      %v1159 = vrot.slane %v1062, 3
      %v1160 = vsel %vm1157, %v1158, %v1159
      %v1161 = vrot.slane %v1109, 3
      %v1162 = vrot.slane %v1063, 3
      %v1163 = vsel %vm1157, %v1161, %v1162
      %v1164 = vrot.slane %v1064, 3
      %v1165 = vsel %vm1157, %v1159, %v1164
      %v1166 = vrot.slane %v1065, 3
      %v1167 = vsel %vm1157, %v1162, %v1166
      %v1168 = vrot.slane %v1066, 3
      %v1169 = vsel %vm1157, %v1164, %v1168
      %v1170 = vrot.slane %v1067, 3
      %v1171 = vsel %vm1157, %v1166, %v1170
      %v1172 = vrot.slane %v1068, 3
      %v1173 = vsel %vm1157, %v1168, %v1172
      %v1174 = vrot.slane %v1069, 3
      %v1175 = vsel %vm1157, %v1170, %v1174
      %v1176 = vrot.slane %v1110, 3
      %v1177 = vsel %vm1157, %v1172, %v1176
      %v1178 = vrot.slane %v1111, 3
      %v1179 = vsel %vm1157, %v1174, %v1178
      %v1222 = vunpack.c.l.b16 %v1113
      %v1223 = vunpack.c.l.b16 %v1114
      %v1224 = vunpack.c.l.b16 %v1115
      %v1225 = vunpack.c.l.b16 %v1116
      %v1226 = vunpack.c.l.b16 %v1117
      %v1227 = vunpack.c.l.b16 %v1118
      %v1228 = vunpack.c.l.b16 %v1119
      %v1229 = vunpack.c.l.b16 %v1120
      %v1230 = vunpack.c.l.b16 %v1121
      %v1231 = vunpack.c.l.b16 %v1122
      %v1232 = vunpack.c.l.b16 %v1123
      %v1233 = vunpack.c.l.b16 %v1124
      %v1234 = vunpack.c.l.b16 %v1125
      %v1235 = vunpack.c.l.b16 %v1126
      %v1236 = vunpack.c.l.b16 %v1127
      %v1237 = vunpack.c.l.b16 %v1128
      %v1238 = vunpack.c.l.b16 %v1129
      %v1239 = vunpack.c.l.b16 %v1130
      %v1240 = vunpack.c.l.b16 %v1131
      %v1241 = vunpack.c.l.b16 %v1132
      %v1242 = vunpack.c.l.b16 %v1133
      %v1243 = vunpack.c.l.b16 %v1134
      %v1244 = vunpack.c.l.b16 %v1135
      %v1245 = vunpack.c.l.b16 %v1136
      %v1246 = vunpack.c.l.b16 %v1137
      %v1247 = vunpack.c.l.b16 %v1138
      %v1248 = vunpack.c.l.b16 %v1139
      %v1249 = vunpack.c.l.b16 %v1140
      %v1250 = vunpack.c.l.b16 %v1141
      %v1251 = vunpack.c.l.b16 %v1142
      %v1252 = vunpack.c.l.b16 %v1143
      %v1253 = vunpack.c.l.b16 %v1144
      %v1254 = vpack.c.b16 %v1223, %v1222
      %v1255 = vpack.c.b16 %v1225, %v1224
      %v1256 = vpack.c.b16 %v1227, %v1226
      %v1257 = vpack.c.b16 %v1229, %v1228
      %v1258 = vpack.c.b16 %v1231, %v1230
      %v1259 = vpack.c.b16 %v1233, %v1232
      %v1260 = vpack.c.b16 %v1235, %v1234
      %v1261 = vpack.c.b16 %v1237, %v1236
      %v1262 = vpack.c.b16 %v1239, %v1238
      %v1263 = vpack.c.b16 %v1241, %v1240
      %v1264 = vpack.c.b16 %v1243, %v1242
      %v1265 = vpack.c.b16 %v1245, %v1244
      %v1266 = vpack.c.b16 %v1247, %v1246
      %v1267 = vpack.c.b16 %v1249, %v1248
      %v1268 = vpack.c.b16 %v1251, %v1250
      %v1269 = vpack.c.b16 %v1253, %v1252
      %1286 = vmatpush.bf16.msra.mxu0 %v1261
      %1287 = vmatpush.bf16.msra.mxu0 %v1260
      %1288 = vmatpush.bf16.msra.mxu0 %v1259
      %1289 = vmatpush.bf16.msra.mxu0 %v1258
      %1290 = vmatpush.bf16.msra.mxu0 %v1257
      %1291 = vmatpush.bf16.msra.mxu0 %v1256
      %1292 = vmatpush.bf16.msra.mxu0 %v1255
      %1293 = vmatpush.bf16.msra.mxu0 %v1254
      %1294 = vmatmul.bf16.gmra.mxu0 %v1160
      %v1295 = vpop.f32.mrf.mxu0
      %v1296 = vadd.f32 0.0, %v1295
      %v1297 = vpop.f32.mrf.mxu0
      %v1298 = vadd.f32 0.0, %v1297
      %1299 = vmatmul.bf16.gmra.mxu0 %v1165
      %v1300 = vpop.f32.mrf.mxu0
      %v1301 = vadd.f32 0.0, %v1300
      %v1302 = vpop.f32.mrf.mxu0
      %v1303 = vadd.f32 0.0, %v1302
      %1304 = vmatmul.bf16.gmra.mxu0 %v1169
      %v1305 = vpop.f32.mrf.mxu0
      %v1306 = vadd.f32 0.0, %v1305
      %v1307 = vpop.f32.mrf.mxu0
      %v1308 = vadd.f32 0.0, %v1307
      %1309 = vmatmul.bf16.gmra.mxu0 %v1173
      %v1310 = vpop.f32.mrf.mxu0
      %v1311 = vadd.f32 0.0, %v1310
      %v1312 = vpop.f32.mrf.mxu0
      %v1313 = vadd.f32 0.0, %v1312
      %1314 = vmatmul.bf16.gmra.mxu0 %v1177
      %v1315 = vpop.f32.mrf.mxu0
      %v1316 = vadd.f32 0.0, %v1315
      %v1317 = vpop.f32.mrf.mxu0
      %v1318 = vadd.f32 0.0, %v1317
      %1319 = vdwg.mxu0
      %1320 = vmatpush.bf16.msra.mxu0 %v1269
      %1321 = vmatpush.bf16.msra.mxu0 %v1268
      %1322 = vmatpush.bf16.msra.mxu0 %v1267
      %1323 = vmatpush.bf16.msra.mxu0 %v1266
      %1324 = vmatpush.bf16.msra.mxu0 %v1265
      %1325 = vmatpush.bf16.msra.mxu0 %v1264
      %1326 = vmatpush.bf16.msra.mxu0 %v1263
      %1327 = vmatpush.bf16.msra.mxu0 %v1262
      %1328 = vmatmul.bf16.gmra.mxu0 %v1163
      %v1329 = vpop.f32.mrf.mxu0
      %v1330 = vadd.f32 %v1296, %v1329
      %v1331 = vpop.f32.mrf.mxu0
      %v1332 = vadd.f32 %v1298, %v1331
      %1333 = vmatmul.bf16.gmra.mxu0 %v1167
      %v1334 = vpop.f32.mrf.mxu0
      %v1335 = vadd.f32 %v1301, %v1334
      %v1336 = vpop.f32.mrf.mxu0
      %v1337 = vadd.f32 %v1303, %v1336
      %1338 = vmatmul.bf16.gmra.mxu0 %v1171
      %v1339 = vpop.f32.mrf.mxu0
      %v1340 = vadd.f32 %v1306, %v1339
      %v1341 = vpop.f32.mrf.mxu0
      %v1342 = vadd.f32 %v1308, %v1341
      %1343 = vmatmul.bf16.gmra.mxu0 %v1175
      %v1344 = vpop.f32.mrf.mxu0
      %v1345 = vadd.f32 %v1311, %v1344
      %v1346 = vpop.f32.mrf.mxu0
      %v1347 = vadd.f32 %v1313, %v1346
      %1348 = vmatmul.bf16.gmra.mxu0 %v1179
      %v1349 = vpop.f32.mrf.mxu0
      %v1350 = vadd.f32 %v1316, %v1349
      %v1351 = vpop.f32.mrf.mxu0
      %v1352 = vadd.f32 %v1318, %v1351
      %1353 = vdwg.mxu0
      %vm1354 = vsmask.f32 5376
      %v1356 = vshrl.u32 %v1060, 16
      %v1358 = vrot.slane %v1356, 2
      %v1359 = vshll.u32 %v1060, 16
      %v1361 = vrot.slane %v1359, 3
      %v1362 = vor.u32 %v1358, %v1361
      %v1364 = vshrl.u32 %v1062, 16
      %v1366 = vrot.slane %v1364, 2
      %v1367 = vshll.u32 %v1062, 16
      %v1369 = vrot.slane %v1367, 3
      %v1370 = vor.u32 %v1366, %v1369
      %v1371 = vsel %vm1354, %v1362, %v1370
      %v1373 = vshrl.u32 %v1061, 16
      %v1375 = vrot.slane %v1373, 2
      %v1376 = vshll.u32 %v1061, 16
      %v1378 = vrot.slane %v1376, 3
      %v1379 = vor.u32 %v1375, %v1378
      %v1381 = vshrl.u32 %v1063, 16
      %v1383 = vrot.slane %v1381, 2
      %v1384 = vshll.u32 %v1063, 16
      %v1386 = vrot.slane %v1384, 3
      %v1387 = vor.u32 %v1383, %v1386
      %v1388 = vsel %vm1354, %v1379, %v1387
      %v1390 = vshrl.u32 %v1064, 16
      %v1392 = vrot.slane %v1390, 2
      %v1393 = vshll.u32 %v1064, 16
      %v1395 = vrot.slane %v1393, 3
      %v1396 = vor.u32 %v1392, %v1395
      %v1397 = vsel %vm1354, %v1370, %v1396
      %v1399 = vshrl.u32 %v1065, 16
      %v1401 = vrot.slane %v1399, 2
      %v1402 = vshll.u32 %v1065, 16
      %v1404 = vrot.slane %v1402, 3
      %v1405 = vor.u32 %v1401, %v1404
      %v1406 = vsel %vm1354, %v1387, %v1405
      %v1408 = vshrl.u32 %v1066, 16
      %v1410 = vrot.slane %v1408, 2
      %v1411 = vshll.u32 %v1066, 16
      %v1413 = vrot.slane %v1411, 3
      %v1414 = vor.u32 %v1410, %v1413
      %v1415 = vsel %vm1354, %v1396, %v1414
      %v1417 = vshrl.u32 %v1067, 16
      %v1419 = vrot.slane %v1417, 2
      %v1420 = vshll.u32 %v1067, 16
      %v1422 = vrot.slane %v1420, 3
      %v1423 = vor.u32 %v1419, %v1422
      %v1424 = vsel %vm1354, %v1405, %v1423
      %v1426 = vshrl.u32 %v1068, 16
      %v1428 = vrot.slane %v1426, 2
      %v1429 = vshll.u32 %v1068, 16
      %v1431 = vrot.slane %v1429, 3
      %v1432 = vor.u32 %v1428, %v1431
      %v1433 = vsel %vm1354, %v1414, %v1432
      %v1435 = vshrl.u32 %v1069, 16
      %v1437 = vrot.slane %v1435, 2
      %v1438 = vshll.u32 %v1069, 16
      %v1440 = vrot.slane %v1438, 3
      %v1441 = vor.u32 %v1437, %v1440
      %v1442 = vsel %vm1354, %v1423, %v1441
      %v1444 = vshrl.u32 %v1070, 16
      %v1446 = vrot.slane %v1444, 2
      %v1447 = vshll.u32 %v1070, 16
      %v1449 = vrot.slane %v1447, 3
      %v1450 = vor.u32 %v1446, %v1449
      %v1451 = vsel %vm1354, %v1432, %v1450
      %v1453 = vshrl.u32 %v1071, 16
      %v1455 = vrot.slane %v1453, 2
      %v1456 = vshll.u32 %v1071, 16
      %v1458 = vrot.slane %v1456, 3
      %v1459 = vor.u32 %v1455, %v1458
      %v1460 = vsel %vm1354, %v1441, %v1459
      %v1503 = vunpack.c.l.b16 %v1072
      %v1504 = vunpack.c.l.b16 %v1073
      %v1505 = vunpack.c.l.b16 %v1074
      %v1506 = vunpack.c.l.b16 %v1075
      %v1507 = vunpack.c.l.b16 %v1076
      %v1508 = vunpack.c.l.b16 %v1077
      %v1509 = vunpack.c.l.b16 %v1078
      %v1510 = vunpack.c.l.b16 %v1079
      %v1511 = vunpack.c.l.b16 %v1080
      %v1512 = vunpack.c.l.b16 %v1081
      %v1513 = vunpack.c.l.b16 %v1082
      %v1514 = vunpack.c.l.b16 %v1083
      %v1515 = vunpack.c.l.b16 %v1084
      %v1516 = vunpack.c.l.b16 %v1085
      %v1517 = vunpack.c.l.b16 %v1086
      %v1518 = vunpack.c.l.b16 %v1087
      %v1519 = vunpack.c.l.b16 %v1088
      %v1520 = vunpack.c.l.b16 %v1089
      %v1521 = vunpack.c.l.b16 %v1090
      %v1522 = vunpack.c.l.b16 %v1091
      %v1523 = vunpack.c.l.b16 %v1092
      %v1524 = vunpack.c.l.b16 %v1093
      %v1525 = vunpack.c.l.b16 %v1094
      %v1526 = vunpack.c.l.b16 %v1095
      %v1527 = vunpack.c.l.b16 %v1096
      %v1528 = vunpack.c.l.b16 %v1097
      %v1529 = vunpack.c.l.b16 %v1098
      %v1530 = vunpack.c.l.b16 %v1099
      %v1531 = vunpack.c.l.b16 %v1100
      %v1532 = vunpack.c.l.b16 %v1101
      %v1533 = vunpack.c.l.b16 %v1102
      %v1534 = vunpack.c.l.b16 %v1103
      %v1535 = vpack.c.b16 %v1504, %v1503
      %v1536 = vpack.c.b16 %v1506, %v1505
      %v1537 = vpack.c.b16 %v1508, %v1507
      %v1538 = vpack.c.b16 %v1510, %v1509
      %v1539 = vpack.c.b16 %v1512, %v1511
      %v1540 = vpack.c.b16 %v1514, %v1513
      %v1541 = vpack.c.b16 %v1516, %v1515
      %v1542 = vpack.c.b16 %v1518, %v1517
      %v1543 = vpack.c.b16 %v1520, %v1519
      %v1544 = vpack.c.b16 %v1522, %v1521
      %v1545 = vpack.c.b16 %v1524, %v1523
      %v1546 = vpack.c.b16 %v1526, %v1525
      %v1547 = vpack.c.b16 %v1528, %v1527
      %v1548 = vpack.c.b16 %v1530, %v1529
      %v1549 = vpack.c.b16 %v1532, %v1531
      %v1550 = vpack.c.b16 %v1534, %v1533
      %1567 = vmatpush.bf16.msra.mxu0 %v1542
      %1568 = vmatpush.bf16.msra.mxu0 %v1541
      %1569 = vmatpush.bf16.msra.mxu0 %v1540
      %1570 = vmatpush.bf16.msra.mxu0 %v1539
      %1571 = vmatpush.bf16.msra.mxu0 %v1538
      %1572 = vmatpush.bf16.msra.mxu0 %v1537
      %1573 = vmatpush.bf16.msra.mxu0 %v1536
      %1574 = vmatpush.bf16.msra.mxu0 %v1535
      %1575 = vmatmul.bf16.gmra.mxu0 %v1371
      %v1576 = vpop.f32.mrf.mxu0
      %v1577 = vadd.f32 %v1330, %v1576
      %v1578 = vpop.f32.mrf.mxu0
      %v1579 = vadd.f32 %v1332, %v1578
      %1580 = vmatmul.bf16.gmra.mxu0 %v1397
      %v1581 = vpop.f32.mrf.mxu0
      %v1582 = vadd.f32 %v1335, %v1581
      %v1583 = vpop.f32.mrf.mxu0
      %v1584 = vadd.f32 %v1337, %v1583
      %1585 = vmatmul.bf16.gmra.mxu0 %v1415
      %v1586 = vpop.f32.mrf.mxu0
      %v1587 = vadd.f32 %v1340, %v1586
      %v1588 = vpop.f32.mrf.mxu0
      %v1589 = vadd.f32 %v1342, %v1588
      %1590 = vmatmul.bf16.gmra.mxu0 %v1433
      %v1591 = vpop.f32.mrf.mxu0
      %v1592 = vadd.f32 %v1345, %v1591
      %v1593 = vpop.f32.mrf.mxu0
      %v1594 = vadd.f32 %v1347, %v1593
      %1595 = vmatmul.bf16.gmra.mxu0 %v1451
      %v1596 = vpop.f32.mrf.mxu0
      %v1597 = vadd.f32 %v1350, %v1596
      %v1598 = vpop.f32.mrf.mxu0
      %v1599 = vadd.f32 %v1352, %v1598
      %1600 = vdwg.mxu0
      %1601 = vmatpush.bf16.msra.mxu0 %v1550
      %1602 = vmatpush.bf16.msra.mxu0 %v1549
      %1603 = vmatpush.bf16.msra.mxu0 %v1548
      %1604 = vmatpush.bf16.msra.mxu0 %v1547
      %1605 = vmatpush.bf16.msra.mxu0 %v1546
      %1606 = vmatpush.bf16.msra.mxu0 %v1545
      %1607 = vmatpush.bf16.msra.mxu0 %v1544
      %1608 = vmatpush.bf16.msra.mxu0 %v1543
      %1609 = vmatmul.bf16.gmra.mxu0 %v1388
      %v1610 = vpop.f32.mrf.mxu0
      %v1611 = vadd.f32 %v1577, %v1610
      %v1612 = vpop.f32.mrf.mxu0
      %v1613 = vadd.f32 %v1579, %v1612
      %1614 = vmatmul.bf16.gmra.mxu0 %v1406
      %v1615 = vpop.f32.mrf.mxu0
      %v1616 = vadd.f32 %v1582, %v1615
      %v1617 = vpop.f32.mrf.mxu0
      %v1618 = vadd.f32 %v1584, %v1617
      %1619 = vmatmul.bf16.gmra.mxu0 %v1424
      %v1620 = vpop.f32.mrf.mxu0
      %v1621 = vadd.f32 %v1587, %v1620
      %v1622 = vpop.f32.mrf.mxu0
      %v1623 = vadd.f32 %v1589, %v1622
      %1624 = vmatmul.bf16.gmra.mxu0 %v1442
      %v1625 = vpop.f32.mrf.mxu0
      %v1626 = vadd.f32 %v1592, %v1625
      %v1627 = vpop.f32.mrf.mxu0
      %v1628 = vadd.f32 %v1594, %v1627
      %1629 = vmatmul.bf16.gmra.mxu0 %v1460
      %v1630 = vpop.f32.mrf.mxu0
      %v1631 = vadd.f32 %v1597, %v1630
      %v1632 = vpop.f32.mrf.mxu0
      %v1633 = vadd.f32 %v1599, %v1632
      %1634 = vdwg.mxu0
      %v1635 = vld [vmem:[#allocation2] sm:$0x80]
      %v1636 = vld [vmem:[#allocation2 + $0x8] sm:$0x80]
      %v1637 = vld [vmem:[#allocation2 + $0xa0] sm:$0x7f]
      %v1638 = vld [vmem:[#allocation2 + $0xa8] sm:$0x7f]
      %v1639 = vpack.c.bf16 %v1040, %v1635
      %v1640 = vpack.c.bf16 %v1041, %v1636
      %v1641 = vpack.c.bf16 %v1637, %v1637
      %v1642 = vpack.c.bf16 %v1638, %v1638
      %s1643 = scalar_lea.vmem %s2, 256
      %v1644 = vld [vmem:[%s1643] sm:$0xf]
      %v1645 = vld [vmem:[%s1643 + $0x4] sm:$0xf]
      %v1646 = vld [vmem:[%s1643 + $0x8] sm:$0xf]
      %v1647 = vld [vmem:[%s1643 + $0xc] sm:$0xf]
      %v1648 = vld [vmem:[%s1643 + $0x10] sm:$0xf]
      %v1649 = vld [vmem:[%s1643 + $0x14] sm:$0xf]
      %v1650 = vld [vmem:[%s1643 + $0x18] sm:$0xf]
      %v1651 = vld [vmem:[%s1643 + $0x1c] sm:$0xf]
      %v1652 = vld [vmem:[%s1643 + $0x20] sm:$0xf]
      %v1653 = vld [vmem:[%s1643 + $0x24] sm:$0xf]
      %v1654 = vld [vmem:[%s1643 + $0x28] sm:$0xf]
      %v1655 = vld [vmem:[%s1643 + $0x2c] sm:$0xf]
      %v1656 = vld [vmem:[%s1643 + $0x30] sm:$0xf]
      %v1657 = vld [vmem:[%s1643 + $0x34] sm:$0xf]
      %v1658 = vld [vmem:[%s1643 + $0x38] sm:$0xf]
      %v1659 = vld [vmem:[%s1643 + $0x3c] sm:$0xf]
      %v1660 = vld [vmem:[%s1643 + $0x40] sm:$0xf]
      %v1661 = vld [vmem:[%s1643 + $0x44] sm:$0xf]
      %v1662 = vld [vmem:[%s1643 + $0x48] sm:$0xf]
      %v1663 = vld [vmem:[%s1643 + $0x4c] sm:$0xf]
      %v1664 = vld [vmem:[%s1643 + $0x50] sm:$0xf]
      %v1665 = vld [vmem:[%s1643 + $0x54] sm:$0xf]
      %v1666 = vld [vmem:[%s1643 + $0x58] sm:$0xf]
      %v1667 = vld [vmem:[%s1643 + $0x5c] sm:$0xf]
      %v1668 = vld [vmem:[%s1643 + $0x60] sm:$0xf]
      %v1669 = vld [vmem:[%s1643 + $0x64] sm:$0xf]
      %v1670 = vld [vmem:[%s1643 + $0x68] sm:$0xf]
      %v1671 = vld [vmem:[%s1643 + $0x6c] sm:$0xf]
      %v1672 = vld [vmem:[%s1643 + $0x70] sm:$0xf]
      %v1673 = vld [vmem:[%s1643 + $0x74] sm:$0xf]
      %v1674 = vld [vmem:[%s1643 + $0x78] sm:$0xf]
      %v1675 = vld [vmem:[%s1643 + $0x7c] sm:$0xf]
      %vm1676 = vsmask.f32 4352
      %v1678 = vshrl.u32 %v1639, 16
      %v1680 = vrot.slane %v1678, 3
      %v1681 = vshll.u32 %v1639, 16
      %v1683 = vrot.slane %v1681, 4
      %v1684 = vor.u32 %v1680, %v1683
      %v1685 = vrot.slane %v1364, 3
      %v1686 = vrot.slane %v1367, 4
      %v1687 = vor.u32 %v1685, %v1686
      %v1688 = vsel %vm1676, %v1684, %v1687
      %v1690 = vshrl.u32 %v1640, 16
      %v1692 = vrot.slane %v1690, 3
      %v1693 = vshll.u32 %v1640, 16
      %v1695 = vrot.slane %v1693, 4
      %v1696 = vor.u32 %v1692, %v1695
      %v1697 = vrot.slane %v1381, 3
      %v1698 = vrot.slane %v1384, 4
      %v1699 = vor.u32 %v1697, %v1698
      %v1700 = vsel %vm1676, %v1696, %v1699
      %v1701 = vrot.slane %v1390, 3
      %v1702 = vrot.slane %v1393, 4
      %v1703 = vor.u32 %v1701, %v1702
      %v1704 = vsel %vm1676, %v1687, %v1703
      %v1705 = vrot.slane %v1399, 3
      %v1706 = vrot.slane %v1402, 4
      %v1707 = vor.u32 %v1705, %v1706
      %v1708 = vsel %vm1676, %v1699, %v1707
      %v1709 = vrot.slane %v1408, 3
      %v1710 = vrot.slane %v1411, 4
      %v1711 = vor.u32 %v1709, %v1710
      %v1712 = vsel %vm1676, %v1703, %v1711
      %v1713 = vrot.slane %v1417, 3
      %v1714 = vrot.slane %v1420, 4
      %v1715 = vor.u32 %v1713, %v1714
      %v1716 = vsel %vm1676, %v1707, %v1715
      %v1717 = vrot.slane %v1426, 3
      %v1718 = vrot.slane %v1429, 4
      %v1719 = vor.u32 %v1717, %v1718
      %v1720 = vsel %vm1676, %v1711, %v1719
      %v1721 = vrot.slane %v1435, 3
      %v1722 = vrot.slane %v1438, 4
      %v1723 = vor.u32 %v1721, %v1722
      %v1724 = vsel %vm1676, %v1715, %v1723
      %v1726 = vshrl.u32 %v1641, 16
      %v1728 = vrot.slane %v1726, 3
      %v1729 = vshll.u32 %v1641, 16
      %v1731 = vrot.slane %v1729, 4
      %v1732 = vor.u32 %v1728, %v1731
      %v1733 = vsel %vm1676, %v1719, %v1732
      %v1735 = vshrl.u32 %v1642, 16
      %v1737 = vrot.slane %v1735, 3
      %v1738 = vshll.u32 %v1642, 16
      %v1740 = vrot.slane %v1738, 4
      %v1741 = vor.u32 %v1737, %v1740
      %v1742 = vsel %vm1676, %v1723, %v1741
      %v1785 = vunpack.c.l.b16 %v1644
      %v1786 = vunpack.c.l.b16 %v1645
      %v1787 = vunpack.c.l.b16 %v1646
      %v1788 = vunpack.c.l.b16 %v1647
      %v1789 = vunpack.c.l.b16 %v1648
      %v1790 = vunpack.c.l.b16 %v1649
      %v1791 = vunpack.c.l.b16 %v1650
      %v1792 = vunpack.c.l.b16 %v1651
      %v1793 = vunpack.c.l.b16 %v1652
      %v1794 = vunpack.c.l.b16 %v1653
      %v1795 = vunpack.c.l.b16 %v1654
      %v1796 = vunpack.c.l.b16 %v1655
      %v1797 = vunpack.c.l.b16 %v1656
      %v1798 = vunpack.c.l.b16 %v1657
      %v1799 = vunpack.c.l.b16 %v1658
      %v1800 = vunpack.c.l.b16 %v1659
      %v1801 = vunpack.c.l.b16 %v1660
      %v1802 = vunpack.c.l.b16 %v1661
      %v1803 = vunpack.c.l.b16 %v1662
      %v1804 = vunpack.c.l.b16 %v1663
      %v1805 = vunpack.c.l.b16 %v1664
      %v1806 = vunpack.c.l.b16 %v1665
      %v1807 = vunpack.c.l.b16 %v1666
      %v1808 = vunpack.c.l.b16 %v1667
      %v1809 = vunpack.c.l.b16 %v1668
      %v1810 = vunpack.c.l.b16 %v1669
      %v1811 = vunpack.c.l.b16 %v1670
      %v1812 = vunpack.c.l.b16 %v1671
      %v1813 = vunpack.c.l.b16 %v1672
      %v1814 = vunpack.c.l.b16 %v1673
      %v1815 = vunpack.c.l.b16 %v1674
      %v1816 = vunpack.c.l.b16 %v1675
      %v1817 = vpack.c.b16 %v1786, %v1785
      %v1818 = vpack.c.b16 %v1788, %v1787
      %v1819 = vpack.c.b16 %v1790, %v1789
      %v1820 = vpack.c.b16 %v1792, %v1791
      %v1821 = vpack.c.b16 %v1794, %v1793
      %v1822 = vpack.c.b16 %v1796, %v1795
      %v1823 = vpack.c.b16 %v1798, %v1797
      %v1824 = vpack.c.b16 %v1800, %v1799
      %v1825 = vpack.c.b16 %v1802, %v1801
      %v1826 = vpack.c.b16 %v1804, %v1803
      %v1827 = vpack.c.b16 %v1806, %v1805
      %v1828 = vpack.c.b16 %v1808, %v1807
      %v1829 = vpack.c.b16 %v1810, %v1809
      %v1830 = vpack.c.b16 %v1812, %v1811
      %v1831 = vpack.c.b16 %v1814, %v1813
      %v1832 = vpack.c.b16 %v1816, %v1815
      %1849 = vmatpush.bf16.msra.mxu0 %v1824
      %1850 = vmatpush.bf16.msra.mxu0 %v1823
      %1851 = vmatpush.bf16.msra.mxu0 %v1822
      %1852 = vmatpush.bf16.msra.mxu0 %v1821
      %1853 = vmatpush.bf16.msra.mxu0 %v1820
      %1854 = vmatpush.bf16.msra.mxu0 %v1819
      %1855 = vmatpush.bf16.msra.mxu0 %v1818
      %1856 = vmatpush.bf16.msra.mxu0 %v1817
      %1857 = vmatmul.bf16.gmra.mxu0 %v1688
      %v1858 = vpop.f32.mrf.mxu0
      %v1859 = vadd.f32 0.0, %v1858
      %v1860 = vpop.f32.mrf.mxu0
      %v1861 = vadd.f32 0.0, %v1860
      %1862 = vmatmul.bf16.gmra.mxu0 %v1704
      %v1863 = vpop.f32.mrf.mxu0
      %v1864 = vadd.f32 0.0, %v1863
      %v1865 = vpop.f32.mrf.mxu0
      %v1866 = vadd.f32 0.0, %v1865
      %1867 = vmatmul.bf16.gmra.mxu0 %v1712
      %v1868 = vpop.f32.mrf.mxu0
      %v1869 = vadd.f32 0.0, %v1868
      %v1870 = vpop.f32.mrf.mxu0
      %v1871 = vadd.f32 0.0, %v1870
      %1872 = vmatmul.bf16.gmra.mxu0 %v1720
      %v1873 = vpop.f32.mrf.mxu0
      %v1874 = vadd.f32 0.0, %v1873
      %v1875 = vpop.f32.mrf.mxu0
      %v1876 = vadd.f32 0.0, %v1875
      %1877 = vmatmul.bf16.gmra.mxu0 %v1733
      %v1878 = vpop.f32.mrf.mxu0
      %v1879 = vadd.f32 0.0, %v1878
      %v1880 = vpop.f32.mrf.mxu0
      %v1881 = vadd.f32 0.0, %v1880
      %1882 = vdwg.mxu0
      %1883 = vmatpush.bf16.msra.mxu0 %v1832
      %1884 = vmatpush.bf16.msra.mxu0 %v1831
      %1885 = vmatpush.bf16.msra.mxu0 %v1830
      %1886 = vmatpush.bf16.msra.mxu0 %v1829
      %1887 = vmatpush.bf16.msra.mxu0 %v1828
      %1888 = vmatpush.bf16.msra.mxu0 %v1827
      %1889 = vmatpush.bf16.msra.mxu0 %v1826
      %1890 = vmatpush.bf16.msra.mxu0 %v1825
      %1891 = vmatmul.bf16.gmra.mxu0 %v1700
      %v1892 = vpop.f32.mrf.mxu0
      %v1893 = vadd.f32 %v1859, %v1892
      %v1894 = vpop.f32.mrf.mxu0
      %v1895 = vadd.f32 %v1861, %v1894
      %1896 = vmatmul.bf16.gmra.mxu0 %v1708
      %v1897 = vpop.f32.mrf.mxu0
      %v1898 = vadd.f32 %v1864, %v1897
      %v1899 = vpop.f32.mrf.mxu0
      %v1900 = vadd.f32 %v1866, %v1899
      %1901 = vmatmul.bf16.gmra.mxu0 %v1716
      %v1902 = vpop.f32.mrf.mxu0
      %v1903 = vadd.f32 %v1869, %v1902
      %v1904 = vpop.f32.mrf.mxu0
      %v1905 = vadd.f32 %v1871, %v1904
      %1906 = vmatmul.bf16.gmra.mxu0 %v1724
      %v1907 = vpop.f32.mrf.mxu0
      %v1908 = vadd.f32 %v1874, %v1907
      %v1909 = vpop.f32.mrf.mxu0
      %v1910 = vadd.f32 %v1876, %v1909
      %1911 = vmatmul.bf16.gmra.mxu0 %v1742
      %v1912 = vpop.f32.mrf.mxu0
      %v1913 = vadd.f32 %v1879, %v1912
      %v1914 = vpop.f32.mrf.mxu0
      %v1915 = vadd.f32 %v1881, %v1914
      %1916 = vdwg.mxu0
      %v1917 = vadd.f32 %v1611, %v1893
      %v1918 = vadd.f32 %v1613, %v1895
      %v1919 = vadd.f32 %v1616, %v1898
      %v1920 = vadd.f32 %v1618, %v1900
      %v1921 = vadd.f32 %v1621, %v1903
      %v1922 = vadd.f32 %v1623, %v1905
      %v1923 = vadd.f32 %v1626, %v1908
      %v1924 = vadd.f32 %v1628, %v1910
      %v1925 = vadd.f32 %v1631, %v1913
      %v1926 = vadd.f32 %v1633, %v1915
      %v1927 = vld [vmem:[#allocation2 + $0x10] sm:$0x80]
      %v1928 = vld [vmem:[#allocation2 + $0x18] sm:$0x80]
      %v1929 = vld [vmem:[#allocation2 + $0x20] sm:$0xff]
      %v1930 = vld [vmem:[#allocation2 + $0x28] sm:$0xff]
      %v1931 = vld [vmem:[#allocation2 + $0x30] sm:$0xff]
      %v1932 = vld [vmem:[#allocation2 + $0x38] sm:$0xff]
      %v1933 = vld [vmem:[#allocation2 + $0x40] sm:$0xff]
      %v1934 = vld [vmem:[#allocation2 + $0x48] sm:$0xff]
      %v1935 = vld [vmem:[#allocation2 + $0x50] sm:$0xff]
      %v1936 = vld [vmem:[#allocation2 + $0x58] sm:$0xff]
      %v1937 = vld [vmem:[#allocation2 + $0x60] sm:$0xff]
      %v1938 = vld [vmem:[#allocation2 + $0x68] sm:$0xff]
      %v1939 = vld [vmem:[#allocation2 + $0x70] sm:$0xff]
      %v1940 = vld [vmem:[#allocation2 + $0x78] sm:$0xff]
      %v1941 = vld [vmem:[#allocation2 + $0x80] sm:$0xff]
      %v1942 = vld [vmem:[#allocation2 + $0x88] sm:$0xff]
      %v1943 = vld [vmem:[#allocation2 + $0x90] sm:$0xff]
      %v1944 = vld [vmem:[#allocation2 + $0x98] sm:$0xff]
      %v1945 = vld [vmem:[#allocation2 + $0xa0] sm:$0xff]
      %v1946 = vld [vmem:[#allocation2 + $0xa8] sm:$0xff]
      %v1947 = vld [vmem:[#allocation2 + $0xb0] sm:$0x7f]
      %v1948 = vld [vmem:[#allocation2 + $0xb8] sm:$0x7f]
      %v1949 = vpack.c.bf16 %v1929, %v1927
      %v1950 = vpack.c.bf16 %v1930, %v1928
      %v1951 = vpack.c.bf16 %v1933, %v1931
      %v1952 = vpack.c.bf16 %v1934, %v1932
      %v1953 = vpack.c.bf16 %v1937, %v1935
      %v1954 = vpack.c.bf16 %v1938, %v1936
      %v1955 = vpack.c.bf16 %v1941, %v1939
      %v1956 = vpack.c.bf16 %v1942, %v1940
      %v1957 = vpack.c.bf16 %v1945, %v1943
      %v1958 = vpack.c.bf16 %v1946, %v1944
      %v1959 = vpack.c.bf16 %v1947, %v1947
      %v1960 = vpack.c.bf16 %v1948, %v1948
      %s1961 = scalar_lea.vmem %s2, 384
      %v1962 = vld [vmem:[%s1961] sm:$0xf]
      %v1963 = vld [vmem:[%s1961 + $0x4] sm:$0xf]
      %v1964 = vld [vmem:[%s1961 + $0x8] sm:$0xf]
      %v1965 = vld [vmem:[%s1961 + $0xc] sm:$0xf]
      %v1966 = vld [vmem:[%s1961 + $0x10] sm:$0xf]
      %v1967 = vld [vmem:[%s1961 + $0x14] sm:$0xf]
      %v1968 = vld [vmem:[%s1961 + $0x18] sm:$0xf]
      %v1969 = vld [vmem:[%s1961 + $0x1c] sm:$0xf]
      %v1970 = vld [vmem:[%s1961 + $0x20] sm:$0xf]
      %v1971 = vld [vmem:[%s1961 + $0x24] sm:$0xf]
      %v1972 = vld [vmem:[%s1961 + $0x28] sm:$0xf]
      %v1973 = vld [vmem:[%s1961 + $0x2c] sm:$0xf]
      %v1974 = vld [vmem:[%s1961 + $0x30] sm:$0xf]
      %v1975 = vld [vmem:[%s1961 + $0x34] sm:$0xf]
      %v1976 = vld [vmem:[%s1961 + $0x38] sm:$0xf]
      %v1977 = vld [vmem:[%s1961 + $0x3c] sm:$0xf]
      %v1978 = vld [vmem:[%s1961 + $0x40] sm:$0xf]
      %v1979 = vld [vmem:[%s1961 + $0x44] sm:$0xf]
      %v1980 = vld [vmem:[%s1961 + $0x48] sm:$0xf]
      %v1981 = vld [vmem:[%s1961 + $0x4c] sm:$0xf]
      %v1982 = vld [vmem:[%s1961 + $0x50] sm:$0xf]
      %v1983 = vld [vmem:[%s1961 + $0x54] sm:$0xf]
      %v1984 = vld [vmem:[%s1961 + $0x58] sm:$0xf]
      %v1985 = vld [vmem:[%s1961 + $0x5c] sm:$0xf]
      %v1986 = vld [vmem:[%s1961 + $0x60] sm:$0xf]
      %v1987 = vld [vmem:[%s1961 + $0x64] sm:$0xf]
      %v1988 = vld [vmem:[%s1961 + $0x68] sm:$0xf]
      %v1989 = vld [vmem:[%s1961 + $0x6c] sm:$0xf]
      %v1990 = vld [vmem:[%s1961 + $0x70] sm:$0xf]
      %v1991 = vld [vmem:[%s1961 + $0x74] sm:$0xf]
      %v1992 = vld [vmem:[%s1961 + $0x78] sm:$0xf]
      %v1993 = vld [vmem:[%s1961 + $0x7c] sm:$0xf]
      %v1995 = vshrl.u32 %v1949, 16
      %v1997 = vrot.slane %v1995, 3
      %v1998 = vshll.u32 %v1949, 16
      %v2000 = vrot.slane %v1998, 4
      %v2001 = vor.u32 %v1997, %v2000
      %v2003 = vshrl.u32 %v1951, 16
      %v2005 = vrot.slane %v2003, 3
      %v2006 = vshll.u32 %v1951, 16
      %v2008 = vrot.slane %v2006, 4
      %v2009 = vor.u32 %v2005, %v2008
      %v2010 = vsel %vm1676, %v2001, %v2009
      %v2012 = vshrl.u32 %v1950, 16
      %v2014 = vrot.slane %v2012, 3
      %v2015 = vshll.u32 %v1950, 16
      %v2017 = vrot.slane %v2015, 4
      %v2018 = vor.u32 %v2014, %v2017
      %v2020 = vshrl.u32 %v1952, 16
      %v2022 = vrot.slane %v2020, 3
      %v2023 = vshll.u32 %v1952, 16
      %v2025 = vrot.slane %v2023, 4
      %v2026 = vor.u32 %v2022, %v2025
      %v2027 = vsel %vm1676, %v2018, %v2026
      %v2029 = vshrl.u32 %v1953, 16
      %v2031 = vrot.slane %v2029, 3
      %v2032 = vshll.u32 %v1953, 16
      %v2034 = vrot.slane %v2032, 4
      %v2035 = vor.u32 %v2031, %v2034
      %v2036 = vsel %vm1676, %v2009, %v2035
      %v2038 = vshrl.u32 %v1954, 16
      %v2040 = vrot.slane %v2038, 3
      %v2041 = vshll.u32 %v1954, 16
      %v2043 = vrot.slane %v2041, 4
      %v2044 = vor.u32 %v2040, %v2043
      %v2045 = vsel %vm1676, %v2026, %v2044
      %v2047 = vshrl.u32 %v1955, 16
      %v2049 = vrot.slane %v2047, 3
      %v2050 = vshll.u32 %v1955, 16
      %v2052 = vrot.slane %v2050, 4
      %v2053 = vor.u32 %v2049, %v2052
      %v2054 = vsel %vm1676, %v2035, %v2053
      %v2056 = vshrl.u32 %v1956, 16
      %v2058 = vrot.slane %v2056, 3
      %v2059 = vshll.u32 %v1956, 16
      %v2061 = vrot.slane %v2059, 4
      %v2062 = vor.u32 %v2058, %v2061
      %v2063 = vsel %vm1676, %v2044, %v2062
      %v2065 = vshrl.u32 %v1957, 16
      %v2067 = vrot.slane %v2065, 3
      %v2068 = vshll.u32 %v1957, 16
      %v2070 = vrot.slane %v2068, 4
      %v2071 = vor.u32 %v2067, %v2070
      %v2072 = vsel %vm1676, %v2053, %v2071
      %v2074 = vshrl.u32 %v1958, 16
      %v2076 = vrot.slane %v2074, 3
      %v2077 = vshll.u32 %v1958, 16
      %v2079 = vrot.slane %v2077, 4
      %v2080 = vor.u32 %v2076, %v2079
      %v2081 = vsel %vm1676, %v2062, %v2080
      %v2083 = vshrl.u32 %v1959, 16
      %v2085 = vrot.slane %v2083, 3
      %v2086 = vshll.u32 %v1959, 16
      %v2088 = vrot.slane %v2086, 4
      %v2089 = vor.u32 %v2085, %v2088
      %v2090 = vsel %vm1676, %v2071, %v2089
      %v2092 = vshrl.u32 %v1960, 16
      %v2094 = vrot.slane %v2092, 3
      %v2095 = vshll.u32 %v1960, 16
      %v2097 = vrot.slane %v2095, 4
      %v2098 = vor.u32 %v2094, %v2097
      %v2099 = vsel %vm1676, %v2080, %v2098
      %v2142 = vunpack.c.l.b16 %v1962
      %v2143 = vunpack.c.l.b16 %v1963
      %v2144 = vunpack.c.l.b16 %v1964
      %v2145 = vunpack.c.l.b16 %v1965
      %v2146 = vunpack.c.l.b16 %v1966
      %v2147 = vunpack.c.l.b16 %v1967
      %v2148 = vunpack.c.l.b16 %v1968
      %v2149 = vunpack.c.l.b16 %v1969
      %v2150 = vunpack.c.l.b16 %v1970
      %v2151 = vunpack.c.l.b16 %v1971
      %v2152 = vunpack.c.l.b16 %v1972
      %v2153 = vunpack.c.l.b16 %v1973
      %v2154 = vunpack.c.l.b16 %v1974
      %v2155 = vunpack.c.l.b16 %v1975
      %v2156 = vunpack.c.l.b16 %v1976
      %v2157 = vunpack.c.l.b16 %v1977
      %v2158 = vunpack.c.l.b16 %v1978
      %v2159 = vunpack.c.l.b16 %v1979
      %v2160 = vunpack.c.l.b16 %v1980
      %v2161 = vunpack.c.l.b16 %v1981
      %v2162 = vunpack.c.l.b16 %v1982
      %v2163 = vunpack.c.l.b16 %v1983
      %v2164 = vunpack.c.l.b16 %v1984
      %v2165 = vunpack.c.l.b16 %v1985
      %v2166 = vunpack.c.l.b16 %v1986
      %v2167 = vunpack.c.l.b16 %v1987
      %v2168 = vunpack.c.l.b16 %v1988
      %v2169 = vunpack.c.l.b16 %v1989
      %v2170 = vunpack.c.l.b16 %v1990
      %v2171 = vunpack.c.l.b16 %v1991
      %v2172 = vunpack.c.l.b16 %v1992
      %v2173 = vunpack.c.l.b16 %v1993
      %v2174 = vpack.c.b16 %v2143, %v2142
      %v2175 = vpack.c.b16 %v2145, %v2144
      %v2176 = vpack.c.b16 %v2147, %v2146
      %v2177 = vpack.c.b16 %v2149, %v2148
      %v2178 = vpack.c.b16 %v2151, %v2150
      %v2179 = vpack.c.b16 %v2153, %v2152
      %v2180 = vpack.c.b16 %v2155, %v2154
      %v2181 = vpack.c.b16 %v2157, %v2156
      %v2182 = vpack.c.b16 %v2159, %v2158
      %v2183 = vpack.c.b16 %v2161, %v2160
      %v2184 = vpack.c.b16 %v2163, %v2162
      %v2185 = vpack.c.b16 %v2165, %v2164
      %v2186 = vpack.c.b16 %v2167, %v2166
      %v2187 = vpack.c.b16 %v2169, %v2168
      %v2188 = vpack.c.b16 %v2171, %v2170
      %v2189 = vpack.c.b16 %v2173, %v2172
      %2206 = vmatpush.bf16.msra.mxu0 %v2181
      %2207 = vmatpush.bf16.msra.mxu0 %v2180
      %2208 = vmatpush.bf16.msra.mxu0 %v2179
      %2209 = vmatpush.bf16.msra.mxu0 %v2178
      %2210 = vmatpush.bf16.msra.mxu0 %v2177
      %2211 = vmatpush.bf16.msra.mxu0 %v2176
      %2212 = vmatpush.bf16.msra.mxu0 %v2175
      %2213 = vmatpush.bf16.msra.mxu0 %v2174
      %2214 = vmatmul.bf16.gmra.mxu0 %v2010
      %v2215 = vpop.f32.mrf.mxu0
      %v2216 = vadd.f32 0.0, %v2215
      %v2217 = vpop.f32.mrf.mxu0
      %v2218 = vadd.f32 0.0, %v2217
      %2219 = vmatmul.bf16.gmra.mxu0 %v2036
      %v2220 = vpop.f32.mrf.mxu0
      %v2221 = vadd.f32 0.0, %v2220
      %v2222 = vpop.f32.mrf.mxu0
      %v2223 = vadd.f32 0.0, %v2222
      %2224 = vmatmul.bf16.gmra.mxu0 %v2054
      %v2225 = vpop.f32.mrf.mxu0
      %v2226 = vadd.f32 0.0, %v2225
      %v2227 = vpop.f32.mrf.mxu0
      %v2228 = vadd.f32 0.0, %v2227
      %2229 = vmatmul.bf16.gmra.mxu0 %v2072
      %v2230 = vpop.f32.mrf.mxu0
      %v2231 = vadd.f32 0.0, %v2230
      %v2232 = vpop.f32.mrf.mxu0
      %v2233 = vadd.f32 0.0, %v2232
      %2234 = vmatmul.bf16.gmra.mxu0 %v2090
      %v2235 = vpop.f32.mrf.mxu0
      %v2236 = vadd.f32 0.0, %v2235
      %v2237 = vpop.f32.mrf.mxu0
      %v2238 = vadd.f32 0.0, %v2237
      %2239 = vdwg.mxu0
      %2240 = vmatpush.bf16.msra.mxu0 %v2189
      %2241 = vmatpush.bf16.msra.mxu0 %v2188
      %2242 = vmatpush.bf16.msra.mxu0 %v2187
      %2243 = vmatpush.bf16.msra.mxu0 %v2186
      %2244 = vmatpush.bf16.msra.mxu0 %v2185
      %2245 = vmatpush.bf16.msra.mxu0 %v2184
      %2246 = vmatpush.bf16.msra.mxu0 %v2183
      %2247 = vmatpush.bf16.msra.mxu0 %v2182
      %2248 = vmatmul.bf16.gmra.mxu0 %v2027
      %v2249 = vpop.f32.mrf.mxu0
      %v2250 = vadd.f32 %v2216, %v2249
      %v2251 = vpop.f32.mrf.mxu0
      %v2252 = vadd.f32 %v2218, %v2251
      %2253 = vmatmul.bf16.gmra.mxu0 %v2045
      %v2254 = vpop.f32.mrf.mxu0
      %v2255 = vadd.f32 %v2221, %v2254
      %v2256 = vpop.f32.mrf.mxu0
      %v2257 = vadd.f32 %v2223, %v2256
      %2258 = vmatmul.bf16.gmra.mxu0 %v2063
      %v2259 = vpop.f32.mrf.mxu0
      %v2260 = vadd.f32 %v2226, %v2259
      %v2261 = vpop.f32.mrf.mxu0
      %v2262 = vadd.f32 %v2228, %v2261
      %2263 = vmatmul.bf16.gmra.mxu0 %v2081
      %v2264 = vpop.f32.mrf.mxu0
      %v2265 = vadd.f32 %v2231, %v2264
      %v2266 = vpop.f32.mrf.mxu0
      %v2267 = vadd.f32 %v2233, %v2266
      %2268 = vmatmul.bf16.gmra.mxu0 %v2099
      %v2269 = vpop.f32.mrf.mxu0
      %v2270 = vadd.f32 %v2236, %v2269
      %v2271 = vpop.f32.mrf.mxu0
      %v2272 = vadd.f32 %v2238, %v2271
      %2273 = vdwg.mxu0
      %v2274 = vadd.f32 %v1917, %v2250
      %v2275 = vadd.f32 %v1918, %v2252
      %v2276 = vadd.f32 %v1919, %v2255
      %v2277 = vadd.f32 %v1920, %v2257
      %v2278 = vadd.f32 %v1921, %v2260
      %v2279 = vadd.f32 %v1922, %v2262
      %v2280 = vadd.f32 %v1923, %v2265
      %v2281 = vadd.f32 %v1924, %v2267
      %v2282 = vadd.f32 %v1925, %v2270
      %v2283 = vadd.f32 %v1926, %v2272
      %v2284 = vld [vmem:[#allocation2 + $0xb0] sm:$0xff]
      %v2285 = vld [vmem:[#allocation2 + $0xb8] sm:$0xff]
      %v2286 = vpack.c.bf16 %v1931, %v1929
      %v2287 = vpack.c.bf16 %v1932, %v1930
      %v2288 = vpack.c.bf16 %v1935, %v1933
      %v2289 = vpack.c.bf16 %v1936, %v1934
      %v2290 = vpack.c.bf16 %v1939, %v1937
      %v2291 = vpack.c.bf16 %v1940, %v1938
      %v2292 = vpack.c.bf16 %v1943, %v1941
      %v2293 = vpack.c.bf16 %v1944, %v1942
      %v2294 = vpack.c.bf16 %v2284, %v1945
      %v2295 = vpack.c.bf16 %v2285, %v1946
      %s2296 = scalar_lea.vmem %s2, 512
      %v2297 = vld [vmem:[%s2296] sm:$0xf]
      %v2298 = vld [vmem:[%s2296 + $0x4] sm:$0xf]
      %v2299 = vld [vmem:[%s2296 + $0x8] sm:$0xf]
      %v2300 = vld [vmem:[%s2296 + $0xc] sm:$0xf]
      %v2301 = vld [vmem:[%s2296 + $0x10] sm:$0xf]
      %v2302 = vld [vmem:[%s2296 + $0x14] sm:$0xf]
      %v2303 = vld [vmem:[%s2296 + $0x18] sm:$0xf]
      %v2304 = vld [vmem:[%s2296 + $0x1c] sm:$0xf]
      %v2305 = vld [vmem:[%s2296 + $0x20] sm:$0xf]
      %v2306 = vld [vmem:[%s2296 + $0x24] sm:$0xf]
      %v2307 = vld [vmem:[%s2296 + $0x28] sm:$0xf]
      %v2308 = vld [vmem:[%s2296 + $0x2c] sm:$0xf]
      %v2309 = vld [vmem:[%s2296 + $0x30] sm:$0xf]
      %v2310 = vld [vmem:[%s2296 + $0x34] sm:$0xf]
      %v2311 = vld [vmem:[%s2296 + $0x38] sm:$0xf]
      %v2312 = vld [vmem:[%s2296 + $0x3c] sm:$0xf]
      %v2313 = vld [vmem:[%s2296 + $0x40] sm:$0xf]
      %v2314 = vld [vmem:[%s2296 + $0x44] sm:$0xf]
      %v2315 = vld [vmem:[%s2296 + $0x48] sm:$0xf]
      %v2316 = vld [vmem:[%s2296 + $0x4c] sm:$0xf]
      %v2317 = vld [vmem:[%s2296 + $0x50] sm:$0xf]
      %v2318 = vld [vmem:[%s2296 + $0x54] sm:$0xf]
      %v2319 = vld [vmem:[%s2296 + $0x58] sm:$0xf]
      %v2320 = vld [vmem:[%s2296 + $0x5c] sm:$0xf]
      %v2321 = vld [vmem:[%s2296 + $0x60] sm:$0xf]
      %v2322 = vld [vmem:[%s2296 + $0x64] sm:$0xf]
      %v2323 = vld [vmem:[%s2296 + $0x68] sm:$0xf]
      %v2324 = vld [vmem:[%s2296 + $0x6c] sm:$0xf]
      %v2325 = vld [vmem:[%s2296 + $0x70] sm:$0xf]
      %v2326 = vld [vmem:[%s2296 + $0x74] sm:$0xf]
      %v2327 = vld [vmem:[%s2296 + $0x78] sm:$0xf]
      %v2328 = vld [vmem:[%s2296 + $0x7c] sm:$0xf]
      %v2361 = vunpack.c.l.b16 %v2297
      %v2362 = vunpack.c.l.b16 %v2298
      %v2363 = vunpack.c.l.b16 %v2299
      %v2364 = vunpack.c.l.b16 %v2300
      %v2365 = vunpack.c.l.b16 %v2301
      %v2366 = vunpack.c.l.b16 %v2302
      %v2367 = vunpack.c.l.b16 %v2303
      %v2368 = vunpack.c.l.b16 %v2304
      %v2369 = vunpack.c.l.b16 %v2305
      %v2370 = vunpack.c.l.b16 %v2306
      %v2371 = vunpack.c.l.b16 %v2307
      %v2372 = vunpack.c.l.b16 %v2308
      %v2373 = vunpack.c.l.b16 %v2309
      %v2374 = vunpack.c.l.b16 %v2310
      %v2375 = vunpack.c.l.b16 %v2311
      %v2376 = vunpack.c.l.b16 %v2312
      %v2377 = vunpack.c.l.b16 %v2313
      %v2378 = vunpack.c.l.b16 %v2314
      %v2379 = vunpack.c.l.b16 %v2315
      %v2380 = vunpack.c.l.b16 %v2316
      %v2381 = vunpack.c.l.b16 %v2317
      %v2382 = vunpack.c.l.b16 %v2318
      %v2383 = vunpack.c.l.b16 %v2319
      %v2384 = vunpack.c.l.b16 %v2320
      %v2385 = vunpack.c.l.b16 %v2321
      %v2386 = vunpack.c.l.b16 %v2322
      %v2387 = vunpack.c.l.b16 %v2323
      %v2388 = vunpack.c.l.b16 %v2324
      %v2389 = vunpack.c.l.b16 %v2325
      %v2390 = vunpack.c.l.b16 %v2326
      %v2391 = vunpack.c.l.b16 %v2327
      %v2392 = vunpack.c.l.b16 %v2328
      %v2393 = vpack.c.b16 %v2362, %v2361
      %v2394 = vpack.c.b16 %v2364, %v2363
      %v2395 = vpack.c.b16 %v2366, %v2365
      %v2396 = vpack.c.b16 %v2368, %v2367
      %v2397 = vpack.c.b16 %v2370, %v2369
      %v2398 = vpack.c.b16 %v2372, %v2371
      %v2399 = vpack.c.b16 %v2374, %v2373
      %v2400 = vpack.c.b16 %v2376, %v2375
      %v2401 = vpack.c.b16 %v2378, %v2377
      %v2402 = vpack.c.b16 %v2380, %v2379
      %v2403 = vpack.c.b16 %v2382, %v2381
      %v2404 = vpack.c.b16 %v2384, %v2383
      %v2405 = vpack.c.b16 %v2386, %v2385
      %v2406 = vpack.c.b16 %v2388, %v2387
      %v2407 = vpack.c.b16 %v2390, %v2389
      %v2408 = vpack.c.b16 %v2392, %v2391
      %2425 = vmatpush.bf16.msra.mxu0 %v2400
      %2426 = vmatpush.bf16.msra.mxu0 %v2399
      %2427 = vmatpush.bf16.msra.mxu0 %v2398
      %2428 = vmatpush.bf16.msra.mxu0 %v2397
      %2429 = vmatpush.bf16.msra.mxu0 %v2396
      %2430 = vmatpush.bf16.msra.mxu0 %v2395
      %2431 = vmatpush.bf16.msra.mxu0 %v2394
      %2432 = vmatpush.bf16.msra.mxu0 %v2393
      %2433 = vmatmul.bf16.gmra.mxu0 %v2286
      %v2434 = vpop.f32.mrf.mxu0
      %v2435 = vadd.f32 0.0, %v2434
      %v2436 = vpop.f32.mrf.mxu0
      %v2437 = vadd.f32 0.0, %v2436
      %2438 = vmatmul.bf16.gmra.mxu0 %v2288
      %v2439 = vpop.f32.mrf.mxu0
      %v2440 = vadd.f32 0.0, %v2439
      %v2441 = vpop.f32.mrf.mxu0
      %v2442 = vadd.f32 0.0, %v2441
      %2443 = vmatmul.bf16.gmra.mxu0 %v2290
      %v2444 = vpop.f32.mrf.mxu0
      %v2445 = vadd.f32 0.0, %v2444
      %v2446 = vpop.f32.mrf.mxu0
      %v2447 = vadd.f32 0.0, %v2446
      %2448 = vmatmul.bf16.gmra.mxu0 %v2292
      %v2449 = vpop.f32.mrf.mxu0
      %v2450 = vadd.f32 0.0, %v2449
      %v2451 = vpop.f32.mrf.mxu0
      %v2452 = vadd.f32 0.0, %v2451
      %2453 = vmatmul.bf16.gmra.mxu0 %v2294
      %v2454 = vpop.f32.mrf.mxu0
      %v2455 = vadd.f32 0.0, %v2454
      %v2456 = vpop.f32.mrf.mxu0
      %v2457 = vadd.f32 0.0, %v2456
      %2458 = vdwg.mxu0
      %2459 = vmatpush.bf16.msra.mxu0 %v2408
      %2460 = vmatpush.bf16.msra.mxu0 %v2407
      %2461 = vmatpush.bf16.msra.mxu0 %v2406
      %2462 = vmatpush.bf16.msra.mxu0 %v2405
      %2463 = vmatpush.bf16.msra.mxu0 %v2404
      %2464 = vmatpush.bf16.msra.mxu0 %v2403
      %2465 = vmatpush.bf16.msra.mxu0 %v2402
      %2466 = vmatpush.bf16.msra.mxu0 %v2401
      %2467 = vmatmul.bf16.gmra.mxu0 %v2287
      %v2468 = vpop.f32.mrf.mxu0
      %v2469 = vadd.f32 %v2435, %v2468
      %v2470 = vpop.f32.mrf.mxu0
      %v2471 = vadd.f32 %v2437, %v2470
      %2472 = vmatmul.bf16.gmra.mxu0 %v2289
      %v2473 = vpop.f32.mrf.mxu0
      %v2474 = vadd.f32 %v2440, %v2473
      %v2475 = vpop.f32.mrf.mxu0
      %v2476 = vadd.f32 %v2442, %v2475
      %2477 = vmatmul.bf16.gmra.mxu0 %v2291
      %v2478 = vpop.f32.mrf.mxu0
      %v2479 = vadd.f32 %v2445, %v2478
      %v2480 = vpop.f32.mrf.mxu0
      %v2481 = vadd.f32 %v2447, %v2480
      %2482 = vmatmul.bf16.gmra.mxu0 %v2293
      %v2483 = vpop.f32.mrf.mxu0
      %v2484 = vadd.f32 %v2450, %v2483
      %v2485 = vpop.f32.mrf.mxu0
      %v2486 = vadd.f32 %v2452, %v2485
      %2487 = vmatmul.bf16.gmra.mxu0 %v2295
      %v2488 = vpop.f32.mrf.mxu0
      %v2489 = vadd.f32 %v2455, %v2488
      %v2490 = vpop.f32.mrf.mxu0
      %v2491 = vadd.f32 %v2457, %v2490
      %2492 = vdwg.mxu0
      %v2493 = vadd.f32 %v2274, %v2469
      %v2494 = vadd.f32 %v2275, %v2471
      %v2495 = vadd.f32 %v2276, %v2474
      %v2496 = vadd.f32 %v2277, %v2476
      %v2497 = vadd.f32 %v2278, %v2479
      %v2498 = vadd.f32 %v2279, %v2481
      %v2499 = vadd.f32 %v2280, %v2484
      %v2500 = vadd.f32 %v2281, %v2486
      %v2501 = vadd.f32 %v2282, %v2489
      %v2502 = vadd.f32 %v2283, %v2491
      %v2503 = vld [vmem:[#allocation2 + $0x20] sm:$0xfe]
      %v2504 = vld [vmem:[#allocation2 + $0x28] sm:$0xfe]
      %v2505 = vld [vmem:[#allocation2 + $0x30] sm:$0xff]
      %v2506 = vld [vmem:[#allocation2 + $0x38] sm:$0xff]
      %v2507 = vld [vmem:[#allocation2 + $0x40] sm:$0xff]
      %v2508 = vld [vmem:[#allocation2 + $0x48] sm:$0xff]
      %v2509 = vld [vmem:[#allocation2 + $0x50] sm:$0xff]
      %v2510 = vld [vmem:[#allocation2 + $0x58] sm:$0xff]
      %v2511 = vld [vmem:[#allocation2 + $0x60] sm:$0xff]
      %v2512 = vld [vmem:[#allocation2 + $0x68] sm:$0xff]
      %v2513 = vld [vmem:[#allocation2 + $0x70] sm:$0xff]
      %v2514 = vld [vmem:[#allocation2 + $0x78] sm:$0xff]
      %v2515 = vld [vmem:[#allocation2 + $0x80] sm:$0xff]
      %v2516 = vld [vmem:[#allocation2 + $0x88] sm:$0xff]
      %v2517 = vld [vmem:[#allocation2 + $0x90] sm:$0xff]
      %v2518 = vld [vmem:[#allocation2 + $0x98] sm:$0xff]
      %v2519 = vld [vmem:[#allocation2 + $0xa0] sm:$0xff]
      %v2520 = vld [vmem:[#allocation2 + $0xa8] sm:$0xff]
      %v2521 = vld [vmem:[#allocation2 + $0xb0] sm:$0xff]
      %v2522 = vld [vmem:[#allocation2 + $0xb8] sm:$0xff]
      %v2523 = vld [vmem:[#allocation2 + $0xc0] sm:$0x1]
      %v2524 = vld [vmem:[#allocation2 + $0xc8] sm:$0x1]
      %v2525 = vpack.c.bf16 %v2505, %v2503
      %v2526 = vpack.c.bf16 %v2506, %v2504
      %v2527 = vpack.c.bf16 %v2509, %v2507
      %v2528 = vpack.c.bf16 %v2510, %v2508
      %v2529 = vpack.c.bf16 %v2513, %v2511
      %v2530 = vpack.c.bf16 %v2514, %v2512
      %v2531 = vpack.c.bf16 %v2517, %v2515
      %v2532 = vpack.c.bf16 %v2518, %v2516
      %v2533 = vpack.c.bf16 %v2521, %v2519
      %v2534 = vpack.c.bf16 %v2522, %v2520
      %v2535 = vpack.c.bf16 %v2523, %v2523
      %v2536 = vpack.c.bf16 %v2524, %v2524
      %s2537 = scalar_lea.vmem %s2, 640
      %v2538 = vld [vmem:[%s2537] sm:$0xf]
      %v2539 = vld [vmem:[%s2537 + $0x4] sm:$0xf]
      %v2540 = vld [vmem:[%s2537 + $0x8] sm:$0xf]
      %v2541 = vld [vmem:[%s2537 + $0xc] sm:$0xf]
      %v2542 = vld [vmem:[%s2537 + $0x10] sm:$0xf]
      %v2543 = vld [vmem:[%s2537 + $0x14] sm:$0xf]
      %v2544 = vld [vmem:[%s2537 + $0x18] sm:$0xf]
      %v2545 = vld [vmem:[%s2537 + $0x1c] sm:$0xf]
      %v2546 = vld [vmem:[%s2537 + $0x20] sm:$0xf]
      %v2547 = vld [vmem:[%s2537 + $0x24] sm:$0xf]
      %v2548 = vld [vmem:[%s2537 + $0x28] sm:$0xf]
      %v2549 = vld [vmem:[%s2537 + $0x2c] sm:$0xf]
      %v2550 = vld [vmem:[%s2537 + $0x30] sm:$0xf]
      %v2551 = vld [vmem:[%s2537 + $0x34] sm:$0xf]
      %v2552 = vld [vmem:[%s2537 + $0x38] sm:$0xf]
      %v2553 = vld [vmem:[%s2537 + $0x3c] sm:$0xf]
      %v2554 = vld [vmem:[%s2537 + $0x40] sm:$0xf]
      %v2555 = vld [vmem:[%s2537 + $0x44] sm:$0xf]
      %v2556 = vld [vmem:[%s2537 + $0x48] sm:$0xf]
      %v2557 = vld [vmem:[%s2537 + $0x4c] sm:$0xf]
      %v2558 = vld [vmem:[%s2537 + $0x50] sm:$0xf]
      %v2559 = vld [vmem:[%s2537 + $0x54] sm:$0xf]
      %v2560 = vld [vmem:[%s2537 + $0x58] sm:$0xf]
      %v2561 = vld [vmem:[%s2537 + $0x5c] sm:$0xf]
      %v2562 = vld [vmem:[%s2537 + $0x60] sm:$0xf]
      %v2563 = vld [vmem:[%s2537 + $0x64] sm:$0xf]
      %v2564 = vld [vmem:[%s2537 + $0x68] sm:$0xf]
      %v2565 = vld [vmem:[%s2537 + $0x6c] sm:$0xf]
      %v2566 = vld [vmem:[%s2537 + $0x70] sm:$0xf]
      %v2567 = vld [vmem:[%s2537 + $0x74] sm:$0xf]
      %v2568 = vld [vmem:[%s2537 + $0x78] sm:$0xf]
      %v2569 = vld [vmem:[%s2537 + $0x7c] sm:$0xf]
      %vm2570 = vsmask.f32 7424
      %v2572 = vshrl.u32 %v2525, 16
      %v2574 = vshll.u32 %v2525, 16
      %v2576 = vrot.slane %v2574, 1
      %v2577 = vor.u32 %v2572, %v2576
      %v2579 = vshll.u32 %v2527, 16
      %v2581 = vrot.slane %v2579, 1
      %v2582 = vsel %vm2570, %v2577, %v2581
      %v2584 = vshrl.u32 %v2526, 16
      %v2586 = vshll.u32 %v2526, 16
      %v2588 = vrot.slane %v2586, 1
      %v2589 = vor.u32 %v2584, %v2588
      %v2591 = vshll.u32 %v2528, 16
      %v2593 = vrot.slane %v2591, 1
      %v2594 = vsel %vm2570, %v2589, %v2593
      %v2595 = vshrl.u32 %v2527, 16
      %v2597 = vor.u32 %v2595, %v2581
      %v2599 = vshll.u32 %v2529, 16
      %v2601 = vrot.slane %v2599, 1
      %v2602 = vsel %vm2570, %v2597, %v2601
      %v2603 = vshrl.u32 %v2528, 16
      %v2605 = vor.u32 %v2603, %v2593
      %v2607 = vshll.u32 %v2530, 16
      %v2609 = vrot.slane %v2607, 1
      %v2610 = vsel %vm2570, %v2605, %v2609
      %v2611 = vshrl.u32 %v2529, 16
      %v2613 = vor.u32 %v2611, %v2601
      %v2615 = vshll.u32 %v2531, 16
      %v2617 = vrot.slane %v2615, 1
      %v2618 = vsel %vm2570, %v2613, %v2617
      %v2619 = vshrl.u32 %v2530, 16
      %v2621 = vor.u32 %v2619, %v2609
      %v2623 = vshll.u32 %v2532, 16
      %v2625 = vrot.slane %v2623, 1
      %v2626 = vsel %vm2570, %v2621, %v2625
      %v2627 = vshrl.u32 %v2531, 16
      %v2629 = vor.u32 %v2627, %v2617
      %v2631 = vshll.u32 %v2533, 16
      %v2633 = vrot.slane %v2631, 1
      %v2634 = vsel %vm2570, %v2629, %v2633
      %v2635 = vshrl.u32 %v2532, 16
      %v2637 = vor.u32 %v2635, %v2625
      %v2639 = vshll.u32 %v2534, 16
      %v2641 = vrot.slane %v2639, 1
      %v2642 = vsel %vm2570, %v2637, %v2641
      %v2643 = vshrl.u32 %v2533, 16
      %v2645 = vor.u32 %v2643, %v2633
      %v2647 = vshll.u32 %v2535, 16
      %v2649 = vrot.slane %v2647, 1
      %v2650 = vsel %vm2570, %v2645, %v2649
      %v2651 = vshrl.u32 %v2534, 16
      %v2653 = vor.u32 %v2651, %v2641
      %v2655 = vshll.u32 %v2536, 16
      %v2657 = vrot.slane %v2655, 1
      %v2658 = vsel %vm2570, %v2653, %v2657
      %v2701 = vunpack.c.l.b16 %v2538
      %v2702 = vunpack.c.l.b16 %v2539
      %v2703 = vunpack.c.l.b16 %v2540
      %v2704 = vunpack.c.l.b16 %v2541
      %v2705 = vunpack.c.l.b16 %v2542
      %v2706 = vunpack.c.l.b16 %v2543
      %v2707 = vunpack.c.l.b16 %v2544
      %v2708 = vunpack.c.l.b16 %v2545
      %v2709 = vunpack.c.l.b16 %v2546
      %v2710 = vunpack.c.l.b16 %v2547
      %v2711 = vunpack.c.l.b16 %v2548
      %v2712 = vunpack.c.l.b16 %v2549
      %v2713 = vunpack.c.l.b16 %v2550
      %v2714 = vunpack.c.l.b16 %v2551
      %v2715 = vunpack.c.l.b16 %v2552
      %v2716 = vunpack.c.l.b16 %v2553
      %v2717 = vunpack.c.l.b16 %v2554
      %v2718 = vunpack.c.l.b16 %v2555
      %v2719 = vunpack.c.l.b16 %v2556
      %v2720 = vunpack.c.l.b16 %v2557
      %v2721 = vunpack.c.l.b16 %v2558
      %v2722 = vunpack.c.l.b16 %v2559
      %v2723 = vunpack.c.l.b16 %v2560
      %v2724 = vunpack.c.l.b16 %v2561
      %v2725 = vunpack.c.l.b16 %v2562
      %v2726 = vunpack.c.l.b16 %v2563
      %v2727 = vunpack.c.l.b16 %v2564
      %v2728 = vunpack.c.l.b16 %v2565
      %v2729 = vunpack.c.l.b16 %v2566
      %v2730 = vunpack.c.l.b16 %v2567
      %v2731 = vunpack.c.l.b16 %v2568
      %v2732 = vunpack.c.l.b16 %v2569
      %v2733 = vpack.c.b16 %v2702, %v2701
      %v2734 = vpack.c.b16 %v2704, %v2703
      %v2735 = vpack.c.b16 %v2706, %v2705
      %v2736 = vpack.c.b16 %v2708, %v2707
      %v2737 = vpack.c.b16 %v2710, %v2709
      %v2738 = vpack.c.b16 %v2712, %v2711
      %v2739 = vpack.c.b16 %v2714, %v2713
      %v2740 = vpack.c.b16 %v2716, %v2715
      %v2741 = vpack.c.b16 %v2718, %v2717
      %v2742 = vpack.c.b16 %v2720, %v2719
      %v2743 = vpack.c.b16 %v2722, %v2721
      %v2744 = vpack.c.b16 %v2724, %v2723
      %v2745 = vpack.c.b16 %v2726, %v2725
      %v2746 = vpack.c.b16 %v2728, %v2727
      %v2747 = vpack.c.b16 %v2730, %v2729
      %v2748 = vpack.c.b16 %v2732, %v2731
      %2765 = vmatpush.bf16.msra.mxu0 %v2740
      %2766 = vmatpush.bf16.msra.mxu0 %v2739
      %2767 = vmatpush.bf16.msra.mxu0 %v2738
      %2768 = vmatpush.bf16.msra.mxu0 %v2737
      %2769 = vmatpush.bf16.msra.mxu0 %v2736
      %2770 = vmatpush.bf16.msra.mxu0 %v2735
      %2771 = vmatpush.bf16.msra.mxu0 %v2734
      %2772 = vmatpush.bf16.msra.mxu0 %v2733
      %2773 = vmatmul.bf16.gmra.mxu0 %v2582
      %v2774 = vpop.f32.mrf.mxu0
      %v2775 = vadd.f32 0.0, %v2774
      %v2776 = vpop.f32.mrf.mxu0
      %v2777 = vadd.f32 0.0, %v2776
      %2778 = vmatmul.bf16.gmra.mxu0 %v2602
      %v2779 = vpop.f32.mrf.mxu0
      %v2780 = vadd.f32 0.0, %v2779
      %v2781 = vpop.f32.mrf.mxu0
      %v2782 = vadd.f32 0.0, %v2781
      %2783 = vmatmul.bf16.gmra.mxu0 %v2618
      %v2784 = vpop.f32.mrf.mxu0
      %v2785 = vadd.f32 0.0, %v2784
      %v2786 = vpop.f32.mrf.mxu0
      %v2787 = vadd.f32 0.0, %v2786
      %2788 = vmatmul.bf16.gmra.mxu0 %v2634
      %v2789 = vpop.f32.mrf.mxu0
      %v2790 = vadd.f32 0.0, %v2789
      %v2791 = vpop.f32.mrf.mxu0
      %v2792 = vadd.f32 0.0, %v2791
      %2793 = vmatmul.bf16.gmra.mxu0 %v2650
      %v2794 = vpop.f32.mrf.mxu0
      %v2795 = vadd.f32 0.0, %v2794
      %v2796 = vpop.f32.mrf.mxu0
      %v2797 = vadd.f32 0.0, %v2796
      %2798 = vdwg.mxu0
      %2799 = vmatpush.bf16.msra.mxu0 %v2748
      %2800 = vmatpush.bf16.msra.mxu0 %v2747
      %2801 = vmatpush.bf16.msra.mxu0 %v2746
      %2802 = vmatpush.bf16.msra.mxu0 %v2745
      %2803 = vmatpush.bf16.msra.mxu0 %v2744
      %2804 = vmatpush.bf16.msra.mxu0 %v2743
      %2805 = vmatpush.bf16.msra.mxu0 %v2742
      %2806 = vmatpush.bf16.msra.mxu0 %v2741
      %2807 = vmatmul.bf16.gmra.mxu0 %v2594
      %v2808 = vpop.f32.mrf.mxu0
      %v2809 = vadd.f32 %v2775, %v2808
      %v2810 = vpop.f32.mrf.mxu0
      %v2811 = vadd.f32 %v2777, %v2810
      %2812 = vmatmul.bf16.gmra.mxu0 %v2610
      %v2813 = vpop.f32.mrf.mxu0
      %v2814 = vadd.f32 %v2780, %v2813
      %v2815 = vpop.f32.mrf.mxu0
      %v2816 = vadd.f32 %v2782, %v2815
      %2817 = vmatmul.bf16.gmra.mxu0 %v2626
      %v2818 = vpop.f32.mrf.mxu0
      %v2819 = vadd.f32 %v2785, %v2818
      %v2820 = vpop.f32.mrf.mxu0
      %v2821 = vadd.f32 %v2787, %v2820
      %2822 = vmatmul.bf16.gmra.mxu0 %v2642
      %v2823 = vpop.f32.mrf.mxu0
      %v2824 = vadd.f32 %v2790, %v2823
      %v2825 = vpop.f32.mrf.mxu0
      %v2826 = vadd.f32 %v2792, %v2825
      %2827 = vmatmul.bf16.gmra.mxu0 %v2658
      %v2828 = vpop.f32.mrf.mxu0
      %v2829 = vadd.f32 %v2795, %v2828
      %v2830 = vpop.f32.mrf.mxu0
      %v2831 = vadd.f32 %v2797, %v2830
      %2832 = vdwg.mxu0
      %v2833 = vadd.f32 %v2493, %v2809
      %v2834 = vadd.f32 %v2494, %v2811
      %v2835 = vadd.f32 %v2495, %v2814
      %v2836 = vadd.f32 %v2496, %v2816
      %v2837 = vadd.f32 %v2497, %v2819
      %v2838 = vadd.f32 %v2498, %v2821
      %v2839 = vadd.f32 %v2499, %v2824
      %v2840 = vadd.f32 %v2500, %v2826
      %v2841 = vadd.f32 %v2501, %v2829
      %v2842 = vadd.f32 %v2502, %v2831
      %v2843 = vld [vmem:[#allocation2 + $0x30] sm:$0xfe]
      %v2844 = vld [vmem:[#allocation2 + $0x38] sm:$0xfe]
      %v2845 = vld [vmem:[#allocation2 + $0x40] sm:$0xff]
      %v2846 = vld [vmem:[#allocation2 + $0x48] sm:$0xff]
      %v2847 = vld [vmem:[#allocation2 + $0x50] sm:$0xff]
      %v2848 = vld [vmem:[#allocation2 + $0x58] sm:$0xff]
      %v2849 = vld [vmem:[#allocation2 + $0x60] sm:$0xff]
      %v2850 = vld [vmem:[#allocation2 + $0x68] sm:$0xff]
      %v2851 = vld [vmem:[#allocation2 + $0x70] sm:$0xff]
      %v2852 = vld [vmem:[#allocation2 + $0x78] sm:$0xff]
      %v2853 = vld [vmem:[#allocation2 + $0x80] sm:$0xff]
      %v2854 = vld [vmem:[#allocation2 + $0x88] sm:$0xff]
      %v2855 = vld [vmem:[#allocation2 + $0x90] sm:$0xff]
      %v2856 = vld [vmem:[#allocation2 + $0x98] sm:$0xff]
      %v2857 = vld [vmem:[#allocation2 + $0xa0] sm:$0xff]
      %v2858 = vld [vmem:[#allocation2 + $0xa8] sm:$0xff]
      %v2859 = vld [vmem:[#allocation2 + $0xb0] sm:$0xff]
      %v2860 = vld [vmem:[#allocation2 + $0xb8] sm:$0xff]
      %v2861 = vld [vmem:[#allocation2 + $0xc0] sm:$0xff]
      %v2862 = vld [vmem:[#allocation2 + $0xc8] sm:$0xff]
      %v2863 = vld [vmem:[#allocation2 + $0xd0] sm:$0x1]
      %v2864 = vld [vmem:[#allocation2 + $0xd8] sm:$0x1]
      %v2865 = vpack.c.bf16 %v2845, %v2843
      %v2866 = vpack.c.bf16 %v2846, %v2844
      %v2867 = vpack.c.bf16 %v2849, %v2847
      %v2868 = vpack.c.bf16 %v2850, %v2848
      %v2869 = vpack.c.bf16 %v2853, %v2851
      %v2870 = vpack.c.bf16 %v2854, %v2852
      %v2871 = vpack.c.bf16 %v2857, %v2855
      %v2872 = vpack.c.bf16 %v2858, %v2856
      %v2873 = vpack.c.bf16 %v2861, %v2859
      %v2874 = vpack.c.bf16 %v2862, %v2860
      %v2875 = vpack.c.bf16 %v2863, %v2863
      %v2876 = vpack.c.bf16 %v2864, %v2864
      %s2877 = scalar_lea.vmem %s2, 768
      %v2878 = vld [vmem:[%s2877] sm:$0xf]
      %v2879 = vld [vmem:[%s2877 + $0x4] sm:$0xf]
      %v2880 = vld [vmem:[%s2877 + $0x8] sm:$0xf]
      %v2881 = vld [vmem:[%s2877 + $0xc] sm:$0xf]
      %v2882 = vld [vmem:[%s2877 + $0x10] sm:$0xf]
      %v2883 = vld [vmem:[%s2877 + $0x14] sm:$0xf]
      %v2884 = vld [vmem:[%s2877 + $0x18] sm:$0xf]
      %v2885 = vld [vmem:[%s2877 + $0x1c] sm:$0xf]
      %v2886 = vld [vmem:[%s2877 + $0x20] sm:$0xf]
      %v2887 = vld [vmem:[%s2877 + $0x24] sm:$0xf]
      %v2888 = vld [vmem:[%s2877 + $0x28] sm:$0xf]
      %v2889 = vld [vmem:[%s2877 + $0x2c] sm:$0xf]
      %v2890 = vld [vmem:[%s2877 + $0x30] sm:$0xf]
      %v2891 = vld [vmem:[%s2877 + $0x34] sm:$0xf]
      %v2892 = vld [vmem:[%s2877 + $0x38] sm:$0xf]
      %v2893 = vld [vmem:[%s2877 + $0x3c] sm:$0xf]
      %v2894 = vld [vmem:[%s2877 + $0x40] sm:$0xf]
      %v2895 = vld [vmem:[%s2877 + $0x44] sm:$0xf]
      %v2896 = vld [vmem:[%s2877 + $0x48] sm:$0xf]
      %v2897 = vld [vmem:[%s2877 + $0x4c] sm:$0xf]
      %v2898 = vld [vmem:[%s2877 + $0x50] sm:$0xf]
      %v2899 = vld [vmem:[%s2877 + $0x54] sm:$0xf]
      %v2900 = vld [vmem:[%s2877 + $0x58] sm:$0xf]
      %v2901 = vld [vmem:[%s2877 + $0x5c] sm:$0xf]
      %v2902 = vld [vmem:[%s2877 + $0x60] sm:$0xf]
      %v2903 = vld [vmem:[%s2877 + $0x64] sm:$0xf]
      %v2904 = vld [vmem:[%s2877 + $0x68] sm:$0xf]
      %v2905 = vld [vmem:[%s2877 + $0x6c] sm:$0xf]
      %v2906 = vld [vmem:[%s2877 + $0x70] sm:$0xf]
      %v2907 = vld [vmem:[%s2877 + $0x74] sm:$0xf]
      %v2908 = vld [vmem:[%s2877 + $0x78] sm:$0xf]
      %v2909 = vld [vmem:[%s2877 + $0x7c] sm:$0xf]
      %v2911 = vshrl.u32 %v2865, 16
      %v2913 = vshll.u32 %v2865, 16
      %v2915 = vrot.slane %v2913, 1
      %v2916 = vor.u32 %v2911, %v2915
      %v2918 = vshll.u32 %v2867, 16
      %v2920 = vrot.slane %v2918, 1
      %v2921 = vsel %vm2570, %v2916, %v2920
      %v2923 = vshrl.u32 %v2866, 16
      %v2925 = vshll.u32 %v2866, 16
      %v2927 = vrot.slane %v2925, 1
      %v2928 = vor.u32 %v2923, %v2927
      %v2930 = vshll.u32 %v2868, 16
      %v2932 = vrot.slane %v2930, 1
      %v2933 = vsel %vm2570, %v2928, %v2932
      %v2934 = vshrl.u32 %v2867, 16
      %v2936 = vor.u32 %v2934, %v2920
      %v2938 = vshll.u32 %v2869, 16
      %v2940 = vrot.slane %v2938, 1
      %v2941 = vsel %vm2570, %v2936, %v2940
      %v2942 = vshrl.u32 %v2868, 16
      %v2944 = vor.u32 %v2942, %v2932
      %v2946 = vshll.u32 %v2870, 16
      %v2948 = vrot.slane %v2946, 1
      %v2949 = vsel %vm2570, %v2944, %v2948
      %v2950 = vshrl.u32 %v2869, 16
      %v2952 = vor.u32 %v2950, %v2940
      %v2954 = vshll.u32 %v2871, 16
      %v2956 = vrot.slane %v2954, 1
      %v2957 = vsel %vm2570, %v2952, %v2956
      %v2958 = vshrl.u32 %v2870, 16
      %v2960 = vor.u32 %v2958, %v2948
      %v2962 = vshll.u32 %v2872, 16
      %v2964 = vrot.slane %v2962, 1
      %v2965 = vsel %vm2570, %v2960, %v2964
      %v2966 = vshrl.u32 %v2871, 16
      %v2968 = vor.u32 %v2966, %v2956
      %v2970 = vshll.u32 %v2873, 16
      %v2972 = vrot.slane %v2970, 1
      %v2973 = vsel %vm2570, %v2968, %v2972
      %v2974 = vshrl.u32 %v2872, 16
      %v2976 = vor.u32 %v2974, %v2964
      %v2978 = vshll.u32 %v2874, 16
      %v2980 = vrot.slane %v2978, 1
      %v2981 = vsel %vm2570, %v2976, %v2980
      %v2982 = vshrl.u32 %v2873, 16
      %v2984 = vor.u32 %v2982, %v2972
      %v2986 = vshll.u32 %v2875, 16
      %v2988 = vrot.slane %v2986, 1
      %v2989 = vsel %vm2570, %v2984, %v2988
      %v2990 = vshrl.u32 %v2874, 16
      %v2992 = vor.u32 %v2990, %v2980
      %v2994 = vshll.u32 %v2876, 16
      %v2996 = vrot.slane %v2994, 1
      %v2997 = vsel %vm2570, %v2992, %v2996
      %v3040 = vunpack.c.l.b16 %v2878
      %v3041 = vunpack.c.l.b16 %v2879
      %v3042 = vunpack.c.l.b16 %v2880
      %v3043 = vunpack.c.l.b16 %v2881
      %v3044 = vunpack.c.l.b16 %v2882
      %v3045 = vunpack.c.l.b16 %v2883
      %v3046 = vunpack.c.l.b16 %v2884
      %v3047 = vunpack.c.l.b16 %v2885
      %v3048 = vunpack.c.l.b16 %v2886
      %v3049 = vunpack.c.l.b16 %v2887
      %v3050 = vunpack.c.l.b16 %v2888
      %v3051 = vunpack.c.l.b16 %v2889
      %v3052 = vunpack.c.l.b16 %v2890
      %v3053 = vunpack.c.l.b16 %v2891
      %v3054 = vunpack.c.l.b16 %v2892
      %v3055 = vunpack.c.l.b16 %v2893
      %v3056 = vunpack.c.l.b16 %v2894
      %v3057 = vunpack.c.l.b16 %v2895
      %v3058 = vunpack.c.l.b16 %v2896
      %v3059 = vunpack.c.l.b16 %v2897
      %v3060 = vunpack.c.l.b16 %v2898
      %v3061 = vunpack.c.l.b16 %v2899
      %v3062 = vunpack.c.l.b16 %v2900
      %v3063 = vunpack.c.l.b16 %v2901
      %v3064 = vunpack.c.l.b16 %v2902
      %v3065 = vunpack.c.l.b16 %v2903
      %v3066 = vunpack.c.l.b16 %v2904
      %v3067 = vunpack.c.l.b16 %v2905
      %v3068 = vunpack.c.l.b16 %v2906
      %v3069 = vunpack.c.l.b16 %v2907
      %v3070 = vunpack.c.l.b16 %v2908
      %v3071 = vunpack.c.l.b16 %v2909
      %v3072 = vpack.c.b16 %v3041, %v3040
      %v3073 = vpack.c.b16 %v3043, %v3042
      %v3074 = vpack.c.b16 %v3045, %v3044
      %v3075 = vpack.c.b16 %v3047, %v3046
      %v3076 = vpack.c.b16 %v3049, %v3048
      %v3077 = vpack.c.b16 %v3051, %v3050
      %v3078 = vpack.c.b16 %v3053, %v3052
      %v3079 = vpack.c.b16 %v3055, %v3054
      %v3080 = vpack.c.b16 %v3057, %v3056
      %v3081 = vpack.c.b16 %v3059, %v3058
      %v3082 = vpack.c.b16 %v3061, %v3060
      %v3083 = vpack.c.b16 %v3063, %v3062
      %v3084 = vpack.c.b16 %v3065, %v3064
      %v3085 = vpack.c.b16 %v3067, %v3066
      %v3086 = vpack.c.b16 %v3069, %v3068
      %v3087 = vpack.c.b16 %v3071, %v3070
      %3104 = vmatpush.bf16.msra.mxu0 %v3079
      %3105 = vmatpush.bf16.msra.mxu0 %v3078
      %3106 = vmatpush.bf16.msra.mxu0 %v3077
      %3107 = vmatpush.bf16.msra.mxu0 %v3076
      %3108 = vmatpush.bf16.msra.mxu0 %v3075
      %3109 = vmatpush.bf16.msra.mxu0 %v3074
      %3110 = vmatpush.bf16.msra.mxu0 %v3073
      %3111 = vmatpush.bf16.msra.mxu0 %v3072
      %3112 = vmatmul.bf16.gmra.mxu0 %v2921
      %v3113 = vpop.f32.mrf.mxu0
      %v3114 = vadd.f32 0.0, %v3113
      %v3115 = vpop.f32.mrf.mxu0
      %v3116 = vadd.f32 0.0, %v3115
      %3117 = vmatmul.bf16.gmra.mxu0 %v2941
      %v3118 = vpop.f32.mrf.mxu0
      %v3119 = vadd.f32 0.0, %v3118
      %v3120 = vpop.f32.mrf.mxu0
      %v3121 = vadd.f32 0.0, %v3120
      %3122 = vmatmul.bf16.gmra.mxu0 %v2957
      %v3123 = vpop.f32.mrf.mxu0
      %v3124 = vadd.f32 0.0, %v3123
      %v3125 = vpop.f32.mrf.mxu0
      %v3126 = vadd.f32 0.0, %v3125
      %3127 = vmatmul.bf16.gmra.mxu0 %v2973
      %v3128 = vpop.f32.mrf.mxu0
      %v3129 = vadd.f32 0.0, %v3128
      %v3130 = vpop.f32.mrf.mxu0
      %v3131 = vadd.f32 0.0, %v3130
      %3132 = vmatmul.bf16.gmra.mxu0 %v2989
      %v3133 = vpop.f32.mrf.mxu0
      %v3134 = vadd.f32 0.0, %v3133
      %v3135 = vpop.f32.mrf.mxu0
      %v3136 = vadd.f32 0.0, %v3135
      %3137 = vdwg.mxu0
      %3138 = vmatpush.bf16.msra.mxu0 %v3087
      %3139 = vmatpush.bf16.msra.mxu0 %v3086
      %3140 = vmatpush.bf16.msra.mxu0 %v3085
      %3141 = vmatpush.bf16.msra.mxu0 %v3084
      %3142 = vmatpush.bf16.msra.mxu0 %v3083
      %3143 = vmatpush.bf16.msra.mxu0 %v3082
      %3144 = vmatpush.bf16.msra.mxu0 %v3081
      %3145 = vmatpush.bf16.msra.mxu0 %v3080
      %3146 = vmatmul.bf16.gmra.mxu0 %v2933
      %v3147 = vpop.f32.mrf.mxu0
      %v3148 = vadd.f32 %v3114, %v3147
      %v3149 = vpop.f32.mrf.mxu0
      %v3150 = vadd.f32 %v3116, %v3149
      %3151 = vmatmul.bf16.gmra.mxu0 %v2949
      %v3152 = vpop.f32.mrf.mxu0
      %v3153 = vadd.f32 %v3119, %v3152
      %v3154 = vpop.f32.mrf.mxu0
      %v3155 = vadd.f32 %v3121, %v3154
      %3156 = vmatmul.bf16.gmra.mxu0 %v2965
      %v3157 = vpop.f32.mrf.mxu0
      %v3158 = vadd.f32 %v3124, %v3157
      %v3159 = vpop.f32.mrf.mxu0
      %v3160 = vadd.f32 %v3126, %v3159
      %3161 = vmatmul.bf16.gmra.mxu0 %v2981
      %v3162 = vpop.f32.mrf.mxu0
      %v3163 = vadd.f32 %v3129, %v3162
      %v3164 = vpop.f32.mrf.mxu0
      %v3165 = vadd.f32 %v3131, %v3164
      %3166 = vmatmul.bf16.gmra.mxu0 %v2997
      %v3167 = vpop.f32.mrf.mxu0
      %v3168 = vadd.f32 %v3134, %v3167
      %v3169 = vpop.f32.mrf.mxu0
      %v3170 = vadd.f32 %v3136, %v3169
      %3171 = vdwg.mxu0
      %v3172 = vadd.f32 %v2833, %v3148
      %v3173 = vadd.f32 %v2834, %v3150
      %v3174 = vadd.f32 %v2835, %v3153
      %v3175 = vadd.f32 %v2836, %v3155
      %v3176 = vadd.f32 %v2837, %v3158
      %v3177 = vadd.f32 %v2838, %v3160
      %v3178 = vadd.f32 %v2839, %v3163
      %v3179 = vadd.f32 %v2840, %v3165
      %v3180 = vadd.f32 %v2841, %v3168
      %v3181 = vadd.f32 %v2842, %v3170
      %v3182 = vld [vmem:[#allocation2 + $0x30] sm:$0xfc]
      %v3183 = vld [vmem:[#allocation2 + $0x38] sm:$0xfc]
      %v3184 = vld [vmem:[#allocation2 + $0xd0] sm:$0x3]
      %v3185 = vld [vmem:[#allocation2 + $0xd8] sm:$0x3]
      %v3186 = vpack.c.bf16 %v2845, %v3182
      %v3187 = vpack.c.bf16 %v2846, %v3183
      %v3188 = vpack.c.bf16 %v3184, %v3184
      %v3189 = vpack.c.bf16 %v3185, %v3185
      %s3190 = scalar_lea.vmem %s2, 896
      %v3191 = vld [vmem:[%s3190] sm:$0xf]
      %v3192 = vld [vmem:[%s3190 + $0x4] sm:$0xf]
      %v3193 = vld [vmem:[%s3190 + $0x8] sm:$0xf]
      %v3194 = vld [vmem:[%s3190 + $0xc] sm:$0xf]
      %v3195 = vld [vmem:[%s3190 + $0x10] sm:$0xf]
      %v3196 = vld [vmem:[%s3190 + $0x14] sm:$0xf]
      %v3197 = vld [vmem:[%s3190 + $0x18] sm:$0xf]
      %v3198 = vld [vmem:[%s3190 + $0x1c] sm:$0xf]
      %v3199 = vld [vmem:[%s3190 + $0x20] sm:$0xf]
      %v3200 = vld [vmem:[%s3190 + $0x24] sm:$0xf]
      %v3201 = vld [vmem:[%s3190 + $0x28] sm:$0xf]
      %v3202 = vld [vmem:[%s3190 + $0x2c] sm:$0xf]
      %v3203 = vld [vmem:[%s3190 + $0x30] sm:$0xf]
      %v3204 = vld [vmem:[%s3190 + $0x34] sm:$0xf]
      %v3205 = vld [vmem:[%s3190 + $0x38] sm:$0xf]
      %v3206 = vld [vmem:[%s3190 + $0x3c] sm:$0xf]
      %v3207 = vld [vmem:[%s3190 + $0x40] sm:$0xf]
      %v3208 = vld [vmem:[%s3190 + $0x44] sm:$0xf]
      %v3209 = vld [vmem:[%s3190 + $0x48] sm:$0xf]
      %v3210 = vld [vmem:[%s3190 + $0x4c] sm:$0xf]
      %v3211 = vld [vmem:[%s3190 + $0x50] sm:$0xf]
      %v3212 = vld [vmem:[%s3190 + $0x54] sm:$0xf]
      %v3213 = vld [vmem:[%s3190 + $0x58] sm:$0xf]
      %v3214 = vld [vmem:[%s3190 + $0x5c] sm:$0xf]
      %v3215 = vld [vmem:[%s3190 + $0x60] sm:$0xf]
      %v3216 = vld [vmem:[%s3190 + $0x64] sm:$0xf]
      %v3217 = vld [vmem:[%s3190 + $0x68] sm:$0xf]
      %v3218 = vld [vmem:[%s3190 + $0x6c] sm:$0xf]
      %v3219 = vld [vmem:[%s3190 + $0x70] sm:$0xf]
      %v3220 = vld [vmem:[%s3190 + $0x74] sm:$0xf]
      %v3221 = vld [vmem:[%s3190 + $0x78] sm:$0xf]
      %v3222 = vld [vmem:[%s3190 + $0x7c] sm:$0xf]
      %vm3235 = vcmask 1046528
      %v3236 = vrot.slane %v3186, 1
      %v3237 = vrot.slane %v2867, 1
      %v3238 = vsel %vm3235, %v3236, %v3237
      %v3239 = vrot.slane %v3187, 1
      %v3240 = vrot.slane %v2868, 1
      %v3241 = vsel %vm3235, %v3239, %v3240
      %v3242 = vrot.slane %v2869, 1
      %v3243 = vsel %vm3235, %v3237, %v3242
      %v3244 = vrot.slane %v2870, 1
      %v3245 = vsel %vm3235, %v3240, %v3244
      %v3246 = vrot.slane %v2871, 1
      %v3247 = vsel %vm3235, %v3242, %v3246
      %v3248 = vrot.slane %v2872, 1
      %v3249 = vsel %vm3235, %v3244, %v3248
      %v3250 = vrot.slane %v2873, 1
      %v3251 = vsel %vm3235, %v3246, %v3250
      %v3252 = vrot.slane %v2874, 1
      %v3253 = vsel %vm3235, %v3248, %v3252
      %v3254 = vrot.slane %v3188, 1
      %v3255 = vsel %vm3235, %v3250, %v3254
      %v3256 = vrot.slane %v3189, 1
      %v3257 = vsel %vm3235, %v3252, %v3256
      %v3300 = vunpack.c.l.b16 %v3191
      %v3301 = vunpack.c.l.b16 %v3192
      %v3302 = vunpack.c.l.b16 %v3193
      %v3303 = vunpack.c.l.b16 %v3194
      %v3304 = vunpack.c.l.b16 %v3195
      %v3305 = vunpack.c.l.b16 %v3196
      %v3306 = vunpack.c.l.b16 %v3197
      %v3307 = vunpack.c.l.b16 %v3198
      %v3308 = vunpack.c.l.b16 %v3199
      %v3309 = vunpack.c.l.b16 %v3200
      %v3310 = vunpack.c.l.b16 %v3201
      %v3311 = vunpack.c.l.b16 %v3202
      %v3312 = vunpack.c.l.b16 %v3203
      %v3313 = vunpack.c.l.b16 %v3204
      %v3314 = vunpack.c.l.b16 %v3205
      %v3315 = vunpack.c.l.b16 %v3206
      %v3316 = vunpack.c.l.b16 %v3207
      %v3317 = vunpack.c.l.b16 %v3208
      %v3318 = vunpack.c.l.b16 %v3209
      %v3319 = vunpack.c.l.b16 %v3210
      %v3320 = vunpack.c.l.b16 %v3211
      %v3321 = vunpack.c.l.b16 %v3212
      %v3322 = vunpack.c.l.b16 %v3213
      %v3323 = vunpack.c.l.b16 %v3214
      %v3324 = vunpack.c.l.b16 %v3215
      %v3325 = vunpack.c.l.b16 %v3216
      %v3326 = vunpack.c.l.b16 %v3217
      %v3327 = vunpack.c.l.b16 %v3218
      %v3328 = vunpack.c.l.b16 %v3219
      %v3329 = vunpack.c.l.b16 %v3220
      %v3330 = vunpack.c.l.b16 %v3221
      %v3331 = vunpack.c.l.b16 %v3222
      %v3332 = vpack.c.b16 %v3301, %v3300
      %v3333 = vpack.c.b16 %v3303, %v3302
      %v3334 = vpack.c.b16 %v3305, %v3304
      %v3335 = vpack.c.b16 %v3307, %v3306
      %v3336 = vpack.c.b16 %v3309, %v3308
      %v3337 = vpack.c.b16 %v3311, %v3310
      %v3338 = vpack.c.b16 %v3313, %v3312
      %v3339 = vpack.c.b16 %v3315, %v3314
      %v3340 = vpack.c.b16 %v3317, %v3316
      %v3341 = vpack.c.b16 %v3319, %v3318
      %v3342 = vpack.c.b16 %v3321, %v3320
      %v3343 = vpack.c.b16 %v3323, %v3322
      %v3344 = vpack.c.b16 %v3325, %v3324
      %v3345 = vpack.c.b16 %v3327, %v3326
      %v3346 = vpack.c.b16 %v3329, %v3328
      %v3347 = vpack.c.b16 %v3331, %v3330
      %3364 = vmatpush.bf16.msra.mxu0 %v3339
      %3365 = vmatpush.bf16.msra.mxu0 %v3338
      %3366 = vmatpush.bf16.msra.mxu0 %v3337
      %3367 = vmatpush.bf16.msra.mxu0 %v3336
      %3368 = vmatpush.bf16.msra.mxu0 %v3335
      %3369 = vmatpush.bf16.msra.mxu0 %v3334
      %3370 = vmatpush.bf16.msra.mxu0 %v3333
      %3371 = vmatpush.bf16.msra.mxu0 %v3332
      %3372 = vmatmul.bf16.gmra.mxu0 %v3238
      %v3373 = vpop.f32.mrf.mxu0
      %v3374 = vadd.f32 0.0, %v3373
      %v3375 = vpop.f32.mrf.mxu0
      %v3376 = vadd.f32 0.0, %v3375
      %3377 = vmatmul.bf16.gmra.mxu0 %v3243
      %v3378 = vpop.f32.mrf.mxu0
      %v3379 = vadd.f32 0.0, %v3378
      %v3380 = vpop.f32.mrf.mxu0
      %v3381 = vadd.f32 0.0, %v3380
      %3382 = vmatmul.bf16.gmra.mxu0 %v3247
      %v3383 = vpop.f32.mrf.mxu0
      %v3384 = vadd.f32 0.0, %v3383
      %v3385 = vpop.f32.mrf.mxu0
      %v3386 = vadd.f32 0.0, %v3385
      %3387 = vmatmul.bf16.gmra.mxu0 %v3251
      %v3388 = vpop.f32.mrf.mxu0
      %v3389 = vadd.f32 0.0, %v3388
      %v3390 = vpop.f32.mrf.mxu0
      %v3391 = vadd.f32 0.0, %v3390
      %3392 = vmatmul.bf16.gmra.mxu0 %v3255
      %v3393 = vpop.f32.mrf.mxu0
      %v3394 = vadd.f32 0.0, %v3393
      %v3395 = vpop.f32.mrf.mxu0
      %v3396 = vadd.f32 0.0, %v3395
      %3397 = vdwg.mxu0
      %3398 = vmatpush.bf16.msra.mxu0 %v3347
      %3399 = vmatpush.bf16.msra.mxu0 %v3346
      %3400 = vmatpush.bf16.msra.mxu0 %v3345
      %3401 = vmatpush.bf16.msra.mxu0 %v3344
      %3402 = vmatpush.bf16.msra.mxu0 %v3343
      %3403 = vmatpush.bf16.msra.mxu0 %v3342
      %3404 = vmatpush.bf16.msra.mxu0 %v3341
      %3405 = vmatpush.bf16.msra.mxu0 %v3340
      %3406 = vmatmul.bf16.gmra.mxu0 %v3241
      %v3407 = vpop.f32.mrf.mxu0
      %v3408 = vadd.f32 %v3374, %v3407
      %v3409 = vpop.f32.mrf.mxu0
      %v3410 = vadd.f32 %v3376, %v3409
      %3411 = vmatmul.bf16.gmra.mxu0 %v3245
      %v3412 = vpop.f32.mrf.mxu0
      %v3413 = vadd.f32 %v3379, %v3412
      %v3414 = vpop.f32.mrf.mxu0
      %v3415 = vadd.f32 %v3381, %v3414
      %3416 = vmatmul.bf16.gmra.mxu0 %v3249
      %v3417 = vpop.f32.mrf.mxu0
      %v3418 = vadd.f32 %v3384, %v3417
      %v3419 = vpop.f32.mrf.mxu0
      %v3420 = vadd.f32 %v3386, %v3419
      %3421 = vmatmul.bf16.gmra.mxu0 %v3253
      %v3422 = vpop.f32.mrf.mxu0
      %v3423 = vadd.f32 %v3389, %v3422
      %v3424 = vpop.f32.mrf.mxu0
      %v3425 = vadd.f32 %v3391, %v3424
      %3426 = vmatmul.bf16.gmra.mxu0 %v3257
      %v3427 = vpop.f32.mrf.mxu0
      %v3428 = vadd.f32 %v3394, %v3427
      %v3429 = vpop.f32.mrf.mxu0
      %v3430 = vadd.f32 %v3396, %v3429
      %3431 = vdwg.mxu0
      %v3432 = vadd.f32 %v3172, %v3408
      %v3433 = vadd.f32 %v3173, %v3410
      %v3434 = vadd.f32 %v3174, %v3413
      %v3435 = vadd.f32 %v3175, %v3415
      %v3436 = vadd.f32 %v3176, %v3418
      %v3437 = vadd.f32 %v3177, %v3420
      %v3438 = vadd.f32 %v3178, %v3423
      %v3439 = vadd.f32 %v3179, %v3425
      %v3440 = vadd.f32 %v3180, %v3428
      %v3441 = vadd.f32 %v3181, %v3430
      %v3442 = vld [vmem:[#allocation2 + $0x30] sm:$0xf8]
      %v3443 = vld [vmem:[#allocation2 + $0x38] sm:$0xf8]
      %v3444 = vld [vmem:[#allocation2 + $0xd0] sm:$0x7]
      %v3445 = vld [vmem:[#allocation2 + $0xd8] sm:$0x7]
      %v3446 = vpack.c.bf16 %v2845, %v3442
      %v3447 = vpack.c.bf16 %v2846, %v3443
      %v3448 = vpack.c.bf16 %v3444, %v3444
      %v3449 = vpack.c.bf16 %v3445, %v3445
      %s3450 = scalar_lea.vmem %s2, 1024
      %v3451 = vld [vmem:[%s3450] sm:$0xf]
      %v3452 = vld [vmem:[%s3450 + $0x4] sm:$0xf]
      %v3453 = vld [vmem:[%s3450 + $0x8] sm:$0xf]
      %v3454 = vld [vmem:[%s3450 + $0xc] sm:$0xf]
      %v3455 = vld [vmem:[%s3450 + $0x10] sm:$0xf]
      %v3456 = vld [vmem:[%s3450 + $0x14] sm:$0xf]
      %v3457 = vld [vmem:[%s3450 + $0x18] sm:$0xf]
      %v3458 = vld [vmem:[%s3450 + $0x1c] sm:$0xf]
      %v3459 = vld [vmem:[%s3450 + $0x20] sm:$0xf]
      %v3460 = vld [vmem:[%s3450 + $0x24] sm:$0xf]
      %v3461 = vld [vmem:[%s3450 + $0x28] sm:$0xf]
      %v3462 = vld [vmem:[%s3450 + $0x2c] sm:$0xf]
      %v3463 = vld [vmem:[%s3450 + $0x30] sm:$0xf]
      %v3464 = vld [vmem:[%s3450 + $0x34] sm:$0xf]
      %v3465 = vld [vmem:[%s3450 + $0x38] sm:$0xf]
      %v3466 = vld [vmem:[%s3450 + $0x3c] sm:$0xf]
      %v3467 = vld [vmem:[%s3450 + $0x40] sm:$0xf]
      %v3468 = vld [vmem:[%s3450 + $0x44] sm:$0xf]
      %v3469 = vld [vmem:[%s3450 + $0x48] sm:$0xf]
      %v3470 = vld [vmem:[%s3450 + $0x4c] sm:$0xf]
      %v3471 = vld [vmem:[%s3450 + $0x50] sm:$0xf]
      %v3472 = vld [vmem:[%s3450 + $0x54] sm:$0xf]
      %v3473 = vld [vmem:[%s3450 + $0x58] sm:$0xf]
      %v3474 = vld [vmem:[%s3450 + $0x5c] sm:$0xf]
      %v3475 = vld [vmem:[%s3450 + $0x60] sm:$0xf]
      %v3476 = vld [vmem:[%s3450 + $0x64] sm:$0xf]
      %v3477 = vld [vmem:[%s3450 + $0x68] sm:$0xf]
      %v3478 = vld [vmem:[%s3450 + $0x6c] sm:$0xf]
      %v3479 = vld [vmem:[%s3450 + $0x70] sm:$0xf]
      %v3480 = vld [vmem:[%s3450 + $0x74] sm:$0xf]
      %v3481 = vld [vmem:[%s3450 + $0x78] sm:$0xf]
      %v3482 = vld [vmem:[%s3450 + $0x7c] sm:$0xf]
      %vm3483 = vsmask.f32 6400
      %v3485 = vshrl.u32 %v3446, 16
      %v3487 = vrot.slane %v3485, 1
      %v3488 = vshll.u32 %v3446, 16
      %v3490 = vrot.slane %v3488, 2
      %v3491 = vor.u32 %v3487, %v3490
      %v3492 = vrot.slane %v2934, 1
      %v3493 = vrot.slane %v2918, 2
      %v3494 = vor.u32 %v3492, %v3493
      %v3495 = vsel %vm3483, %v3491, %v3494
      %v3497 = vshrl.u32 %v3447, 16
      %v3499 = vrot.slane %v3497, 1
      %v3500 = vshll.u32 %v3447, 16
      %v3502 = vrot.slane %v3500, 2
      %v3503 = vor.u32 %v3499, %v3502
      %v3504 = vrot.slane %v2942, 1
      %v3505 = vrot.slane %v2930, 2
      %v3506 = vor.u32 %v3504, %v3505
      %v3507 = vsel %vm3483, %v3503, %v3506
      %v3508 = vrot.slane %v2950, 1
      %v3509 = vrot.slane %v2938, 2
      %v3510 = vor.u32 %v3508, %v3509
      %v3511 = vsel %vm3483, %v3494, %v3510
      %v3512 = vrot.slane %v2958, 1
      %v3513 = vrot.slane %v2946, 2
      %v3514 = vor.u32 %v3512, %v3513
      %v3515 = vsel %vm3483, %v3506, %v3514
      %v3516 = vrot.slane %v2966, 1
      %v3517 = vrot.slane %v2954, 2
      %v3518 = vor.u32 %v3516, %v3517
      %v3519 = vsel %vm3483, %v3510, %v3518
      %v3520 = vrot.slane %v2974, 1
      %v3521 = vrot.slane %v2962, 2
      %v3522 = vor.u32 %v3520, %v3521
      %v3523 = vsel %vm3483, %v3514, %v3522
      %v3524 = vrot.slane %v2982, 1
      %v3525 = vrot.slane %v2970, 2
      %v3526 = vor.u32 %v3524, %v3525
      %v3527 = vsel %vm3483, %v3518, %v3526
      %v3528 = vrot.slane %v2990, 1
      %v3529 = vrot.slane %v2978, 2
      %v3530 = vor.u32 %v3528, %v3529
      %v3531 = vsel %vm3483, %v3522, %v3530
      %v3533 = vshrl.u32 %v3448, 16
      %v3535 = vrot.slane %v3533, 1
      %v3536 = vshll.u32 %v3448, 16
      %v3538 = vrot.slane %v3536, 2
      %v3539 = vor.u32 %v3535, %v3538
      %v3540 = vsel %vm3483, %v3526, %v3539
      %v3542 = vshrl.u32 %v3449, 16
      %v3544 = vrot.slane %v3542, 1
      %v3545 = vshll.u32 %v3449, 16
      %v3547 = vrot.slane %v3545, 2
      %v3548 = vor.u32 %v3544, %v3547
      %v3549 = vsel %vm3483, %v3530, %v3548
      %v3592 = vunpack.c.l.b16 %v3451
      %v3593 = vunpack.c.l.b16 %v3452
      %v3594 = vunpack.c.l.b16 %v3453
      %v3595 = vunpack.c.l.b16 %v3454
      %v3596 = vunpack.c.l.b16 %v3455
      %v3597 = vunpack.c.l.b16 %v3456
      %v3598 = vunpack.c.l.b16 %v3457
      %v3599 = vunpack.c.l.b16 %v3458
      %v3600 = vunpack.c.l.b16 %v3459
      %v3601 = vunpack.c.l.b16 %v3460
      %v3602 = vunpack.c.l.b16 %v3461
      %v3603 = vunpack.c.l.b16 %v3462
      %v3604 = vunpack.c.l.b16 %v3463
      %v3605 = vunpack.c.l.b16 %v3464
      %v3606 = vunpack.c.l.b16 %v3465
      %v3607 = vunpack.c.l.b16 %v3466
      %v3608 = vunpack.c.l.b16 %v3467
      %v3609 = vunpack.c.l.b16 %v3468
      %v3610 = vunpack.c.l.b16 %v3469
      %v3611 = vunpack.c.l.b16 %v3470
      %v3612 = vunpack.c.l.b16 %v3471
      %v3613 = vunpack.c.l.b16 %v3472
      %v3614 = vunpack.c.l.b16 %v3473
      %v3615 = vunpack.c.l.b16 %v3474
      %v3616 = vunpack.c.l.b16 %v3475
      %v3617 = vunpack.c.l.b16 %v3476
      %v3618 = vunpack.c.l.b16 %v3477
      %v3619 = vunpack.c.l.b16 %v3478
      %v3620 = vunpack.c.l.b16 %v3479
      %v3621 = vunpack.c.l.b16 %v3480
      %v3622 = vunpack.c.l.b16 %v3481
      %v3623 = vunpack.c.l.b16 %v3482
      %v3624 = vpack.c.b16 %v3593, %v3592
      %v3625 = vpack.c.b16 %v3595, %v3594
      %v3626 = vpack.c.b16 %v3597, %v3596
      %v3627 = vpack.c.b16 %v3599, %v3598
      %v3628 = vpack.c.b16 %v3601, %v3600
      %v3629 = vpack.c.b16 %v3603, %v3602
      %v3630 = vpack.c.b16 %v3605, %v3604
      %v3631 = vpack.c.b16 %v3607, %v3606
      %v3632 = vpack.c.b16 %v3609, %v3608
      %v3633 = vpack.c.b16 %v3611, %v3610
      %v3634 = vpack.c.b16 %v3613, %v3612
      %v3635 = vpack.c.b16 %v3615, %v3614
      %v3636 = vpack.c.b16 %v3617, %v3616
      %v3637 = vpack.c.b16 %v3619, %v3618
      %v3638 = vpack.c.b16 %v3621, %v3620
      %v3639 = vpack.c.b16 %v3623, %v3622
      %3656 = vmatpush.bf16.msra.mxu0 %v3631
      %3657 = vmatpush.bf16.msra.mxu0 %v3630
      %3658 = vmatpush.bf16.msra.mxu0 %v3629
      %3659 = vmatpush.bf16.msra.mxu0 %v3628
      %3660 = vmatpush.bf16.msra.mxu0 %v3627
      %3661 = vmatpush.bf16.msra.mxu0 %v3626
      %3662 = vmatpush.bf16.msra.mxu0 %v3625
      %3663 = vmatpush.bf16.msra.mxu0 %v3624
      %3664 = vmatmul.bf16.gmra.mxu0 %v3495
      %v3665 = vpop.f32.mrf.mxu0
      %v3666 = vadd.f32 0.0, %v3665
      %v3667 = vpop.f32.mrf.mxu0
      %v3668 = vadd.f32 0.0, %v3667
      %3669 = vmatmul.bf16.gmra.mxu0 %v3511
      %v3670 = vpop.f32.mrf.mxu0
      %v3671 = vadd.f32 0.0, %v3670
      %v3672 = vpop.f32.mrf.mxu0
      %v3673 = vadd.f32 0.0, %v3672
      %3674 = vmatmul.bf16.gmra.mxu0 %v3519
      %v3675 = vpop.f32.mrf.mxu0
      %v3676 = vadd.f32 0.0, %v3675
      %v3677 = vpop.f32.mrf.mxu0
      %v3678 = vadd.f32 0.0, %v3677
      %3679 = vmatmul.bf16.gmra.mxu0 %v3527
      %v3680 = vpop.f32.mrf.mxu0
      %v3681 = vadd.f32 0.0, %v3680
      %v3682 = vpop.f32.mrf.mxu0
      %v3683 = vadd.f32 0.0, %v3682
      %3684 = vmatmul.bf16.gmra.mxu0 %v3540
      %v3685 = vpop.f32.mrf.mxu0
      %v3686 = vadd.f32 0.0, %v3685
      %v3687 = vpop.f32.mrf.mxu0
      %v3688 = vadd.f32 0.0, %v3687
      %3689 = vdwg.mxu0
      %3690 = vmatpush.bf16.msra.mxu0 %v3639
      %3691 = vmatpush.bf16.msra.mxu0 %v3638
      %3692 = vmatpush.bf16.msra.mxu0 %v3637
      %3693 = vmatpush.bf16.msra.mxu0 %v3636
      %3694 = vmatpush.bf16.msra.mxu0 %v3635
      %3695 = vmatpush.bf16.msra.mxu0 %v3634
      %3696 = vmatpush.bf16.msra.mxu0 %v3633
      %3697 = vmatpush.bf16.msra.mxu0 %v3632
      %3698 = vmatmul.bf16.gmra.mxu0 %v3507
      %v3699 = vpop.f32.mrf.mxu0
      %v3700 = vadd.f32 %v3666, %v3699
      %v3701 = vpop.f32.mrf.mxu0
      %v3702 = vadd.f32 %v3668, %v3701
      %3703 = vmatmul.bf16.gmra.mxu0 %v3515
      %v3704 = vpop.f32.mrf.mxu0
      %v3705 = vadd.f32 %v3671, %v3704
      %v3706 = vpop.f32.mrf.mxu0
      %v3707 = vadd.f32 %v3673, %v3706
      %3708 = vmatmul.bf16.gmra.mxu0 %v3523
      %v3709 = vpop.f32.mrf.mxu0
      %v3710 = vadd.f32 %v3676, %v3709
      %v3711 = vpop.f32.mrf.mxu0
      %v3712 = vadd.f32 %v3678, %v3711
      %3713 = vmatmul.bf16.gmra.mxu0 %v3531
      %v3714 = vpop.f32.mrf.mxu0
      %v3715 = vadd.f32 %v3681, %v3714
      %v3716 = vpop.f32.mrf.mxu0
      %v3717 = vadd.f32 %v3683, %v3716
      %3718 = vmatmul.bf16.gmra.mxu0 %v3549
      %v3719 = vpop.f32.mrf.mxu0
      %v3720 = vadd.f32 %v3686, %v3719
      %v3721 = vpop.f32.mrf.mxu0
      %v3722 = vadd.f32 %v3688, %v3721
      %3723 = vdwg.mxu0
      %v3724 = vadd.f32 %v3432, %v3700
      %v3725 = vadd.f32 %v3433, %v3702
      %v3726 = vadd.f32 %v3434, %v3705
      %v3727 = vadd.f32 %v3435, %v3707
      %v3728 = vadd.f32 %v3436, %v3710
      %v3729 = vadd.f32 %v3437, %v3712
      %v3730 = vadd.f32 %v3438, %v3715
      %v3731 = vadd.f32 %v3439, %v3717
      %v3732 = vadd.f32 %v3440, %v3720
      %v3733 = vadd.f32 %v3441, %v3722
      %v3734 = vld [vmem:[%s6] sm:$0x1]
      %v3735 = vperm.slane %v3734, 0
      %v3736 = vmul.f32 %v3724, %v3735
      %v3737 = vmul.f32 %v3725, %v3735
      %v3738 = vmul.f32 %v3726, %v3735
      %v3739 = vmul.f32 %v3727, %v3735
      %v3740 = vmul.f32 %v3728, %v3735
      %v3741 = vmul.f32 %v3729, %v3735
      %v3742 = vmul.f32 %v3730, %v3735
      %v3743 = vmul.f32 %v3731, %v3735
      %v3744 = vmul.f32 %v3732, %v3735
      %v3745 = vmul.f32 %v3733, %v3735
      %v3746 = vld [vmem:[%s6 + $0x1] sm:$0x1]
      %v3747 = vperm.slane %v3746, 0
      %v3748 = vadd.f32 %v3736, %v3747
      %v3749 = vadd.f32 %v3737, %v3747
      %v3750 = vadd.f32 %v3738, %v3747
      %v3751 = vadd.f32 %v3739, %v3747
      %v3752 = vadd.f32 %v3740, %v3747
      %v3753 = vadd.f32 %v3741, %v3747
      %v3754 = vadd.f32 %v3742, %v3747
      %v3755 = vadd.f32 %v3743, %v3747
      %v3756 = vadd.f32 %v3744, %v3747
      %v3757 = vadd.f32 %v3745, %v3747
      %v3758 = vmax.f32 %v3748, 0.0
      %v3759 = vmax.f32 %v3749, 0.0
      %v3760 = vmax.f32 %v3750, 0.0
      %v3761 = vmax.f32 %v3751, 0.0
      %v3762 = vmax.f32 %v3752, 0.0
      %v3763 = vmax.f32 %v3753, 0.0
      %v3764 = vmax.f32 %v3754, 0.0
      %v3765 = vmax.f32 %v3755, 0.0
      %v3766 = vmax.f32 %v3756, 0.0
      %v3767 = vmax.f32 %v3757, 0.0
      %v3768 = vsel %vm958, %v3758, 0.0
      %v3769 = vsel %vm959, %v3759, 0.0
      %v3770 = vsel %vm960, %v3760, 0.0
      %v3771 = vsel %vm961, %v3761, 0.0
      %v3772 = vsel %vm962, %v3762, 0.0
      %v3773 = vsel %vm963, %v3763, 0.0
      %v3774 = vsel %vm964, %v3764, 0.0
      %v3775 = vsel %vm965, %v3765, 0.0
      %v3776 = vsel %vm966, %v3766, 0.0
      %v3777 = vsel %vm967, %v3767, 0.0
      %3778 = vst [vmem:[#allocation3] sm:$0xff] 0.0
      %3779 = vst [vmem:[#allocation3 + $0x8] sm:$0xff] 0.0
      %3780 = vst [vmem:[#allocation3 + $0x10] sm:$0xff] 0.0
      %3781 = vst [vmem:[#allocation3 + $0x18] sm:$0xff] 0.0
      %3782 = vst [vmem:[#allocation3 + $0x20] sm:$0xff] 0.0
      %3783 = vst [vmem:[#allocation3 + $0x28] sm:$0xff] 0.0
      %3784 = vst [vmem:[#allocation3 + $0x30] sm:$0xff] 0.0
      %3785 = vst [vmem:[#allocation3 + $0x38] sm:$0xff] 0.0
      %3786 = vst [vmem:[#allocation3 + $0x40] sm:$0xff] 0.0
      %3787 = vst [vmem:[#allocation3 + $0x48] sm:$0xff] 0.0
      %3788 = vst [vmem:[#allocation3 + $0x50] sm:$0xff] 0.0
      %3789 = vst [vmem:[#allocation3 + $0x58] sm:$0xff] 0.0
      %3790 = vst [vmem:[#allocation3 + $0x60] sm:$0xff] 0.0
      %3791 = vst [vmem:[#allocation3 + $0x68] sm:$0xff] 0.0
      %3792 = vst [vmem:[#allocation3 + $0x70] sm:$0xff] 0.0
      %3793 = vst [vmem:[#allocation3 + $0x10] sm:$0xff] %v3768
      %3794 = vst [vmem:[#allocation3 + $0x18] sm:$0xff] %v3769
      %3795 = vst [vmem:[#allocation3 + $0x20] sm:$0xff] %v3770
      %3796 = vst [vmem:[#allocation3 + $0x28] sm:$0xff] %v3771
      %3797 = vst [vmem:[#allocation3 + $0x30] sm:$0xff] %v3772
      %3798 = vst [vmem:[#allocation3 + $0x38] sm:$0xff] %v3773
      %3799 = vst [vmem:[#allocation3 + $0x40] sm:$0xff] %v3774
      %3800 = vst [vmem:[#allocation3 + $0x48] sm:$0xff] %v3775
      %3801 = vst [vmem:[#allocation3 + $0x50] sm:$0xff] %v3776
      %3802 = vst [vmem:[#allocation3 + $0x58] sm:$0xff] %v3777
      %v3803 = vld [vmem:[#allocation3 + $0x5] sm:$0xff]
      %v3804 = vld [vmem:[#allocation3 + $0xd] sm:$0xff]
      %v3805 = vld [vmem:[#allocation3 + $0x15] sm:$0xff]
      %v3806 = vld [vmem:[#allocation3 + $0x1d] sm:$0xff]
      %v3807 = vld [vmem:[#allocation3 + $0x25] sm:$0xff]
      %v3808 = vld [vmem:[#allocation3 + $0x2d] sm:$0xff]
      %v3809 = vld [vmem:[#allocation3 + $0x35] sm:$0xff]
      %v3810 = vld [vmem:[#allocation3 + $0x3d] sm:$0xff]
      %v3811 = vld [vmem:[#allocation3 + $0x45] sm:$0xff]
      %v3812 = vld [vmem:[#allocation3 + $0x4d] sm:$0xff]
      %v3813 = vpack.c.bf16 %v3804, %v3803
      %v3814 = vpack.c.bf16 %v3806, %v3805
      %v3815 = vpack.c.bf16 %v3808, %v3807
      %v3816 = vpack.c.bf16 %v3810, %v3809
      %v3817 = vpack.c.bf16 %v3812, %v3811
      %v3818 = vld [vmem:[%s3] sm:$0xf]
      %v3819 = vld [vmem:[%s3 + $0x4] sm:$0xf]
      %v3820 = vld [vmem:[%s3 + $0x8] sm:$0xf]
      %v3821 = vld [vmem:[%s3 + $0xc] sm:$0xf]
      %v3822 = vld [vmem:[%s3 + $0x10] sm:$0xf]
      %v3823 = vld [vmem:[%s3 + $0x14] sm:$0xf]
      %v3824 = vld [vmem:[%s3 + $0x18] sm:$0xf]
      %v3825 = vld [vmem:[%s3 + $0x1c] sm:$0xf]
      %v3826 = vld [vmem:[%s3 + $0x20] sm:$0xf]
      %v3827 = vld [vmem:[%s3 + $0x24] sm:$0xf]
      %v3828 = vld [vmem:[%s3 + $0x28] sm:$0xf]
      %v3829 = vld [vmem:[%s3 + $0x2c] sm:$0xf]
      %v3830 = vld [vmem:[%s3 + $0x30] sm:$0xf]
      %v3831 = vld [vmem:[%s3 + $0x34] sm:$0xf]
      %v3832 = vld [vmem:[%s3 + $0x38] sm:$0xf]
      %v3833 = vld [vmem:[%s3 + $0x3c] sm:$0xf]
      %v3834 = vld [vmem:[#allocation3 + $0x6] sm:$0xff]
      %v3835 = vld [vmem:[#allocation3 + $0xe] sm:$0xff]
      %v3836 = vld [vmem:[#allocation3 + $0x16] sm:$0xff]
      %v3837 = vld [vmem:[#allocation3 + $0x1e] sm:$0xff]
      %v3838 = vld [vmem:[#allocation3 + $0x26] sm:$0xff]
      %v3839 = vld [vmem:[#allocation3 + $0x2e] sm:$0xff]
      %v3840 = vld [vmem:[#allocation3 + $0x36] sm:$0xff]
      %v3841 = vld [vmem:[#allocation3 + $0x3e] sm:$0xff]
      %v3842 = vld [vmem:[#allocation3 + $0x46] sm:$0xff]
      %v3843 = vld [vmem:[#allocation3 + $0x4e] sm:$0xff]
      %v3844 = vpack.c.bf16 %v3835, %v3834
      %v3845 = vpack.c.bf16 %v3837, %v3836
      %v3846 = vpack.c.bf16 %v3839, %v3838
      %v3847 = vpack.c.bf16 %v3841, %v3840
      %v3848 = vpack.c.bf16 %v3843, %v3842
      %s3849 = scalar_lea.vmem %s3, 64
      %v3850 = vld [vmem:[%s3849] sm:$0xf]
      %v3851 = vld [vmem:[%s3849 + $0x4] sm:$0xf]
      %v3852 = vld [vmem:[%s3849 + $0x8] sm:$0xf]
      %v3853 = vld [vmem:[%s3849 + $0xc] sm:$0xf]
      %v3854 = vld [vmem:[%s3849 + $0x10] sm:$0xf]
      %v3855 = vld [vmem:[%s3849 + $0x14] sm:$0xf]
      %v3856 = vld [vmem:[%s3849 + $0x18] sm:$0xf]
      %v3857 = vld [vmem:[%s3849 + $0x1c] sm:$0xf]
      %v3858 = vld [vmem:[%s3849 + $0x20] sm:$0xf]
      %v3859 = vld [vmem:[%s3849 + $0x24] sm:$0xf]
      %v3860 = vld [vmem:[%s3849 + $0x28] sm:$0xf]
      %v3861 = vld [vmem:[%s3849 + $0x2c] sm:$0xf]
      %v3862 = vld [vmem:[%s3849 + $0x30] sm:$0xf]
      %v3863 = vld [vmem:[%s3849 + $0x34] sm:$0xf]
      %v3864 = vld [vmem:[%s3849 + $0x38] sm:$0xf]
      %v3865 = vld [vmem:[%s3849 + $0x3c] sm:$0xf]
      %v3882 = vunpack.c.l.b16 %v3850
      %v3883 = vunpack.c.l.b16 %v3851
      %v3884 = vunpack.c.l.b16 %v3852
      %v3885 = vunpack.c.l.b16 %v3853
      %v3886 = vunpack.c.l.b16 %v3854
      %v3887 = vunpack.c.l.b16 %v3855
      %v3888 = vunpack.c.l.b16 %v3856
      %v3889 = vunpack.c.l.b16 %v3857
      %v3890 = vunpack.c.l.b16 %v3858
      %v3891 = vunpack.c.l.b16 %v3859
      %v3892 = vunpack.c.l.b16 %v3860
      %v3893 = vunpack.c.l.b16 %v3861
      %v3894 = vunpack.c.l.b16 %v3862
      %v3895 = vunpack.c.l.b16 %v3863
      %v3896 = vunpack.c.l.b16 %v3864
      %v3897 = vunpack.c.l.b16 %v3865
      %v3898 = vpack.c.b16 %v3883, %v3882
      %v3899 = vpack.c.b16 %v3885, %v3884
      %v3900 = vpack.c.b16 %v3887, %v3886
      %v3901 = vpack.c.b16 %v3889, %v3888
      %v3902 = vpack.c.b16 %v3891, %v3890
      %v3903 = vpack.c.b16 %v3893, %v3892
      %v3904 = vpack.c.b16 %v3895, %v3894
      %v3905 = vpack.c.b16 %v3897, %v3896
      %3914 = vmatpush.bf16.msra.mxu0 %v3905
      %3915 = vmatpush.bf16.msra.mxu0 %v3904
      %3916 = vmatpush.bf16.msra.mxu0 %v3903
      %3917 = vmatpush.bf16.msra.mxu0 %v3902
      %3918 = vmatpush.bf16.msra.mxu0 %v3901
      %3919 = vmatpush.bf16.msra.mxu0 %v3900
      %3920 = vmatpush.bf16.msra.mxu0 %v3899
      %3921 = vmatpush.bf16.msra.mxu0 %v3898
      %3922 = vmatmul.bf16.gmra.mxu0 %v3844
      %v3923 = vpop.f32.mrf.mxu0
      %v3924 = vadd.f32 0.0, %v3923
      %v3925 = vpop.f32.mrf.mxu0
      %v3926 = vadd.f32 0.0, %v3925
      %3927 = vmatmul.bf16.gmra.mxu0 %v3845
      %v3928 = vpop.f32.mrf.mxu0
      %v3929 = vadd.f32 0.0, %v3928
      %v3930 = vpop.f32.mrf.mxu0
      %v3931 = vadd.f32 0.0, %v3930
      %3932 = vmatmul.bf16.gmra.mxu0 %v3846
      %v3933 = vpop.f32.mrf.mxu0
      %v3934 = vadd.f32 0.0, %v3933
      %v3935 = vpop.f32.mrf.mxu0
      %v3936 = vadd.f32 0.0, %v3935
      %3937 = vmatmul.bf16.gmra.mxu0 %v3847
      %v3938 = vpop.f32.mrf.mxu0
      %v3939 = vadd.f32 0.0, %v3938
      %v3940 = vpop.f32.mrf.mxu0
      %v3941 = vadd.f32 0.0, %v3940
      %3942 = vmatmul.bf16.gmra.mxu0 %v3848
      %v3943 = vpop.f32.mrf.mxu0
      %v3944 = vadd.f32 0.0, %v3943
      %v3945 = vpop.f32.mrf.mxu0
      %v3946 = vadd.f32 0.0, %v3945
      %3947 = vdwg.mxu0
      %v3964 = vunpack.c.l.b16 %v3818
      %v3965 = vunpack.c.l.b16 %v3819
      %v3966 = vunpack.c.l.b16 %v3820
      %v3967 = vunpack.c.l.b16 %v3821
      %v3968 = vunpack.c.l.b16 %v3822
      %v3969 = vunpack.c.l.b16 %v3823
      %v3970 = vunpack.c.l.b16 %v3824
      %v3971 = vunpack.c.l.b16 %v3825
      %v3972 = vunpack.c.l.b16 %v3826
      %v3973 = vunpack.c.l.b16 %v3827
      %v3974 = vunpack.c.l.b16 %v3828
      %v3975 = vunpack.c.l.b16 %v3829
      %v3976 = vunpack.c.l.b16 %v3830
      %v3977 = vunpack.c.l.b16 %v3831
      %v3978 = vunpack.c.l.b16 %v3832
      %v3979 = vunpack.c.l.b16 %v3833
      %v3980 = vpack.c.b16 %v3965, %v3964
      %v3981 = vpack.c.b16 %v3967, %v3966
      %v3982 = vpack.c.b16 %v3969, %v3968
      %v3983 = vpack.c.b16 %v3971, %v3970
      %v3984 = vpack.c.b16 %v3973, %v3972
      %v3985 = vpack.c.b16 %v3975, %v3974
      %v3986 = vpack.c.b16 %v3977, %v3976
      %v3987 = vpack.c.b16 %v3979, %v3978
      %3996 = vmatpush.bf16.msra.mxu0 %v3987
      %3997 = vmatpush.bf16.msra.mxu0 %v3986
      %3998 = vmatpush.bf16.msra.mxu0 %v3985
      %3999 = vmatpush.bf16.msra.mxu0 %v3984
      %4000 = vmatpush.bf16.msra.mxu0 %v3983
      %4001 = vmatpush.bf16.msra.mxu0 %v3982
      %4002 = vmatpush.bf16.msra.mxu0 %v3981
      %4003 = vmatpush.bf16.msra.mxu0 %v3980
      %4004 = vmatmul.bf16.gmra.mxu0 %v3813
      %v4005 = vpop.f32.mrf.mxu0
      %v4006 = vadd.f32 %v3924, %v4005
      %v4007 = vpop.f32.mrf.mxu0
      %v4008 = vadd.f32 %v3926, %v4007
      %4009 = vmatmul.bf16.gmra.mxu0 %v3814
      %v4010 = vpop.f32.mrf.mxu0
      %v4011 = vadd.f32 %v3929, %v4010
      %v4012 = vpop.f32.mrf.mxu0
      %v4013 = vadd.f32 %v3931, %v4012
      %4014 = vmatmul.bf16.gmra.mxu0 %v3815
      %v4015 = vpop.f32.mrf.mxu0
      %v4016 = vadd.f32 %v3934, %v4015
      %v4017 = vpop.f32.mrf.mxu0
      %v4018 = vadd.f32 %v3936, %v4017
      %4019 = vmatmul.bf16.gmra.mxu0 %v3816
      %v4020 = vpop.f32.mrf.mxu0
      %v4021 = vadd.f32 %v3939, %v4020
      %v4022 = vpop.f32.mrf.mxu0
      %v4023 = vadd.f32 %v3941, %v4022
      %4024 = vmatmul.bf16.gmra.mxu0 %v3817
      %v4025 = vpop.f32.mrf.mxu0
      %v4026 = vadd.f32 %v3944, %v4025
      %v4027 = vpop.f32.mrf.mxu0
      %v4028 = vadd.f32 %v3946, %v4027
      %4029 = vdwg.mxu0
      %v4030 = vld [vmem:[#allocation3 + $0x7] sm:$0xff]
      %v4031 = vld [vmem:[#allocation3 + $0xf] sm:$0xff]
      %v4032 = vld [vmem:[#allocation3 + $0x17] sm:$0xff]
      %v4033 = vld [vmem:[#allocation3 + $0x1f] sm:$0xff]
      %v4034 = vld [vmem:[#allocation3 + $0x27] sm:$0xff]
      %v4035 = vld [vmem:[#allocation3 + $0x2f] sm:$0xff]
      %v4036 = vld [vmem:[#allocation3 + $0x37] sm:$0xff]
      %v4037 = vld [vmem:[#allocation3 + $0x3f] sm:$0xff]
      %v4038 = vld [vmem:[#allocation3 + $0x47] sm:$0xff]
      %v4039 = vld [vmem:[#allocation3 + $0x4f] sm:$0xff]
      %v4040 = vpack.c.bf16 %v4031, %v4030
      %v4041 = vpack.c.bf16 %v4033, %v4032
      %v4042 = vpack.c.bf16 %v4035, %v4034
      %v4043 = vpack.c.bf16 %v4037, %v4036
      %v4044 = vpack.c.bf16 %v4039, %v4038
      %s4045 = scalar_lea.vmem %s3, 128
      %v4046 = vld [vmem:[%s4045] sm:$0xf]
      %v4047 = vld [vmem:[%s4045 + $0x4] sm:$0xf]
      %v4048 = vld [vmem:[%s4045 + $0x8] sm:$0xf]
      %v4049 = vld [vmem:[%s4045 + $0xc] sm:$0xf]
      %v4050 = vld [vmem:[%s4045 + $0x10] sm:$0xf]
      %v4051 = vld [vmem:[%s4045 + $0x14] sm:$0xf]
      %v4052 = vld [vmem:[%s4045 + $0x18] sm:$0xf]
      %v4053 = vld [vmem:[%s4045 + $0x1c] sm:$0xf]
      %v4054 = vld [vmem:[%s4045 + $0x20] sm:$0xf]
      %v4055 = vld [vmem:[%s4045 + $0x24] sm:$0xf]
      %v4056 = vld [vmem:[%s4045 + $0x28] sm:$0xf]
      %v4057 = vld [vmem:[%s4045 + $0x2c] sm:$0xf]
      %v4058 = vld [vmem:[%s4045 + $0x30] sm:$0xf]
      %v4059 = vld [vmem:[%s4045 + $0x34] sm:$0xf]
      %v4060 = vld [vmem:[%s4045 + $0x38] sm:$0xf]
      %v4061 = vld [vmem:[%s4045 + $0x3c] sm:$0xf]
      %v4078 = vunpack.c.l.b16 %v4046
      %v4079 = vunpack.c.l.b16 %v4047
      %v4080 = vunpack.c.l.b16 %v4048
      %v4081 = vunpack.c.l.b16 %v4049
      %v4082 = vunpack.c.l.b16 %v4050
      %v4083 = vunpack.c.l.b16 %v4051
      %v4084 = vunpack.c.l.b16 %v4052
      %v4085 = vunpack.c.l.b16 %v4053
      %v4086 = vunpack.c.l.b16 %v4054
      %v4087 = vunpack.c.l.b16 %v4055
      %v4088 = vunpack.c.l.b16 %v4056
      %v4089 = vunpack.c.l.b16 %v4057
      %v4090 = vunpack.c.l.b16 %v4058
      %v4091 = vunpack.c.l.b16 %v4059
      %v4092 = vunpack.c.l.b16 %v4060
      %v4093 = vunpack.c.l.b16 %v4061
      %v4094 = vpack.c.b16 %v4079, %v4078
      %v4095 = vpack.c.b16 %v4081, %v4080
      %v4096 = vpack.c.b16 %v4083, %v4082
      %v4097 = vpack.c.b16 %v4085, %v4084
      %v4098 = vpack.c.b16 %v4087, %v4086
      %v4099 = vpack.c.b16 %v4089, %v4088
      %v4100 = vpack.c.b16 %v4091, %v4090
      %v4101 = vpack.c.b16 %v4093, %v4092
      %4110 = vmatpush.bf16.msra.mxu0 %v4101
      %4111 = vmatpush.bf16.msra.mxu0 %v4100
      %4112 = vmatpush.bf16.msra.mxu0 %v4099
      %4113 = vmatpush.bf16.msra.mxu0 %v4098
      %4114 = vmatpush.bf16.msra.mxu0 %v4097
      %4115 = vmatpush.bf16.msra.mxu0 %v4096
      %4116 = vmatpush.bf16.msra.mxu0 %v4095
      %4117 = vmatpush.bf16.msra.mxu0 %v4094
      %4118 = vmatmul.bf16.gmra.mxu0 %v4040
      %v4119 = vpop.f32.mrf.mxu0
      %v4120 = vadd.f32 0.0, %v4119
      %v4121 = vpop.f32.mrf.mxu0
      %v4122 = vadd.f32 0.0, %v4121
      %4123 = vmatmul.bf16.gmra.mxu0 %v4041
      %v4124 = vpop.f32.mrf.mxu0
      %v4125 = vadd.f32 0.0, %v4124
      %v4126 = vpop.f32.mrf.mxu0
      %v4127 = vadd.f32 0.0, %v4126
      %4128 = vmatmul.bf16.gmra.mxu0 %v4042
      %v4129 = vpop.f32.mrf.mxu0
      %v4130 = vadd.f32 0.0, %v4129
      %v4131 = vpop.f32.mrf.mxu0
      %v4132 = vadd.f32 0.0, %v4131
      %4133 = vmatmul.bf16.gmra.mxu0 %v4043
      %v4134 = vpop.f32.mrf.mxu0
      %v4135 = vadd.f32 0.0, %v4134
      %v4136 = vpop.f32.mrf.mxu0
      %v4137 = vadd.f32 0.0, %v4136
      %4138 = vmatmul.bf16.gmra.mxu0 %v4044
      %v4139 = vpop.f32.mrf.mxu0
      %v4140 = vadd.f32 0.0, %v4139
      %v4141 = vpop.f32.mrf.mxu0
      %v4142 = vadd.f32 0.0, %v4141
      %4143 = vdwg.mxu0
      %v4144 = vadd.f32 %v4006, %v4120
      %v4145 = vadd.f32 %v4008, %v4122
      %v4146 = vadd.f32 %v4011, %v4125
      %v4147 = vadd.f32 %v4013, %v4127
      %v4148 = vadd.f32 %v4016, %v4130
      %v4149 = vadd.f32 %v4018, %v4132
      %v4150 = vadd.f32 %v4021, %v4135
      %v4151 = vadd.f32 %v4023, %v4137
      %v4152 = vadd.f32 %v4026, %v4140
      %v4153 = vadd.f32 %v4028, %v4142
      %v4154 = vld [vmem:[#allocation3 + $0xf] sm:$0xff]
      %v4155 = vld [vmem:[#allocation3 + $0x17] sm:$0xff]
      %v4156 = vld [vmem:[#allocation3 + $0x1f] sm:$0xff]
      %v4157 = vld [vmem:[#allocation3 + $0x27] sm:$0xff]
      %v4158 = vld [vmem:[#allocation3 + $0x2f] sm:$0xff]
      %v4159 = vld [vmem:[#allocation3 + $0x37] sm:$0xff]
      %v4160 = vld [vmem:[#allocation3 + $0x3f] sm:$0xff]
      %v4161 = vld [vmem:[#allocation3 + $0x47] sm:$0xff]
      %v4162 = vld [vmem:[#allocation3 + $0x4f] sm:$0xff]
      %v4163 = vld [vmem:[#allocation3 + $0x57] sm:$0xff]
      %v4164 = vpack.c.bf16 %v4155, %v4154
      %v4165 = vpack.c.bf16 %v4157, %v4156
      %v4166 = vpack.c.bf16 %v4159, %v4158
      %v4167 = vpack.c.bf16 %v4161, %v4160
      %v4168 = vpack.c.bf16 %v4163, %v4162
      %s4169 = scalar_lea.vmem %s3, 192
      %v4170 = vld [vmem:[%s4169] sm:$0xf]
      %v4171 = vld [vmem:[%s4169 + $0x4] sm:$0xf]
      %v4172 = vld [vmem:[%s4169 + $0x8] sm:$0xf]
      %v4173 = vld [vmem:[%s4169 + $0xc] sm:$0xf]
      %v4174 = vld [vmem:[%s4169 + $0x10] sm:$0xf]
      %v4175 = vld [vmem:[%s4169 + $0x14] sm:$0xf]
      %v4176 = vld [vmem:[%s4169 + $0x18] sm:$0xf]
      %v4177 = vld [vmem:[%s4169 + $0x1c] sm:$0xf]
      %v4178 = vld [vmem:[%s4169 + $0x20] sm:$0xf]
      %v4179 = vld [vmem:[%s4169 + $0x24] sm:$0xf]
      %v4180 = vld [vmem:[%s4169 + $0x28] sm:$0xf]
      %v4181 = vld [vmem:[%s4169 + $0x2c] sm:$0xf]
      %v4182 = vld [vmem:[%s4169 + $0x30] sm:$0xf]
      %v4183 = vld [vmem:[%s4169 + $0x34] sm:$0xf]
      %v4184 = vld [vmem:[%s4169 + $0x38] sm:$0xf]
      %v4185 = vld [vmem:[%s4169 + $0x3c] sm:$0xf]
      %v4202 = vunpack.c.l.b16 %v4170
      %v4203 = vunpack.c.l.b16 %v4171
      %v4204 = vunpack.c.l.b16 %v4172
      %v4205 = vunpack.c.l.b16 %v4173
      %v4206 = vunpack.c.l.b16 %v4174
      %v4207 = vunpack.c.l.b16 %v4175
      %v4208 = vunpack.c.l.b16 %v4176
      %v4209 = vunpack.c.l.b16 %v4177
      %v4210 = vunpack.c.l.b16 %v4178
      %v4211 = vunpack.c.l.b16 %v4179
      %v4212 = vunpack.c.l.b16 %v4180
      %v4213 = vunpack.c.l.b16 %v4181
      %v4214 = vunpack.c.l.b16 %v4182
      %v4215 = vunpack.c.l.b16 %v4183
      %v4216 = vunpack.c.l.b16 %v4184
      %v4217 = vunpack.c.l.b16 %v4185
      %v4218 = vpack.c.b16 %v4203, %v4202
      %v4219 = vpack.c.b16 %v4205, %v4204
      %v4220 = vpack.c.b16 %v4207, %v4206
      %v4221 = vpack.c.b16 %v4209, %v4208
      %v4222 = vpack.c.b16 %v4211, %v4210
      %v4223 = vpack.c.b16 %v4213, %v4212
      %v4224 = vpack.c.b16 %v4215, %v4214
      %v4225 = vpack.c.b16 %v4217, %v4216
      %4234 = vmatpush.bf16.msra.mxu0 %v4225
      %4235 = vmatpush.bf16.msra.mxu0 %v4224
      %4236 = vmatpush.bf16.msra.mxu0 %v4223
      %4237 = vmatpush.bf16.msra.mxu0 %v4222
      %4238 = vmatpush.bf16.msra.mxu0 %v4221
      %4239 = vmatpush.bf16.msra.mxu0 %v4220
      %4240 = vmatpush.bf16.msra.mxu0 %v4219
      %4241 = vmatpush.bf16.msra.mxu0 %v4218
      %4242 = vmatmul.bf16.gmra.mxu0 %v4164
      %v4243 = vpop.f32.mrf.mxu0
      %v4244 = vadd.f32 0.0, %v4243
      %v4245 = vpop.f32.mrf.mxu0
      %v4246 = vadd.f32 0.0, %v4245
      %4247 = vmatmul.bf16.gmra.mxu0 %v4165
      %v4248 = vpop.f32.mrf.mxu0
      %v4249 = vadd.f32 0.0, %v4248
      %v4250 = vpop.f32.mrf.mxu0
      %v4251 = vadd.f32 0.0, %v4250
      %4252 = vmatmul.bf16.gmra.mxu0 %v4166
      %v4253 = vpop.f32.mrf.mxu0
      %v4254 = vadd.f32 0.0, %v4253
      %v4255 = vpop.f32.mrf.mxu0
      %v4256 = vadd.f32 0.0, %v4255
      %4257 = vmatmul.bf16.gmra.mxu0 %v4167
      %v4258 = vpop.f32.mrf.mxu0
      %v4259 = vadd.f32 0.0, %v4258
      %v4260 = vpop.f32.mrf.mxu0
      %v4261 = vadd.f32 0.0, %v4260
      %4262 = vmatmul.bf16.gmra.mxu0 %v4168
      %v4263 = vpop.f32.mrf.mxu0
      %v4264 = vadd.f32 0.0, %v4263
      %v4265 = vpop.f32.mrf.mxu0
      %v4266 = vadd.f32 0.0, %v4265
      %4267 = vdwg.mxu0
      %v4268 = vadd.f32 %v4144, %v4244
      %v4269 = vadd.f32 %v4145, %v4246
      %v4270 = vadd.f32 %v4146, %v4249
      %v4271 = vadd.f32 %v4147, %v4251
      %v4272 = vadd.f32 %v4148, %v4254
      %v4273 = vadd.f32 %v4149, %v4256
      %v4274 = vadd.f32 %v4150, %v4259
      %v4275 = vadd.f32 %v4151, %v4261
      %v4276 = vadd.f32 %v4152, %v4264
      %v4277 = vadd.f32 %v4153, %v4266
      %v4278 = vld [vmem:[#allocation3 + $0x10] sm:$0xff]
      %v4279 = vld [vmem:[#allocation3 + $0x18] sm:$0xff]
      %v4280 = vld [vmem:[#allocation3 + $0x20] sm:$0xff]
      %v4281 = vld [vmem:[#allocation3 + $0x28] sm:$0xff]
      %v4282 = vld [vmem:[#allocation3 + $0x30] sm:$0xff]
      %v4283 = vld [vmem:[#allocation3 + $0x38] sm:$0xff]
      %v4284 = vld [vmem:[#allocation3 + $0x40] sm:$0xff]
      %v4285 = vld [vmem:[#allocation3 + $0x48] sm:$0xff]
      %v4286 = vld [vmem:[#allocation3 + $0x50] sm:$0xff]
      %v4287 = vld [vmem:[#allocation3 + $0x58] sm:$0xff]
      %v4288 = vpack.c.bf16 %v4279, %v4278
      %v4289 = vpack.c.bf16 %v4281, %v4280
      %v4290 = vpack.c.bf16 %v4283, %v4282
      %v4291 = vpack.c.bf16 %v4285, %v4284
      %v4292 = vpack.c.bf16 %v4287, %v4286
      %s4293 = scalar_lea.vmem %s3, 256
      %v4294 = vld [vmem:[%s4293] sm:$0xf]
      %v4295 = vld [vmem:[%s4293 + $0x4] sm:$0xf]
      %v4296 = vld [vmem:[%s4293 + $0x8] sm:$0xf]
      %v4297 = vld [vmem:[%s4293 + $0xc] sm:$0xf]
      %v4298 = vld [vmem:[%s4293 + $0x10] sm:$0xf]
      %v4299 = vld [vmem:[%s4293 + $0x14] sm:$0xf]
      %v4300 = vld [vmem:[%s4293 + $0x18] sm:$0xf]
      %v4301 = vld [vmem:[%s4293 + $0x1c] sm:$0xf]
      %v4302 = vld [vmem:[%s4293 + $0x20] sm:$0xf]
      %v4303 = vld [vmem:[%s4293 + $0x24] sm:$0xf]
      %v4304 = vld [vmem:[%s4293 + $0x28] sm:$0xf]
      %v4305 = vld [vmem:[%s4293 + $0x2c] sm:$0xf]
      %v4306 = vld [vmem:[%s4293 + $0x30] sm:$0xf]
      %v4307 = vld [vmem:[%s4293 + $0x34] sm:$0xf]
      %v4308 = vld [vmem:[%s4293 + $0x38] sm:$0xf]
      %v4309 = vld [vmem:[%s4293 + $0x3c] sm:$0xf]
      %v4326 = vunpack.c.l.b16 %v4294
      %v4327 = vunpack.c.l.b16 %v4295
      %v4328 = vunpack.c.l.b16 %v4296
      %v4329 = vunpack.c.l.b16 %v4297
      %v4330 = vunpack.c.l.b16 %v4298
      %v4331 = vunpack.c.l.b16 %v4299
      %v4332 = vunpack.c.l.b16 %v4300
      %v4333 = vunpack.c.l.b16 %v4301
      %v4334 = vunpack.c.l.b16 %v4302
      %v4335 = vunpack.c.l.b16 %v4303
      %v4336 = vunpack.c.l.b16 %v4304
      %v4337 = vunpack.c.l.b16 %v4305
      %v4338 = vunpack.c.l.b16 %v4306
      %v4339 = vunpack.c.l.b16 %v4307
      %v4340 = vunpack.c.l.b16 %v4308
      %v4341 = vunpack.c.l.b16 %v4309
      %v4342 = vpack.c.b16 %v4327, %v4326
      %v4343 = vpack.c.b16 %v4329, %v4328
      %v4344 = vpack.c.b16 %v4331, %v4330
      %v4345 = vpack.c.b16 %v4333, %v4332
      %v4346 = vpack.c.b16 %v4335, %v4334
      %v4347 = vpack.c.b16 %v4337, %v4336
      %v4348 = vpack.c.b16 %v4339, %v4338
      %v4349 = vpack.c.b16 %v4341, %v4340
      %4358 = vmatpush.bf16.msra.mxu0 %v4349
      %4359 = vmatpush.bf16.msra.mxu0 %v4348
      %4360 = vmatpush.bf16.msra.mxu0 %v4347
      %4361 = vmatpush.bf16.msra.mxu0 %v4346
      %4362 = vmatpush.bf16.msra.mxu0 %v4345
      %4363 = vmatpush.bf16.msra.mxu0 %v4344
      %4364 = vmatpush.bf16.msra.mxu0 %v4343
      %4365 = vmatpush.bf16.msra.mxu0 %v4342
      %4366 = vmatmul.bf16.gmra.mxu0 %v4288
      %v4367 = vpop.f32.mrf.mxu0
      %v4368 = vadd.f32 0.0, %v4367
      %v4369 = vpop.f32.mrf.mxu0
      %v4370 = vadd.f32 0.0, %v4369
      %4371 = vmatmul.bf16.gmra.mxu0 %v4289
      %v4372 = vpop.f32.mrf.mxu0
      %v4373 = vadd.f32 0.0, %v4372
      %v4374 = vpop.f32.mrf.mxu0
      %v4375 = vadd.f32 0.0, %v4374
      %4376 = vmatmul.bf16.gmra.mxu0 %v4290
      %v4377 = vpop.f32.mrf.mxu0
      %v4378 = vadd.f32 0.0, %v4377
      %v4379 = vpop.f32.mrf.mxu0
      %v4380 = vadd.f32 0.0, %v4379
      %4381 = vmatmul.bf16.gmra.mxu0 %v4291
      %v4382 = vpop.f32.mrf.mxu0
      %v4383 = vadd.f32 0.0, %v4382
      %v4384 = vpop.f32.mrf.mxu0
      %v4385 = vadd.f32 0.0, %v4384
      %4386 = vmatmul.bf16.gmra.mxu0 %v4292
      %v4387 = vpop.f32.mrf.mxu0
      %v4388 = vadd.f32 0.0, %v4387
      %v4389 = vpop.f32.mrf.mxu0
      %v4390 = vadd.f32 0.0, %v4389
      %4391 = vdwg.mxu0
      %v4392 = vadd.f32 %v4268, %v4368
      %v4393 = vadd.f32 %v4269, %v4370
      %v4394 = vadd.f32 %v4270, %v4373
      %v4395 = vadd.f32 %v4271, %v4375
      %v4396 = vadd.f32 %v4272, %v4378
      %v4397 = vadd.f32 %v4273, %v4380
      %v4398 = vadd.f32 %v4274, %v4383
      %v4399 = vadd.f32 %v4275, %v4385
      %v4400 = vadd.f32 %v4276, %v4388
      %v4401 = vadd.f32 %v4277, %v4390
      %v4402 = vld [vmem:[#allocation3 + $0x11] sm:$0xff]
      %v4403 = vld [vmem:[#allocation3 + $0x19] sm:$0xff]
      %v4404 = vld [vmem:[#allocation3 + $0x21] sm:$0xff]
      %v4405 = vld [vmem:[#allocation3 + $0x29] sm:$0xff]
      %v4406 = vld [vmem:[#allocation3 + $0x31] sm:$0xff]
      %v4407 = vld [vmem:[#allocation3 + $0x39] sm:$0xff]
      %v4408 = vld [vmem:[#allocation3 + $0x41] sm:$0xff]
      %v4409 = vld [vmem:[#allocation3 + $0x49] sm:$0xff]
      %v4410 = vld [vmem:[#allocation3 + $0x51] sm:$0xff]
      %v4411 = vld [vmem:[#allocation3 + $0x59] sm:$0xff]
      %v4412 = vpack.c.bf16 %v4403, %v4402
      %v4413 = vpack.c.bf16 %v4405, %v4404
      %v4414 = vpack.c.bf16 %v4407, %v4406
      %v4415 = vpack.c.bf16 %v4409, %v4408
      %v4416 = vpack.c.bf16 %v4411, %v4410
      %s4417 = scalar_lea.vmem %s3, 320
      %v4418 = vld [vmem:[%s4417] sm:$0xf]
      %v4419 = vld [vmem:[%s4417 + $0x4] sm:$0xf]
      %v4420 = vld [vmem:[%s4417 + $0x8] sm:$0xf]
      %v4421 = vld [vmem:[%s4417 + $0xc] sm:$0xf]
      %v4422 = vld [vmem:[%s4417 + $0x10] sm:$0xf]
      %v4423 = vld [vmem:[%s4417 + $0x14] sm:$0xf]
      %v4424 = vld [vmem:[%s4417 + $0x18] sm:$0xf]
      %v4425 = vld [vmem:[%s4417 + $0x1c] sm:$0xf]
      %v4426 = vld [vmem:[%s4417 + $0x20] sm:$0xf]
      %v4427 = vld [vmem:[%s4417 + $0x24] sm:$0xf]
      %v4428 = vld [vmem:[%s4417 + $0x28] sm:$0xf]
      %v4429 = vld [vmem:[%s4417 + $0x2c] sm:$0xf]
      %v4430 = vld [vmem:[%s4417 + $0x30] sm:$0xf]
      %v4431 = vld [vmem:[%s4417 + $0x34] sm:$0xf]
      %v4432 = vld [vmem:[%s4417 + $0x38] sm:$0xf]
      %v4433 = vld [vmem:[%s4417 + $0x3c] sm:$0xf]
      %v4450 = vunpack.c.l.b16 %v4418
      %v4451 = vunpack.c.l.b16 %v4419
      %v4452 = vunpack.c.l.b16 %v4420
      %v4453 = vunpack.c.l.b16 %v4421
      %v4454 = vunpack.c.l.b16 %v4422
      %v4455 = vunpack.c.l.b16 %v4423
      %v4456 = vunpack.c.l.b16 %v4424
      %v4457 = vunpack.c.l.b16 %v4425
      %v4458 = vunpack.c.l.b16 %v4426
      %v4459 = vunpack.c.l.b16 %v4427
      %v4460 = vunpack.c.l.b16 %v4428
      %v4461 = vunpack.c.l.b16 %v4429
      %v4462 = vunpack.c.l.b16 %v4430
      %v4463 = vunpack.c.l.b16 %v4431
      %v4464 = vunpack.c.l.b16 %v4432
      %v4465 = vunpack.c.l.b16 %v4433
      %v4466 = vpack.c.b16 %v4451, %v4450
      %v4467 = vpack.c.b16 %v4453, %v4452
      %v4468 = vpack.c.b16 %v4455, %v4454
      %v4469 = vpack.c.b16 %v4457, %v4456
      %v4470 = vpack.c.b16 %v4459, %v4458
      %v4471 = vpack.c.b16 %v4461, %v4460
      %v4472 = vpack.c.b16 %v4463, %v4462
      %v4473 = vpack.c.b16 %v4465, %v4464
      %4482 = vmatpush.bf16.msra.mxu0 %v4473
      %4483 = vmatpush.bf16.msra.mxu0 %v4472
      %4484 = vmatpush.bf16.msra.mxu0 %v4471
      %4485 = vmatpush.bf16.msra.mxu0 %v4470
      %4486 = vmatpush.bf16.msra.mxu0 %v4469
      %4487 = vmatpush.bf16.msra.mxu0 %v4468
      %4488 = vmatpush.bf16.msra.mxu0 %v4467
      %4489 = vmatpush.bf16.msra.mxu0 %v4466
      %4490 = vmatmul.bf16.gmra.mxu0 %v4412
      %v4491 = vpop.f32.mrf.mxu0
      %v4492 = vadd.f32 0.0, %v4491
      %v4493 = vpop.f32.mrf.mxu0
      %v4494 = vadd.f32 0.0, %v4493
      %4495 = vmatmul.bf16.gmra.mxu0 %v4413
      %v4496 = vpop.f32.mrf.mxu0
      %v4497 = vadd.f32 0.0, %v4496
      %v4498 = vpop.f32.mrf.mxu0
      %v4499 = vadd.f32 0.0, %v4498
      %4500 = vmatmul.bf16.gmra.mxu0 %v4414
      %v4501 = vpop.f32.mrf.mxu0
      %v4502 = vadd.f32 0.0, %v4501
      %v4503 = vpop.f32.mrf.mxu0
      %v4504 = vadd.f32 0.0, %v4503
      %4505 = vmatmul.bf16.gmra.mxu0 %v4415
      %v4506 = vpop.f32.mrf.mxu0
      %v4507 = vadd.f32 0.0, %v4506
      %v4508 = vpop.f32.mrf.mxu0
      %v4509 = vadd.f32 0.0, %v4508
      %4510 = vmatmul.bf16.gmra.mxu0 %v4416
      %v4511 = vpop.f32.mrf.mxu0
      %v4512 = vadd.f32 0.0, %v4511
      %v4513 = vpop.f32.mrf.mxu0
      %v4514 = vadd.f32 0.0, %v4513
      %4515 = vdwg.mxu0
      %v4516 = vadd.f32 %v4392, %v4492
      %v4517 = vadd.f32 %v4393, %v4494
      %v4518 = vadd.f32 %v4394, %v4497
      %v4519 = vadd.f32 %v4395, %v4499
      %v4520 = vadd.f32 %v4396, %v4502
      %v4521 = vadd.f32 %v4397, %v4504
      %v4522 = vadd.f32 %v4398, %v4507
      %v4523 = vadd.f32 %v4399, %v4509
      %v4524 = vadd.f32 %v4400, %v4512
      %v4525 = vadd.f32 %v4401, %v4514
      %v4526 = vld [vmem:[#allocation3 + $0x19] sm:$0xff]
      %v4527 = vld [vmem:[#allocation3 + $0x21] sm:$0xff]
      %v4528 = vld [vmem:[#allocation3 + $0x29] sm:$0xff]
      %v4529 = vld [vmem:[#allocation3 + $0x31] sm:$0xff]
      %v4530 = vld [vmem:[#allocation3 + $0x39] sm:$0xff]
      %v4531 = vld [vmem:[#allocation3 + $0x41] sm:$0xff]
      %v4532 = vld [vmem:[#allocation3 + $0x49] sm:$0xff]
      %v4533 = vld [vmem:[#allocation3 + $0x51] sm:$0xff]
      %v4534 = vld [vmem:[#allocation3 + $0x59] sm:$0xff]
      %v4535 = vld [vmem:[#allocation3 + $0x61] sm:$0xff]
      %v4536 = vpack.c.bf16 %v4527, %v4526
      %v4537 = vpack.c.bf16 %v4529, %v4528
      %v4538 = vpack.c.bf16 %v4531, %v4530
      %v4539 = vpack.c.bf16 %v4533, %v4532
      %v4540 = vpack.c.bf16 %v4535, %v4534
      %s4541 = scalar_lea.vmem %s3, 384
      %v4542 = vld [vmem:[%s4541] sm:$0xf]
      %v4543 = vld [vmem:[%s4541 + $0x4] sm:$0xf]
      %v4544 = vld [vmem:[%s4541 + $0x8] sm:$0xf]
      %v4545 = vld [vmem:[%s4541 + $0xc] sm:$0xf]
      %v4546 = vld [vmem:[%s4541 + $0x10] sm:$0xf]
      %v4547 = vld [vmem:[%s4541 + $0x14] sm:$0xf]
      %v4548 = vld [vmem:[%s4541 + $0x18] sm:$0xf]
      %v4549 = vld [vmem:[%s4541 + $0x1c] sm:$0xf]
      %v4550 = vld [vmem:[%s4541 + $0x20] sm:$0xf]
      %v4551 = vld [vmem:[%s4541 + $0x24] sm:$0xf]
      %v4552 = vld [vmem:[%s4541 + $0x28] sm:$0xf]
      %v4553 = vld [vmem:[%s4541 + $0x2c] sm:$0xf]
      %v4554 = vld [vmem:[%s4541 + $0x30] sm:$0xf]
      %v4555 = vld [vmem:[%s4541 + $0x34] sm:$0xf]
      %v4556 = vld [vmem:[%s4541 + $0x38] sm:$0xf]
      %v4557 = vld [vmem:[%s4541 + $0x3c] sm:$0xf]
      %v4574 = vunpack.c.l.b16 %v4542
      %v4575 = vunpack.c.l.b16 %v4543
      %v4576 = vunpack.c.l.b16 %v4544
      %v4577 = vunpack.c.l.b16 %v4545
      %v4578 = vunpack.c.l.b16 %v4546
      %v4579 = vunpack.c.l.b16 %v4547
      %v4580 = vunpack.c.l.b16 %v4548
      %v4581 = vunpack.c.l.b16 %v4549
      %v4582 = vunpack.c.l.b16 %v4550
      %v4583 = vunpack.c.l.b16 %v4551
      %v4584 = vunpack.c.l.b16 %v4552
      %v4585 = vunpack.c.l.b16 %v4553
      %v4586 = vunpack.c.l.b16 %v4554
      %v4587 = vunpack.c.l.b16 %v4555
      %v4588 = vunpack.c.l.b16 %v4556
      %v4589 = vunpack.c.l.b16 %v4557
      %v4590 = vpack.c.b16 %v4575, %v4574
      %v4591 = vpack.c.b16 %v4577, %v4576
      %v4592 = vpack.c.b16 %v4579, %v4578
      %v4593 = vpack.c.b16 %v4581, %v4580
      %v4594 = vpack.c.b16 %v4583, %v4582
      %v4595 = vpack.c.b16 %v4585, %v4584
      %v4596 = vpack.c.b16 %v4587, %v4586
      %v4597 = vpack.c.b16 %v4589, %v4588
      %4606 = vmatpush.bf16.msra.mxu0 %v4597
      %4607 = vmatpush.bf16.msra.mxu0 %v4596
      %4608 = vmatpush.bf16.msra.mxu0 %v4595
      %4609 = vmatpush.bf16.msra.mxu0 %v4594
      %4610 = vmatpush.bf16.msra.mxu0 %v4593
      %4611 = vmatpush.bf16.msra.mxu0 %v4592
      %4612 = vmatpush.bf16.msra.mxu0 %v4591
      %4613 = vmatpush.bf16.msra.mxu0 %v4590
      %4614 = vmatmul.bf16.gmra.mxu0 %v4536
      %v4615 = vpop.f32.mrf.mxu0
      %v4616 = vadd.f32 0.0, %v4615
      %v4617 = vpop.f32.mrf.mxu0
      %v4618 = vadd.f32 0.0, %v4617
      %4619 = vmatmul.bf16.gmra.mxu0 %v4537
      %v4620 = vpop.f32.mrf.mxu0
      %v4621 = vadd.f32 0.0, %v4620
      %v4622 = vpop.f32.mrf.mxu0
      %v4623 = vadd.f32 0.0, %v4622
      %4624 = vmatmul.bf16.gmra.mxu0 %v4538
      %v4625 = vpop.f32.mrf.mxu0
      %v4626 = vadd.f32 0.0, %v4625
      %v4627 = vpop.f32.mrf.mxu0
      %v4628 = vadd.f32 0.0, %v4627
      %4629 = vmatmul.bf16.gmra.mxu0 %v4539
      %v4630 = vpop.f32.mrf.mxu0
      %v4631 = vadd.f32 0.0, %v4630
      %v4632 = vpop.f32.mrf.mxu0
      %v4633 = vadd.f32 0.0, %v4632
      %4634 = vmatmul.bf16.gmra.mxu0 %v4540
      %v4635 = vpop.f32.mrf.mxu0
      %v4636 = vadd.f32 0.0, %v4635
      %v4637 = vpop.f32.mrf.mxu0
      %v4638 = vadd.f32 0.0, %v4637
      %4639 = vdwg.mxu0
      %v4640 = vadd.f32 %v4516, %v4616
      %v4641 = vadd.f32 %v4517, %v4618
      %v4642 = vadd.f32 %v4518, %v4621
      %v4643 = vadd.f32 %v4519, %v4623
      %v4644 = vadd.f32 %v4520, %v4626
      %v4645 = vadd.f32 %v4521, %v4628
      %v4646 = vadd.f32 %v4522, %v4631
      %v4647 = vadd.f32 %v4523, %v4633
      %v4648 = vadd.f32 %v4524, %v4636
      %v4649 = vadd.f32 %v4525, %v4638
      %v4650 = vld [vmem:[#allocation3 + $0x1a] sm:$0xff]
      %v4651 = vld [vmem:[#allocation3 + $0x22] sm:$0xff]
      %v4652 = vld [vmem:[#allocation3 + $0x2a] sm:$0xff]
      %v4653 = vld [vmem:[#allocation3 + $0x32] sm:$0xff]
      %v4654 = vld [vmem:[#allocation3 + $0x3a] sm:$0xff]
      %v4655 = vld [vmem:[#allocation3 + $0x42] sm:$0xff]
      %v4656 = vld [vmem:[#allocation3 + $0x4a] sm:$0xff]
      %v4657 = vld [vmem:[#allocation3 + $0x52] sm:$0xff]
      %v4658 = vld [vmem:[#allocation3 + $0x5a] sm:$0xff]
      %v4659 = vld [vmem:[#allocation3 + $0x62] sm:$0xff]
      %v4660 = vpack.c.bf16 %v4651, %v4650
      %v4661 = vpack.c.bf16 %v4653, %v4652
      %v4662 = vpack.c.bf16 %v4655, %v4654
      %v4663 = vpack.c.bf16 %v4657, %v4656
      %v4664 = vpack.c.bf16 %v4659, %v4658
      %s4665 = scalar_lea.vmem %s3, 448
      %v4666 = vld [vmem:[%s4665] sm:$0xf]
      %v4667 = vld [vmem:[%s4665 + $0x4] sm:$0xf]
      %v4668 = vld [vmem:[%s4665 + $0x8] sm:$0xf]
      %v4669 = vld [vmem:[%s4665 + $0xc] sm:$0xf]
      %v4670 = vld [vmem:[%s4665 + $0x10] sm:$0xf]
      %v4671 = vld [vmem:[%s4665 + $0x14] sm:$0xf]
      %v4672 = vld [vmem:[%s4665 + $0x18] sm:$0xf]
      %v4673 = vld [vmem:[%s4665 + $0x1c] sm:$0xf]
      %v4674 = vld [vmem:[%s4665 + $0x20] sm:$0xf]
      %v4675 = vld [vmem:[%s4665 + $0x24] sm:$0xf]
      %v4676 = vld [vmem:[%s4665 + $0x28] sm:$0xf]
      %v4677 = vld [vmem:[%s4665 + $0x2c] sm:$0xf]
      %v4678 = vld [vmem:[%s4665 + $0x30] sm:$0xf]
      %v4679 = vld [vmem:[%s4665 + $0x34] sm:$0xf]
      %v4680 = vld [vmem:[%s4665 + $0x38] sm:$0xf]
      %v4681 = vld [vmem:[%s4665 + $0x3c] sm:$0xf]
      %v4698 = vunpack.c.l.b16 %v4666
      %v4699 = vunpack.c.l.b16 %v4667
      %v4700 = vunpack.c.l.b16 %v4668
      %v4701 = vunpack.c.l.b16 %v4669
      %v4702 = vunpack.c.l.b16 %v4670
      %v4703 = vunpack.c.l.b16 %v4671
      %v4704 = vunpack.c.l.b16 %v4672
      %v4705 = vunpack.c.l.b16 %v4673
      %v4706 = vunpack.c.l.b16 %v4674
      %v4707 = vunpack.c.l.b16 %v4675
      %v4708 = vunpack.c.l.b16 %v4676
      %v4709 = vunpack.c.l.b16 %v4677
      %v4710 = vunpack.c.l.b16 %v4678
      %v4711 = vunpack.c.l.b16 %v4679
      %v4712 = vunpack.c.l.b16 %v4680
      %v4713 = vunpack.c.l.b16 %v4681
      %v4714 = vpack.c.b16 %v4699, %v4698
      %v4715 = vpack.c.b16 %v4701, %v4700
      %v4716 = vpack.c.b16 %v4703, %v4702
      %v4717 = vpack.c.b16 %v4705, %v4704
      %v4718 = vpack.c.b16 %v4707, %v4706
      %v4719 = vpack.c.b16 %v4709, %v4708
      %v4720 = vpack.c.b16 %v4711, %v4710
      %v4721 = vpack.c.b16 %v4713, %v4712
      %4730 = vmatpush.bf16.msra.mxu0 %v4721
      %4731 = vmatpush.bf16.msra.mxu0 %v4720
      %4732 = vmatpush.bf16.msra.mxu0 %v4719
      %4733 = vmatpush.bf16.msra.mxu0 %v4718
      %4734 = vmatpush.bf16.msra.mxu0 %v4717
      %4735 = vmatpush.bf16.msra.mxu0 %v4716
      %4736 = vmatpush.bf16.msra.mxu0 %v4715
      %4737 = vmatpush.bf16.msra.mxu0 %v4714
      %4738 = vmatmul.bf16.gmra.mxu0 %v4660
      %v4739 = vpop.f32.mrf.mxu0
      %v4740 = vadd.f32 0.0, %v4739
      %v4741 = vpop.f32.mrf.mxu0
      %v4742 = vadd.f32 0.0, %v4741
      %4743 = vmatmul.bf16.gmra.mxu0 %v4661
      %v4744 = vpop.f32.mrf.mxu0
      %v4745 = vadd.f32 0.0, %v4744
      %v4746 = vpop.f32.mrf.mxu0
      %v4747 = vadd.f32 0.0, %v4746
      %4748 = vmatmul.bf16.gmra.mxu0 %v4662
      %v4749 = vpop.f32.mrf.mxu0
      %v4750 = vadd.f32 0.0, %v4749
      %v4751 = vpop.f32.mrf.mxu0
      %v4752 = vadd.f32 0.0, %v4751
      %4753 = vmatmul.bf16.gmra.mxu0 %v4663
      %v4754 = vpop.f32.mrf.mxu0
      %v4755 = vadd.f32 0.0, %v4754
      %v4756 = vpop.f32.mrf.mxu0
      %v4757 = vadd.f32 0.0, %v4756
      %4758 = vmatmul.bf16.gmra.mxu0 %v4664
      %v4759 = vpop.f32.mrf.mxu0
      %v4760 = vadd.f32 0.0, %v4759
      %v4761 = vpop.f32.mrf.mxu0
      %v4762 = vadd.f32 0.0, %v4761
      %4763 = vdwg.mxu0
      %v4764 = vadd.f32 %v4640, %v4740
      %v4765 = vadd.f32 %v4641, %v4742
      %v4766 = vadd.f32 %v4642, %v4745
      %v4767 = vadd.f32 %v4643, %v4747
      %v4768 = vadd.f32 %v4644, %v4750
      %v4769 = vadd.f32 %v4645, %v4752
      %v4770 = vadd.f32 %v4646, %v4755
      %v4771 = vadd.f32 %v4647, %v4757
      %v4772 = vadd.f32 %v4648, %v4760
      %v4773 = vadd.f32 %v4649, %v4762
      %v4774 = vld [vmem:[#allocation3 + $0x1b] sm:$0xff]
      %v4775 = vld [vmem:[#allocation3 + $0x23] sm:$0xff]
      %v4776 = vld [vmem:[#allocation3 + $0x2b] sm:$0xff]
      %v4777 = vld [vmem:[#allocation3 + $0x33] sm:$0xff]
      %v4778 = vld [vmem:[#allocation3 + $0x3b] sm:$0xff]
      %v4779 = vld [vmem:[#allocation3 + $0x43] sm:$0xff]
      %v4780 = vld [vmem:[#allocation3 + $0x4b] sm:$0xff]
      %v4781 = vld [vmem:[#allocation3 + $0x53] sm:$0xff]
      %v4782 = vld [vmem:[#allocation3 + $0x5b] sm:$0xff]
      %v4783 = vld [vmem:[#allocation3 + $0x63] sm:$0xff]
      %v4784 = vpack.c.bf16 %v4775, %v4774
      %v4785 = vpack.c.bf16 %v4777, %v4776
      %v4786 = vpack.c.bf16 %v4779, %v4778
      %v4787 = vpack.c.bf16 %v4781, %v4780
      %v4788 = vpack.c.bf16 %v4783, %v4782
      %s4789 = scalar_lea.vmem %s3, 512
      %v4790 = vld [vmem:[%s4789] sm:$0xf]
      %v4791 = vld [vmem:[%s4789 + $0x4] sm:$0xf]
      %v4792 = vld [vmem:[%s4789 + $0x8] sm:$0xf]
      %v4793 = vld [vmem:[%s4789 + $0xc] sm:$0xf]
      %v4794 = vld [vmem:[%s4789 + $0x10] sm:$0xf]
      %v4795 = vld [vmem:[%s4789 + $0x14] sm:$0xf]
      %v4796 = vld [vmem:[%s4789 + $0x18] sm:$0xf]
      %v4797 = vld [vmem:[%s4789 + $0x1c] sm:$0xf]
      %v4798 = vld [vmem:[%s4789 + $0x20] sm:$0xf]
      %v4799 = vld [vmem:[%s4789 + $0x24] sm:$0xf]
      %v4800 = vld [vmem:[%s4789 + $0x28] sm:$0xf]
      %v4801 = vld [vmem:[%s4789 + $0x2c] sm:$0xf]
      %v4802 = vld [vmem:[%s4789 + $0x30] sm:$0xf]
      %v4803 = vld [vmem:[%s4789 + $0x34] sm:$0xf]
      %v4804 = vld [vmem:[%s4789 + $0x38] sm:$0xf]
      %v4805 = vld [vmem:[%s4789 + $0x3c] sm:$0xf]
      %v4822 = vunpack.c.l.b16 %v4790
      %v4823 = vunpack.c.l.b16 %v4791
      %v4824 = vunpack.c.l.b16 %v4792
      %v4825 = vunpack.c.l.b16 %v4793
      %v4826 = vunpack.c.l.b16 %v4794
      %v4827 = vunpack.c.l.b16 %v4795
      %v4828 = vunpack.c.l.b16 %v4796
      %v4829 = vunpack.c.l.b16 %v4797
      %v4830 = vunpack.c.l.b16 %v4798
      %v4831 = vunpack.c.l.b16 %v4799
      %v4832 = vunpack.c.l.b16 %v4800
      %v4833 = vunpack.c.l.b16 %v4801
      %v4834 = vunpack.c.l.b16 %v4802
      %v4835 = vunpack.c.l.b16 %v4803
      %v4836 = vunpack.c.l.b16 %v4804
      %v4837 = vunpack.c.l.b16 %v4805
      %v4838 = vpack.c.b16 %v4823, %v4822
      %v4839 = vpack.c.b16 %v4825, %v4824
      %v4840 = vpack.c.b16 %v4827, %v4826
      %v4841 = vpack.c.b16 %v4829, %v4828
      %v4842 = vpack.c.b16 %v4831, %v4830
      %v4843 = vpack.c.b16 %v4833, %v4832
      %v4844 = vpack.c.b16 %v4835, %v4834
      %v4845 = vpack.c.b16 %v4837, %v4836
      %4854 = vmatpush.bf16.msra.mxu0 %v4845
      %4855 = vmatpush.bf16.msra.mxu0 %v4844
      %4856 = vmatpush.bf16.msra.mxu0 %v4843
      %4857 = vmatpush.bf16.msra.mxu0 %v4842
      %4858 = vmatpush.bf16.msra.mxu0 %v4841
      %4859 = vmatpush.bf16.msra.mxu0 %v4840
      %4860 = vmatpush.bf16.msra.mxu0 %v4839
      %4861 = vmatpush.bf16.msra.mxu0 %v4838
      %4862 = vmatmul.bf16.gmra.mxu0 %v4784
      %v4863 = vpop.f32.mrf.mxu0
      %v4864 = vadd.f32 0.0, %v4863
      %v4865 = vpop.f32.mrf.mxu0
      %v4866 = vadd.f32 0.0, %v4865
      %4867 = vmatmul.bf16.gmra.mxu0 %v4785
      %v4868 = vpop.f32.mrf.mxu0
      %v4869 = vadd.f32 0.0, %v4868
      %v4870 = vpop.f32.mrf.mxu0
      %v4871 = vadd.f32 0.0, %v4870
      %4872 = vmatmul.bf16.gmra.mxu0 %v4786
      %v4873 = vpop.f32.mrf.mxu0
      %v4874 = vadd.f32 0.0, %v4873
      %v4875 = vpop.f32.mrf.mxu0
      %v4876 = vadd.f32 0.0, %v4875
      %4877 = vmatmul.bf16.gmra.mxu0 %v4787
      %v4878 = vpop.f32.mrf.mxu0
      %v4879 = vadd.f32 0.0, %v4878
      %v4880 = vpop.f32.mrf.mxu0
      %v4881 = vadd.f32 0.0, %v4880
      %4882 = vmatmul.bf16.gmra.mxu0 %v4788
      %v4883 = vpop.f32.mrf.mxu0
      %v4884 = vadd.f32 0.0, %v4883
      %v4885 = vpop.f32.mrf.mxu0
      %v4886 = vadd.f32 0.0, %v4885
      %4887 = vdwg.mxu0
      %v4888 = vadd.f32 %v4764, %v4864
      %v4889 = vadd.f32 %v4765, %v4866
      %v4890 = vadd.f32 %v4766, %v4869
      %v4891 = vadd.f32 %v4767, %v4871
      %v4892 = vadd.f32 %v4768, %v4874
      %v4893 = vadd.f32 %v4769, %v4876
      %v4894 = vadd.f32 %v4770, %v4879
      %v4895 = vadd.f32 %v4771, %v4881
      %v4896 = vadd.f32 %v4772, %v4884
      %v4897 = vadd.f32 %v4773, %v4886
      %v4898 = vld [vmem:[%s7] sm:$0x1]
      %v4899 = vperm.slane %v4898, 0
      %v4900 = vmul.f32 %v4888, %v4899
      %v4901 = vmul.f32 %v4889, %v4899
      %v4902 = vmul.f32 %v4890, %v4899
      %v4903 = vmul.f32 %v4891, %v4899
      %v4904 = vmul.f32 %v4892, %v4899
      %v4905 = vmul.f32 %v4893, %v4899
      %v4906 = vmul.f32 %v4894, %v4899
      %v4907 = vmul.f32 %v4895, %v4899
      %v4908 = vmul.f32 %v4896, %v4899
      %v4909 = vmul.f32 %v4897, %v4899
      %v4910 = vld [vmem:[%s7 + $0x1] sm:$0x1]
      %v4911 = vperm.slane %v4910, 0
      %v4912 = vadd.f32 %v4900, %v4911
      %v4913 = vadd.f32 %v4901, %v4911
      %v4914 = vadd.f32 %v4902, %v4911
      %v4915 = vadd.f32 %v4903, %v4911
      %v4916 = vadd.f32 %v4904, %v4911
      %v4917 = vadd.f32 %v4905, %v4911
      %v4918 = vadd.f32 %v4906, %v4911
      %v4919 = vadd.f32 %v4907, %v4911
      %v4920 = vadd.f32 %v4908, %v4911
      %v4921 = vadd.f32 %v4909, %v4911
      %v4922 = vmax.f32 %v4912, 0.0
      %v4923 = vmax.f32 %v4913, 0.0
      %v4924 = vmax.f32 %v4914, 0.0
      %v4925 = vmax.f32 %v4915, 0.0
      %v4926 = vmax.f32 %v4916, 0.0
      %v4927 = vmax.f32 %v4917, 0.0
      %v4928 = vmax.f32 %v4918, 0.0
      %v4929 = vmax.f32 %v4919, 0.0
      %v4930 = vmax.f32 %v4920, 0.0
      %v4931 = vmax.f32 %v4921, 0.0
      %v4932 = vpack.c.bf16 %v4923, %v4922
      %v4933 = vpack.c.bf16 %v4925, %v4924
      %v4934 = vpack.c.bf16 %v4927, %v4926
      %v4935 = vpack.c.bf16 %v4929, %v4928
      %v4936 = vpack.c.bf16 %v4931, %v4930
      %v4937 = vld [vmem:[%s4] sm:$0xf]
      %v4938 = vld [vmem:[%s4 + $0x4] sm:$0xf]
      %v4939 = vld [vmem:[%s4 + $0x8] sm:$0xf]
      %v4940 = vld [vmem:[%s4 + $0xc] sm:$0xf]
      %v4941 = vld [vmem:[%s4 + $0x10] sm:$0xf]
      %v4942 = vld [vmem:[%s4 + $0x14] sm:$0xf]
      %v4943 = vld [vmem:[%s4 + $0x18] sm:$0xf]
      %v4944 = vld [vmem:[%s4 + $0x1c] sm:$0xf]
      %v4953 = vunpack.c.l.b16 %v4937
      %v4954 = vunpack.c.l.b16 %v4938
      %v4955 = vunpack.c.l.b16 %v4939
      %v4956 = vunpack.c.l.b16 %v4940
      %v4957 = vunpack.c.l.b16 %v4941
      %v4958 = vunpack.c.l.b16 %v4942
      %v4959 = vunpack.c.l.b16 %v4943
      %v4960 = vunpack.c.l.b16 %v4944
      %v4961 = vpack.c.b16 %v4954, %v4953
      %v4962 = vpack.c.b16 %v4956, %v4955
      %v4963 = vpack.c.b16 %v4958, %v4957
      %v4964 = vpack.c.b16 %v4960, %v4959
      %vm4969 = vcmask 523264
      %v4971 = vsel %vm4969, %v4932, 0
      %v4974 = vsel %vm4969, %v4933, 0
      %v4977 = vsel %vm4969, %v4934, 0
      %v4980 = vsel %vm4969, %v4935, 0
      %v4983 = vsel %vm4969, %v4936, 0
      %4985 = vmatpush.bf16.msra.mxu0 0
      %4986 = vmatpush.bf16.msra.mxu0 0
      %4987 = vmatpush.bf16.msra.mxu0 0
      %4988 = vmatpush.bf16.msra.mxu0 0
      %4989 = vmatpush.bf16.msra.mxu0 %v4964
      %4990 = vmatpush.bf16.msra.mxu0 %v4963
      %4991 = vmatpush.bf16.msra.mxu0 %v4962
      %4992 = vmatpush.bf16.msra.mxu0 %v4961
      %4993 = vmatmul.bf16.gmra.mxu0 %v4971
      %v4994 = vpop.f32.mrf.mxu0
      %v4995 = vadd.f32 0.0, %v4994
      %v4996 = vpop.f32.mrf.mxu0
      %v4997 = vadd.f32 0.0, %v4996
      %4998 = vmatmul.bf16.gmra.mxu0 %v4974
      %v4999 = vpop.f32.mrf.mxu0
      %v5000 = vadd.f32 0.0, %v4999
      %v5001 = vpop.f32.mrf.mxu0
      %v5002 = vadd.f32 0.0, %v5001
      %5003 = vmatmul.bf16.gmra.mxu0 %v4977
      %v5004 = vpop.f32.mrf.mxu0
      %v5005 = vadd.f32 0.0, %v5004
      %v5006 = vpop.f32.mrf.mxu0
      %v5007 = vadd.f32 0.0, %v5006
      %5008 = vmatmul.bf16.gmra.mxu0 %v4980
      %v5009 = vpop.f32.mrf.mxu0
      %v5010 = vadd.f32 0.0, %v5009
      %v5011 = vpop.f32.mrf.mxu0
      %v5012 = vadd.f32 0.0, %v5011
      %5013 = vmatmul.bf16.gmra.mxu0 %v4983
      %v5014 = vpop.f32.mrf.mxu0
      %v5015 = vadd.f32 0.0, %v5014
      %v5016 = vpop.f32.mrf.mxu0
      %v5017 = vadd.f32 0.0, %v5016
      %5018 = vdwg.mxu0
      %v5019 = vld [vmem:[%s8] sm:$0x1]
      %v5020 = vperm.slane %v5019, 0
      %v5021 = vmul.f32 %v4995, %v5020
      %v5022 = vmul.f32 %v4997, %v5020
      %v5023 = vmul.f32 %v5000, %v5020
      %v5024 = vmul.f32 %v5002, %v5020
      %v5025 = vmul.f32 %v5005, %v5020
      %v5026 = vmul.f32 %v5007, %v5020
      %v5027 = vmul.f32 %v5010, %v5020
      %v5028 = vmul.f32 %v5012, %v5020
      %v5029 = vmul.f32 %v5015, %v5020
      %v5030 = vmul.f32 %v5017, %v5020
      %v5031 = vld [vmem:[%s8 + $0x1] sm:$0x1]
      %v5032 = vperm.slane %v5031, 0
      %v5033 = vadd.f32 %v5021, %v5032
      %v5034 = vadd.f32 %v5022, %v5032
      %v5035 = vadd.f32 %v5023, %v5032
      %v5036 = vadd.f32 %v5024, %v5032
      %v5037 = vadd.f32 %v5025, %v5032
      %v5038 = vadd.f32 %v5026, %v5032
      %v5039 = vadd.f32 %v5027, %v5032
      %v5040 = vadd.f32 %v5028, %v5032
      %v5041 = vadd.f32 %v5029, %v5032
      %v5042 = vadd.f32 %v5030, %v5032
      %5043 = vst [vmem:[%s332] sm:$0xff] %v5033
      %5044 = vst [vmem:[%s332 + $0x8] sm:$0xff] %v5034
      %5045 = vst [vmem:[%s332 + $0x10] sm:$0xff] %v5035
      %5046 = vst [vmem:[%s332 + $0x18] sm:$0xff] %v5036
      %5047 = vst [vmem:[%s332 + $0x20] sm:$0xff] %v5037
      %5048 = vst [vmem:[%s332 + $0x28] sm:$0xff] %v5038
      %5049 = vst [vmem:[%s332 + $0x30] sm:$0xff] %v5039
      %5050 = vst [vmem:[%s332 + $0x38] sm:$0xff] %v5040
      %5051 = vst [vmem:[%s332 + $0x40] sm:$0xff] %v5041
      %5052 = vst [vmem:[%s332 + $0x48] sm:$0xff] %v5042
      %p5053 = scmp.lt.s32.totalorder %s20, 1
      %s5054 = scalar_select %p5053, %s20, 1
      %s5055 = smul.addr %s5054, 10
      %s5056 = smul.addr %s5055, 8
      %s5057 = scalar_lea.vmem %s9, %s5056
      // Predicated region
      $region57: #{maess_decoder_forward.3} parent=55 // pred_check
        %p5058 = pneg %p232
      $region58: #{maess_decoder_forward.3} parent=55 // pred_check_branch
        %5060 = sbr.rel (%p5058) target = $region60
      $region59: #{maess_decoder_forward.3} parent=55 // pred_region
        _
      $region60: #{maess_decoder_forward.3} parent=55 // pred_fallthru
        _
    $region56: #{maess_decoder_forward.3} parent=5 // pred_fallthru
      _
    %p5061 = scmp.le.s32.totalorder 2, %s15
    // Predicated region
    $region61: #{maess_decoder_forward.3} parent=5 // pred_check
      %p5062 = pneg %p5061
    $region62: #{maess_decoder_forward.3} parent=5 // pred_check_branch
      %5064 = sbr.rel (%p5062) target = $region64
    $region63: #{maess_decoder_forward.3} parent=5 // pred_region
      %s5065 = ssub.s32 %s15, 2
      // Predicated region
      $region65: #{maess_decoder_forward.3} parent=63 // pred_check
        %p5066 = pneg %p238
      $region66: #{maess_decoder_forward.3} parent=63 // pred_check_branch
        %5068 = sbr.rel (%p5066) target = $region68
      $region67: #{maess_decoder_forward.3} parent=63 // pred_region
        %p5069 = scmp.lt.s32.totalorder %s21, 1
        %s5070 = scalar_select %p5069, %s21, 1
        %s5071 = smul.addr %s5070, 10
        %s5072 = smul.addr %s5071, 8
        %s5073 = scalar_lea.vmem %s9, %s5072
      $region68: #{maess_decoder_forward.3} parent=63 // pred_fallthru
        _
    $region64: #{maess_decoder_forward.3} parent=5 // pred_fallthru
      _
  $region6: #{maess_decoder_forward.3} parent=0 // loop_footer
    %s19 = sadd.s32 1, %s15
  $region7: #{maess_decoder_forward.3} parent=0 // loop_footer_branch
    %14 = sbr.rel target = $region3
  $region8: #{maess_decoder_forward.3} parent=0 // loop_exit
    _

</llo_original>
